<compile_context>
chip_gen: v7x
topology: tpu7x:2x2x1
jax: 0.10.0
libtpu: 0.0.40
codegen_flags: <defaults>
</compile_context>

<pallas_src>
import functools

import numpy as np
import jax
import jax.numpy as jnp
from jax.experimental import pallas as pl
from jax.experimental.pallas import tpu as pltpu

HI = jax.lax.Precision.HIGHEST


# ---------------------------------------------------------------------------
# Fused Pallas kernel: one image (H*W, C) per program
# ---------------------------------------------------------------------------

def _residual_block_kernel(x_ref, e_ref, g1_ref, bt1_ref, g2_ref, bt2_ref,
                           m_ref, mt_ref, w1_ref, cb1_ref, w2_ref, cb2_ref,
                           o_ref, xpad_ref, *, H, W, C, G):
    L = H * W
    inv_n = 1.0 / float(L * (C // G))

    def group_norm_relu(v, gamma, beta):
        # v: (L, C) f32.  Per-group stats via tiny exact one-hot matmuls.
        s = jnp.sum(v, axis=0, keepdims=True)                # (1, C)
        ss = jnp.sum(v * v, axis=0, keepdims=True)           # (1, C)
        gs = jnp.dot(s, m_ref[...], precision=HI,
                     preferred_element_type=jnp.float32)     # (1, G)
        gss = jnp.dot(ss, m_ref[...], precision=HI,
                      preferred_element_type=jnp.float32)    # (1, G)
        mean_g = gs * inv_n
        var_g = gss * inv_n - mean_g * mean_g
        inv_g = jax.lax.rsqrt(var_g + 1e-5)
        mean_c = jnp.dot(mean_g, mt_ref[...], precision=HI,
                         preferred_element_type=jnp.float32)  # (1, C)
        inv_c = jnp.dot(inv_g, mt_ref[...], precision=HI,
                        preferred_element_type=jnp.float32)   # (1, C)
        y = (v - mean_c) * (inv_c * gamma) + beta
        return jnp.maximum(y, 0.0)

    def conv3x3(v, w_ref, cb_ref):
        # 'same' 3x3 conv as ONE im2col matmul: (L, 9C) x (9C, C), bf16 in / f32 acc.
        xpad_ref[...] = jnp.zeros((H + 2, W + 2, C), jnp.float32)
        xpad_ref[1:H + 1, 1:W + 1, :] = v.reshape(H, W, C)
        xp = xpad_ref[...]                                    # (H+2, W+2, C) zero-padded
        cols = [xp[dy:dy + H, dx:dx + W, :].reshape(L, C)
                for dy in range(3) for dx in range(3)]
        patches = jnp.concatenate(cols, axis=-1).astype(jnp.bfloat16)   # (L, 9C)
        acc = jnp.dot(patches, w_ref[...], preferred_element_type=jnp.float32)
        return acc + cb_ref[...]

    x1 = x_ref[0] + e_ref[0]                                  # (L, C) f32
    h = group_norm_relu(x1, g1_ref[...], bt1_ref[...])
    h = conv3x3(h, w1_ref, cb1_ref)
    # dropout(p=0.0) == identity
    h = group_norm_relu(h, g2_ref[...], bt2_ref[...])
    h = conv3x3(h, w2_ref, cb2_ref)
    o_ref[0] = h + x1


# ---------------------------------------------------------------------------
# Wrapper: parameter prep + single pallas_call
# ---------------------------------------------------------------------------

def _group_onehot(C, G):
    M = np.zeros((C, G), np.float32)
    cg = C // G
    for c in range(C):
        M[c, c // cg] = 1.0
    return jnp.asarray(M), jnp.asarray(M.T)


def _conv_w_to_im2col(w):
    """torch OIHW (Cout, Cin, 3, 3) -> (9*Cin, Cout); row = (ky*3+kx)*Cin + cin."""
    Cout, Cin = w.shape[0], w.shape[1]
    return jnp.transpose(w, (2, 3, 1, 0)).reshape(9 * Cin, Cout)


def residual_block_pallas(x, embeddings, params, num_groups):
    B, C, H, W = x.shape
    L = H * W
    G = num_groups

    x_flat = jnp.transpose(x, (0, 2, 3, 1)).reshape(B, L, C)
    e_flat = jnp.transpose(embeddings[:, :C], (0, 2, 3, 1)).reshape(B, L, C)

    M, MT = _group_onehot(C, G)
    w1 = _conv_w_to_im2col(params["cw1"]).astype(jnp.bfloat16)
    w2 = _conv_w_to_im2col(params["cw2"]).astype(jnp.bfloat16)
    cb1 = params["cb1"].reshape(1, C)
    cb2 = params["cb2"].reshape(1, C)
    g1 = params["gn1_g"].reshape(1, C)
    bt1 = params["gn1_b"].reshape(1, C)
    g2 = params["gn2_g"].reshape(1, C)
    bt2 = params["gn2_b"].reshape(1, C)

    kern = functools.partial(_residual_block_kernel, H=H, W=W, C=C, G=G)
    batch_map = lambda i: (i, 0, 0)
    full2d = lambda i: (0, 0)

    out_flat = pl.pallas_call(
        kern,
        out_shape=jax.ShapeDtypeStruct((B, L, C), jnp.float32),
        grid=(B,),
        in_specs=[
            pl.BlockSpec((1, L, C), batch_map),        # x
            pl.BlockSpec((1, L, C), batch_map),        # embeddings
            pl.BlockSpec((1, C), full2d),              # gn1 gamma
            pl.BlockSpec((1, C), full2d),              # gn1 beta
            pl.BlockSpec((1, C), full2d),              # gn2 gamma
            pl.BlockSpec((1, C), full2d),              # gn2 beta
            pl.BlockSpec((C, G), full2d),              # one-hot M
            pl.BlockSpec((G, C), full2d),              # one-hot M^T
            pl.BlockSpec((9 * C, C), full2d),          # conv1 weight (im2col, bf16)
            pl.BlockSpec((1, C), full2d),              # conv1 bias
            pl.BlockSpec((9 * C, C), full2d),          # conv2 weight (im2col, bf16)
            pl.BlockSpec((1, C), full2d),              # conv2 bias
        ],
        out_specs=pl.BlockSpec((1, L, C), batch_map),
        scratch_shapes=[pltpu.VMEM((H + 2, W + 2, C), jnp.float32)],
        compiler_params=pltpu.CompilerParams(dimension_semantics=("parallel",)),
    )(x_flat, e_flat, g1, bt1, g2, bt2, M, MT, w1, cb1, w2, cb2)

    return jnp.transpose(out_flat.reshape(B, H, W, C), (0, 3, 1, 2))


# ---------------------------------------------------------------------------
# Pure-JAX reference (PyTorch semantics, f32 HIGHEST precision)
# ---------------------------------------------------------------------------

def ref_group_norm(x, gamma, beta, G, eps=1e-5):
    B, C, H, W = x.shape
    xg = x.reshape(B, G, -1)
    mu = xg.mean(axis=-1, keepdims=True)
    var = ((xg - mu) ** 2).mean(axis=-1, keepdims=True)
    xn = ((xg - mu) / jnp.sqrt(var + eps)).reshape(B, C, H, W)
    return xn * gamma[None, :, None, None] + beta[None, :, None, None]


def ref_conv3x3(x, w, b):
    y = jax.lax.conv_general_dilated(x, w, (1, 1), ((1, 1), (1, 1)),
                                     dimension_numbers=("NCHW", "OIHW", "NCHW"),
                                     precision=HI)
    return y + b[None, :, None, None]


def ref_residual_block(x, emb, p, G):
    x1 = x + emb[:, :x.shape[1]]
    h = jax.nn.relu(ref_group_norm(x1, p["gn1_g"], p["gn1_b"], G))
    h = ref_conv3x3(h, p["cw1"], p["cb1"])
    h = jax.nn.relu(ref_group_norm(h, p["gn2_g"], p["gn2_b"], G))
    h = ref_conv3x3(h, p["cw2"], p["cb2"])
    return h + x1


# ---------------------------------------------------------------------------
# Deterministic init + main
# ---------------------------------------------------------------------------

def init_params(key, C):
    ks = jax.random.split(key, 8)

    def nrm(k, shape, s=0.05):
        return s * jax.random.normal(k, shape, jnp.float32)

    return dict(
        gn1_g=1.0 + 0.1 * jax.random.normal(ks[0], (C,), jnp.float32),
        gn1_b=0.1 * jax.random.normal(ks[1], (C,), jnp.float32),
        gn2_g=1.0 + 0.1 * jax.random.normal(ks[2], (C,), jnp.float32),
        gn2_b=0.1 * jax.random.normal(ks[3], (C,), jnp.float32),
        cw1=nrm(ks[4], (C, C, 3, 3)), cb1=nrm(ks[5], (C,)),
        cw2=nrm(ks[6], (C, C, 3, 3)), cb2=nrm(ks[7], (C,)))


if __name__ == "__main__":
    B, C, H, W = 2, 32, 8, 8
    NUM_GROUPS = 8

    key = jax.random.PRNGKey(0)
    kx, ke, kp = jax.random.split(key, 3)
    x = jax.random.normal(kx, (B, C, H, W), jnp.float32)
    embeddings = jax.random.normal(ke, (B, C, H, W), jnp.float32)
    params = init_params(kp, C)

    fwd = jax.jit(functools.partial(residual_block_pallas, num_groups=NUM_GROUPS))
    out = fwd(x, embeddings, params)
    jax.block_until_ready(out)

    ref = ref_residual_block(x, embeddings, params, NUM_GROUPS)
    jax.block_until_ready(ref)

    assert out.shape == (B, C, H, W)
    # Pallas convs run bf16 operands with f32 accumulation; reference is f32 HIGHEST.
    np.testing.assert_allclose(np.asarray(out), np.asarray(ref), rtol=2e-2, atol=2e-2)
    print("KERNEL_OK")
</pallas_src>

<mosaic_0001>
module attributes {stable_mosaic.version = 11 : i64} {
  func.func @_residual_block_kernel(%arg0: i32, %arg1: memref<1x64x32xf32, #tpu.memory_space<vmem>>, %arg2: memref<1x64x32xf32, #tpu.memory_space<vmem>>, %arg3: memref<1x32xf32, #tpu.memory_space<vmem>>, %arg4: memref<1x32xf32, #tpu.memory_space<vmem>>, %arg5: memref<1x32xf32, #tpu.memory_space<vmem>>, %arg6: memref<1x32xf32, #tpu.memory_space<vmem>>, %arg7: memref<32x8xf32, #tpu.memory_space<vmem>>, %arg8: memref<8x32xf32, #tpu.memory_space<vmem>>, %arg9: memref<288x32xbf16, #tpu.memory_space<vmem>>, %arg10: memref<1x32xf32, #tpu.memory_space<vmem>>, %arg11: memref<288x32xbf16, #tpu.memory_space<vmem>>, %arg12: memref<1x32xf32, #tpu.memory_space<vmem>>, %arg13: memref<1x64x32xf32, #tpu.memory_space<vmem>>, %arg14: memref<10x10x32xf32, #tpu.memory_space<vmem>>) attributes {dimension_semantics = [#tpu.dimension_semantics<parallel>], iteration_bounds = array<i64: 2>, scalar_prefetch = 0 : i64, scratch_operands = 1 : i64, tpu.core_type = #tpu.core_type<tc>, window_params = [{transform_indices = @transform_0, window_bounds = array<i64: 1, 64, 32>}, {transform_indices = @transform_1, window_bounds = array<i64: 1, 64, 32>}, {pipeline_mode = #tpu.pipeline_mode<synchronous>, transform_indices = @transform_2, window_bounds = array<i64: 1, 32>}, {pipeline_mode = #tpu.pipeline_mode<synchronous>, transform_indices = @transform_3, window_bounds = array<i64: 1, 32>}, {pipeline_mode = #tpu.pipeline_mode<synchronous>, transform_indices = @transform_4, window_bounds = array<i64: 1, 32>}, {pipeline_mode = #tpu.pipeline_mode<synchronous>, transform_indices = @transform_5, window_bounds = array<i64: 1, 32>}, {pipeline_mode = #tpu.pipeline_mode<synchronous>, transform_indices = @transform_6, window_bounds = array<i64: 32, 8>}, {pipeline_mode = #tpu.pipeline_mode<synchronous>, transform_indices = @transform_7, window_bounds = array<i64: 8, 32>}, {pipeline_mode = #tpu.pipeline_mode<synchronous>, transform_indices = @transform_8, window_bounds = array<i64: 288, 32>}, {pipeline_mode = #tpu.pipeline_mode<synchronous>, transform_indices = @transform_9, window_bounds = array<i64: 1, 32>}, {pipeline_mode = #tpu.pipeline_mode<synchronous>, transform_indices = @transform_10, window_bounds = array<i64: 288, 32>}, {pipeline_mode = #tpu.pipeline_mode<synchronous>, transform_indices = @transform_11, window_bounds = array<i64: 1, 32>}, {transform_indices = @transform_12, window_bounds = array<i64: 1, 64, 32>}]} {
    %c0 = arith.constant 0 : index
    %c0_0 = arith.constant 0 : index
    %c0_1 = arith.constant 0 : index
    %0 = vector.load %arg1[%c0, %c0_0, %c0_1] : memref<1x64x32xf32, #tpu.memory_space<vmem>>, vector<1x64x32xf32>
    %1 = vector.shape_cast %0 : vector<1x64x32xf32> to vector<64x32xf32>
    %c0_2 = arith.constant 0 : index
    %c0_3 = arith.constant 0 : index
    %c0_4 = arith.constant 0 : index
    %2 = vector.load %arg2[%c0_2, %c0_3, %c0_4] : memref<1x64x32xf32, #tpu.memory_space<vmem>>, vector<1x64x32xf32>
    %3 = vector.shape_cast %2 : vector<1x64x32xf32> to vector<64x32xf32>
    %4 = arith.addf %1, %3 : vector<64x32xf32>
    %c0_5 = arith.constant 0 : index
    %c0_6 = arith.constant 0 : index
    %5 = vector.load %arg3[%c0_5, %c0_6] : memref<1x32xf32, #tpu.memory_space<vmem>>, vector<1x32xf32>
    %c0_7 = arith.constant 0 : index
    %c0_8 = arith.constant 0 : index
    %6 = vector.load %arg4[%c0_7, %c0_8] : memref<1x32xf32, #tpu.memory_space<vmem>>, vector<1x32xf32>
    %cst = arith.constant dense<0.000000e+00> : vector<32xf32>
    %7 = vector.multi_reduction <add>, %4, %cst [0] : vector<64x32xf32> to vector<32xf32>
    %8 = vector.shape_cast %7 : vector<32xf32> to vector<1x32xf32>
    %9 = arith.mulf %4, %4 : vector<64x32xf32>
    %cst_9 = arith.constant dense<0.000000e+00> : vector<32xf32>
    %10 = vector.multi_reduction <add>, %9, %cst_9 [0] : vector<64x32xf32> to vector<32xf32>
    %11 = vector.shape_cast %10 : vector<32xf32> to vector<1x32xf32>
    %c0_10 = arith.constant 0 : index
    %c0_11 = arith.constant 0 : index
    %12 = vector.load %arg7[%c0_10, %c0_11] : memref<32x8xf32, #tpu.memory_space<vmem>>, vector<32x8xf32>
    %cst_12 = arith.constant dense<0.000000e+00> : vector<1x8xf32>
    %13 = tpu.matmul %8, %12, %cst_12 {dimension_numbers = #tpu.dot_dimension_numbers<[1], [0], [0], [1], [0, 0, 1, 1], [], []>, precision = #tpu.contract_precision<fp32>} : vector<1x32xf32>, vector<32x8xf32>, vector<1x8xf32> -> vector<1x8xf32>
    %c0_13 = arith.constant 0 : index
    %c0_14 = arith.constant 0 : index
    %14 = vector.load %arg7[%c0_13, %c0_14] : memref<32x8xf32, #tpu.memory_space<vmem>>, vector<32x8xf32>
    %cst_15 = arith.constant dense<0.000000e+00> : vector<1x8xf32>
    %15 = tpu.matmul %11, %14, %cst_15 {dimension_numbers = #tpu.dot_dimension_numbers<[1], [0], [0], [1], [0, 0, 1, 1], [], []>, precision = #tpu.contract_precision<fp32>} : vector<1x32xf32>, vector<32x8xf32>, vector<1x8xf32> -> vector<1x8xf32>
    %cst_16 = arith.constant 3.906250e-03 : f32
    %16 = vector.broadcast %cst_16 : f32 to vector<1x8xf32>
    %17 = arith.mulf %13, %16 : vector<1x8xf32>
    %cst_17 = arith.constant 3.906250e-03 : f32
    %18 = vector.broadcast %cst_17 : f32 to vector<1x8xf32>
    %19 = arith.mulf %15, %18 : vector<1x8xf32>
    %20 = arith.mulf %17, %17 : vector<1x8xf32>
    %21 = arith.subf %19, %20 : vector<1x8xf32>
    %cst_18 = arith.constant 9.99999974E-6 : f32
    %22 = vector.broadcast %cst_18 : f32 to vector<1x8xf32>
    %23 = arith.addf %21, %22 : vector<1x8xf32>
    %24 = math.rsqrt %23 : vector<1x8xf32>
    %c0_19 = arith.constant 0 : index
    %c0_20 = arith.constant 0 : index
    %25 = vector.load %arg8[%c0_19, %c0_20] : memref<8x32xf32, #tpu.memory_space<vmem>>, vector<8x32xf32>
    %cst_21 = arith.constant dense<0.000000e+00> : vector<1x32xf32>
    %26 = tpu.matmul %17, %25, %cst_21 {dimension_numbers = #tpu.dot_dimension_numbers<[1], [0], [0], [1], [0, 0, 1, 1], [], []>, precision = #tpu.contract_precision<fp32>} : vector<1x8xf32>, vector<8x32xf32>, vector<1x32xf32> -> vector<1x32xf32>
    %c0_22 = arith.constant 0 : index
    %c0_23 = arith.constant 0 : index
    %27 = vector.load %arg8[%c0_22, %c0_23] : memref<8x32xf32, #tpu.memory_space<vmem>>, vector<8x32xf32>
    %cst_24 = arith.constant dense<0.000000e+00> : vector<1x32xf32>
    %28 = tpu.matmul %24, %27, %cst_24 {dimension_numbers = #tpu.dot_dimension_numbers<[1], [0], [0], [1], [0, 0, 1, 1], [], []>, precision = #tpu.contract_precision<fp32>} : vector<1x8xf32>, vector<8x32xf32>, vector<1x32xf32> -> vector<1x32xf32>
    %29 = vector.broadcast %26 : vector<1x32xf32> to vector<64x32xf32>
    %30 = arith.subf %4, %29 : vector<64x32xf32>
    %31 = arith.mulf %28, %5 : vector<1x32xf32>
    %32 = vector.broadcast %31 : vector<1x32xf32> to vector<64x32xf32>
    %33 = arith.mulf %30, %32 : vector<64x32xf32>
    %34 = vector.broadcast %6 : vector<1x32xf32> to vector<64x32xf32>
    %35 = arith.addf %33, %34 : vector<64x32xf32>
    %cst_25 = arith.constant 0.000000e+00 : f32
    %36 = vector.broadcast %cst_25 : f32 to vector<64x32xf32>
    %37 = arith.maximumf %35, %36 : vector<64x32xf32>
    %cst_26 = arith.constant 0.000000e+00 : f32
    %38 = vector.broadcast %cst_26 : f32 to vector<10x10x32xf32>
    %c0_27 = arith.constant 0 : index
    %c0_28 = arith.constant 0 : index
    %c0_29 = arith.constant 0 : index
    %39 = vector.load %arg14[%c0_27, %c0_28, %c0_29] : memref<10x10x32xf32, #tpu.memory_space<vmem>>, vector<10x10x32xf32>
    tpu.vector_store %arg14[%c0_27, %c0_28, %c0_29], %38 {strides = array<i32>} : memref<10x10x32xf32, #tpu.memory_space<vmem>>, vector<10x10x32xf32>,
    %40 = vector.shape_cast %37 : vector<64x32xf32> to vector<8x8x32xf32>
    %c1 = arith.constant 1 : index
    %c1_30 = arith.constant 1 : index
    %c0_31 = arith.constant 0 : index
    %41 = vector.load %arg14[%c1, %c1_30, %c0_31] : memref<10x10x32xf32, #tpu.memory_space<vmem>>, vector<8x8x32xf32>
    tpu.vector_store %arg14[%c1, %c1_30, %c0_31], %40 {strides = array<i32>} : memref<10x10x32xf32, #tpu.memory_space<vmem>>, vector<8x8x32xf32>,
    %c0_32 = arith.constant 0 : index
    %c0_33 = arith.constant 0 : index
    %c0_34 = arith.constant 0 : index
    %42 = vector.load %arg14[%c0_32, %c0_33, %c0_34] : memref<10x10x32xf32, #tpu.memory_space<vmem>>, vector<10x10x32xf32>
    %43 = vector.extract_strided_slice %42 {offsets = [0, 0, 0], sizes = [8, 8, 32], strides = [1, 1, 1]} : vector<10x10x32xf32> to vector<8x8x32xf32>
    %44 = vector.shape_cast %43 : vector<8x8x32xf32> to vector<64x32xf32>
    %45 = vector.extract_strided_slice %42 {offsets = [0, 1, 0], sizes = [8, 8, 32], strides = [1, 1, 1]} : vector<10x10x32xf32> to vector<8x8x32xf32>
    %46 = vector.shape_cast %45 : vector<8x8x32xf32> to vector<64x32xf32>
    %47 = vector.extract_strided_slice %42 {offsets = [0, 2, 0], sizes = [8, 8, 32], strides = [1, 1, 1]} : vector<10x10x32xf32> to vector<8x8x32xf32>
    %48 = vector.shape_cast %47 : vector<8x8x32xf32> to vector<64x32xf32>
    %49 = vector.extract_strided_slice %42 {offsets = [1, 0, 0], sizes = [8, 8, 32], strides = [1, 1, 1]} : vector<10x10x32xf32> to vector<8x8x32xf32>
    %50 = vector.shape_cast %49 : vector<8x8x32xf32> to vector<64x32xf32>
    %51 = vector.extract_strided_slice %42 {offsets = [1, 1, 0], sizes = [8, 8, 32], strides = [1, 1, 1]} : vector<10x10x32xf32> to vector<8x8x32xf32>
    %52 = vector.shape_cast %51 : vector<8x8x32xf32> to vector<64x32xf32>
    %53 = vector.extract_strided_slice %42 {offsets = [1, 2, 0], sizes = [8, 8, 32], strides = [1, 1, 1]} : vector<10x10x32xf32> to vector<8x8x32xf32>
    %54 = vector.shape_cast %53 : vector<8x8x32xf32> to vector<64x32xf32>
    %55 = vector.extract_strided_slice %42 {offsets = [2, 0, 0], sizes = [8, 8, 32], strides = [1, 1, 1]} : vector<10x10x32xf32> to vector<8x8x32xf32>
    %56 = vector.shape_cast %55 : vector<8x8x32xf32> to vector<64x32xf32>
    %57 = vector.extract_strided_slice %42 {offsets = [2, 1, 0], sizes = [8, 8, 32], strides = [1, 1, 1]} : vector<10x10x32xf32> to vector<8x8x32xf32>
    %58 = vector.shape_cast %57 : vector<8x8x32xf32> to vector<64x32xf32>
    %59 = vector.extract_strided_slice %42 {offsets = [2, 2, 0], sizes = [8, 8, 32], strides = [1, 1, 1]} : vector<10x10x32xf32> to vector<8x8x32xf32>
    %60 = vector.shape_cast %59 : vector<8x8x32xf32> to vector<64x32xf32>
    %61 = tpu.concatenate %44, %46, %48, %50, %52, %54, %56, %58, %60 in 1 : vector<64x32xf32>, vector<64x32xf32>, vector<64x32xf32>, vector<64x32xf32>, vector<64x32xf32>, vector<64x32xf32>, vector<64x32xf32>, vector<64x32xf32>, vector<64x32xf32> -> vector<64x288xf32>
    %62 = arith.truncf %61 : vector<64x288xf32> to vector<64x288xbf16>
    %c0_35 = arith.constant 0 : index
    %c0_36 = arith.constant 0 : index
    %63 = vector.load %arg9[%c0_35, %c0_36] : memref<288x32xbf16, #tpu.memory_space<vmem>>, vector<288x32xbf16>
    %cst_37 = arith.constant dense<0.000000e+00> : vector<64x32xf32>
    %64 = tpu.matmul %62, %63, %cst_37 {dimension_numbers = #tpu.dot_dimension_numbers<[1], [0], [0], [1], [0, 0, 1, 1], [], []>} : vector<64x288xbf16>, vector<288x32xbf16>, vector<64x32xf32> -> vector<64x32xf32>
    %c0_38 = arith.constant 0 : index
    %c0_39 = arith.constant 0 : index
    %65 = vector.load %arg10[%c0_38, %c0_39] : memref<1x32xf32, #tpu.memory_space<vmem>>, vector<1x32xf32>
    %66 = vector.broadcast %65 : vector<1x32xf32> to vector<64x32xf32>
    %67 = arith.addf %64, %66 : vector<64x32xf32>
    %c0_40 = arith.constant 0 : index
    %c0_41 = arith.constant 0 : index
    %68 = vector.load %arg5[%c0_40, %c0_41] : memref<1x32xf32, #tpu.memory_space<vmem>>, vector<1x32xf32>
    %c0_42 = arith.constant 0 : index
    %c0_43 = arith.constant 0 : index
    %69 = vector.load %arg6[%c0_42, %c0_43] : memref<1x32xf32, #tpu.memory_space<vmem>>, vector<1x32xf32>
    %cst_44 = arith.constant dense<0.000000e+00> : vector<32xf32>
    %70 = vector.multi_reduction <add>, %67, %cst_44 [0] : vector<64x32xf32> to vector<32xf32>
    %71 = vector.shape_cast %70 : vector<32xf32> to vector<1x32xf32>
    %72 = arith.mulf %67, %67 : vector<64x32xf32>
    %cst_45 = arith.constant dense<0.000000e+00> : vector<32xf32>
    %73 = vector.multi_reduction <add>, %72, %cst_45 [0] : vector<64x32xf32> to vector<32xf32>
    %74 = vector.shape_cast %73 : vector<32xf32> to vector<1x32xf32>
    %c0_46 = arith.constant 0 : index
    %c0_47 = arith.constant 0 : index
    %75 = vector.load %arg7[%c0_46, %c0_47] : memref<32x8xf32, #tpu.memory_space<vmem>>, vector<32x8xf32>
    %cst_48 = arith.constant dense<0.000000e+00> : vector<1x8xf32>
    %76 = tpu.matmul %71, %75, %cst_48 {dimension_numbers = #tpu.dot_dimension_numbers<[1], [0], [0], [1], [0, 0, 1, 1], [], []>, precision = #tpu.contract_precision<fp32>} : vector<1x32xf32>, vector<32x8xf32>, vector<1x8xf32> -> vector<1x8xf32>
    %c0_49 = arith.constant 0 : index
    %c0_50 = arith.constant 0 : index
    %77 = vector.load %arg7[%c0_49, %c0_50] : memref<32x8xf32, #tpu.memory_space<vmem>>, vector<32x8xf32>
    %cst_51 = arith.constant dense<0.000000e+00> : vector<1x8xf32>
    %78 = tpu.matmul %74, %77, %cst_51 {dimension_numbers = #tpu.dot_dimension_numbers<[1], [0], [0], [1], [0, 0, 1, 1], [], []>, precision = #tpu.contract_precision<fp32>} : vector<1x32xf32>, vector<32x8xf32>, vector<1x8xf32> -> vector<1x8xf32>
    %cst_52 = arith.constant 3.906250e-03 : f32
    %79 = vector.broadcast %cst_52 : f32 to vector<1x8xf32>
    %80 = arith.mulf %76, %79 : vector<1x8xf32>
    %cst_53 = arith.constant 3.906250e-03 : f32
    %81 = vector.broadcast %cst_53 : f32 to vector<1x8xf32>
    %82 = arith.mulf %78, %81 : vector<1x8xf32>
    %83 = arith.mulf %80, %80 : vector<1x8xf32>
    %84 = arith.subf %82, %83 : vector<1x8xf32>
    %cst_54 = arith.constant 9.99999974E-6 : f32
    %85 = vector.broadcast %cst_54 : f32 to vector<1x8xf32>
    %86 = arith.addf %84, %85 : vector<1x8xf32>
    %87 = math.rsqrt %86 : vector<1x8xf32>
    %c0_55 = arith.constant 0 : index
    %c0_56 = arith.constant 0 : index
    %88 = vector.load %arg8[%c0_55, %c0_56] : memref<8x32xf32, #tpu.memory_space<vmem>>, vector<8x32xf32>
    %cst_57 = arith.constant dense<0.000000e+00> : vector<1x32xf32>
    %89 = tpu.matmul %80, %88, %cst_57 {dimension_numbers = #tpu.dot_dimension_numbers<[1], [0], [0], [1], [0, 0, 1, 1], [], []>, precision = #tpu.contract_precision<fp32>} : vector<1x8xf32>, vector<8x32xf32>, vector<1x32xf32> -> vector<1x32xf32>
    %c0_58 = arith.constant 0 : index
    %c0_59 = arith.constant 0 : index
    %90 = vector.load %arg8[%c0_58, %c0_59] : memref<8x32xf32, #tpu.memory_space<vmem>>, vector<8x32xf32>
    %cst_60 = arith.constant dense<0.000000e+00> : vector<1x32xf32>
    %91 = tpu.matmul %87, %90, %cst_60 {dimension_numbers = #tpu.dot_dimension_numbers<[1], [0], [0], [1], [0, 0, 1, 1], [], []>, precision = #tpu.contract_precision<fp32>} : vector<1x8xf32>, vector<8x32xf32>, vector<1x32xf32> -> vector<1x32xf32>
    %92 = vector.broadcast %89 : vector<1x32xf32> to vector<64x32xf32>
    %93 = arith.subf %67, %92 : vector<64x32xf32>
    %94 = arith.mulf %91, %68 : vector<1x32xf32>
    %95 = vector.broadcast %94 : vector<1x32xf32> to vector<64x32xf32>
    %96 = arith.mulf %93, %95 : vector<64x32xf32>
    %97 = vector.broadcast %69 : vector<1x32xf32> to vector<64x32xf32>
    %98 = arith.addf %96, %97 : vector<64x32xf32>
    %cst_61 = arith.constant 0.000000e+00 : f32
    %99 = vector.broadcast %cst_61 : f32 to vector<64x32xf32>
    %100 = arith.maximumf %98, %99 : vector<64x32xf32>
    %cst_62 = arith.constant 0.000000e+00 : f32
    %101 = vector.broadcast %cst_62 : f32 to vector<10x10x32xf32>
    %c0_63 = arith.constant 0 : index
    %c0_64 = arith.constant 0 : index
    %c0_65 = arith.constant 0 : index
    %102 = vector.load %arg14[%c0_63, %c0_64, %c0_65] : memref<10x10x32xf32, #tpu.memory_space<vmem>>, vector<10x10x32xf32>
    tpu.vector_store %arg14[%c0_63, %c0_64, %c0_65], %101 {strides = array<i32>} : memref<10x10x32xf32, #tpu.memory_space<vmem>>, vector<10x10x32xf32>,
    %103 = vector.shape_cast %100 : vector<64x32xf32> to vector<8x8x32xf32>
    %c1_66 = arith.constant 1 : index
    %c1_67 = arith.constant 1 : index
    %c0_68 = arith.constant 0 : index
    %104 = vector.load %arg14[%c1_66, %c1_67, %c0_68] : memref<10x10x32xf32, #tpu.memory_space<vmem>>, vector<8x8x32xf32>
    tpu.vector_store %arg14[%c1_66, %c1_67, %c0_68], %103 {strides = array<i32>} : memref<10x10x32xf32, #tpu.memory_space<vmem>>, vector<8x8x32xf32>,
    %c0_69 = arith.constant 0 : index
    %c0_70 = arith.constant 0 : index
    %c0_71 = arith.constant 0 : index
    %105 = vector.load %arg14[%c0_69, %c0_70, %c0_71] : memref<10x10x32xf32, #tpu.memory_space<vmem>>, vector<10x10x32xf32>
    %106 = vector.extract_strided_slice %105 {offsets = [0, 0, 0], sizes = [8, 8, 32], strides = [1, 1, 1]} : vector<10x10x32xf32> to vector<8x8x32xf32>
    %107 = vector.shape_cast %106 : vector<8x8x32xf32> to vector<64x32xf32>
    %108 = vector.extract_strided_slice %105 {offsets = [0, 1, 0], sizes = [8, 8, 32], strides = [1, 1, 1]} : vector<10x10x32xf32> to vector<8x8x32xf32>
    %109 = vector.shape_cast %108 : vector<8x8x32xf32> to vector<64x32xf32>
    %110 = vector.extract_strided_slice %105 {offsets = [0, 2, 0], sizes = [8, 8, 32], strides = [1, 1, 1]} : vector<10x10x32xf32> to vector<8x8x32xf32>
    %111 = vector.shape_cast %110 : vector<8x8x32xf32> to vector<64x32xf32>
    %112 = vector.extract_strided_slice %105 {offsets = [1, 0, 0], sizes = [8, 8, 32], strides = [1, 1, 1]} : vector<10x10x32xf32> to vector<8x8x32xf32>
    %113 = vector.shape_cast %112 : vector<8x8x32xf32> to vector<64x32xf32>
    %114 = vector.extract_strided_slice %105 {offsets = [1, 1, 0], sizes = [8, 8, 32], strides = [1, 1, 1]} : vector<10x10x32xf32> to vector<8x8x32xf32>
    %115 = vector.shape_cast %114 : vector<8x8x32xf32> to vector<64x32xf32>
    %116 = vector.extract_strided_slice %105 {offsets = [1, 2, 0], sizes = [8, 8, 32], strides = [1, 1, 1]} : vector<10x10x32xf32> to vector<8x8x32xf32>
    %117 = vector.shape_cast %116 : vector<8x8x32xf32> to vector<64x32xf32>
    %118 = vector.extract_strided_slice %105 {offsets = [2, 0, 0], sizes = [8, 8, 32], strides = [1, 1, 1]} : vector<10x10x32xf32> to vector<8x8x32xf32>
    %119 = vector.shape_cast %118 : vector<8x8x32xf32> to vector<64x32xf32>
    %120 = vector.extract_strided_slice %105 {offsets = [2, 1, 0], sizes = [8, 8, 32], strides = [1, 1, 1]} : vector<10x10x32xf32> to vector<8x8x32xf32>
    %121 = vector.shape_cast %120 : vector<8x8x32xf32> to vector<64x32xf32>
    %122 = vector.extract_strided_slice %105 {offsets = [2, 2, 0], sizes = [8, 8, 32], strides = [1, 1, 1]} : vector<10x10x32xf32> to vector<8x8x32xf32>
    %123 = vector.shape_cast %122 : vector<8x8x32xf32> to vector<64x32xf32>
    %124 = tpu.concatenate %107, %109, %111, %113, %115, %117, %119, %121, %123 in 1 : vector<64x32xf32>, vector<64x32xf32>, vector<64x32xf32>, vector<64x32xf32>, vector<64x32xf32>, vector<64x32xf32>, vector<64x32xf32>, vector<64x32xf32>, vector<64x32xf32> -> vector<64x288xf32>
    %125 = arith.truncf %124 : vector<64x288xf32> to vector<64x288xbf16>
    %c0_72 = arith.constant 0 : index
    %c0_73 = arith.constant 0 : index
    %126 = vector.load %arg11[%c0_72, %c0_73] : memref<288x32xbf16, #tpu.memory_space<vmem>>, vector<288x32xbf16>
    %cst_74 = arith.constant dense<0.000000e+00> : vector<64x32xf32>
    %127 = tpu.matmul %125, %126, %cst_74 {dimension_numbers = #tpu.dot_dimension_numbers<[1], [0], [0], [1], [0, 0, 1, 1], [], []>} : vector<64x288xbf16>, vector<288x32xbf16>, vector<64x32xf32> -> vector<64x32xf32>
    %c0_75 = arith.constant 0 : index
    %c0_76 = arith.constant 0 : index
    %128 = vector.load %arg12[%c0_75, %c0_76] : memref<1x32xf32, #tpu.memory_space<vmem>>, vector<1x32xf32>
    %129 = vector.broadcast %128 : vector<1x32xf32> to vector<64x32xf32>
    %130 = arith.addf %127, %129 : vector<64x32xf32>
    %131 = arith.addf %130, %4 : vector<64x32xf32>
    %c0_77 = arith.constant 0 : index
    %c0_78 = arith.constant 0 : index
    %c0_79 = arith.constant 0 : index
    %132 = vector.load %arg13[%c0_77, %c0_78, %c0_79] : memref<1x64x32xf32, #tpu.memory_space<vmem>>, vector<1x64x32xf32>
    %133 = vector.shape_cast %132 : vector<1x64x32xf32> to vector<64x32xf32>
    %134 = vector.shape_cast %131 : vector<64x32xf32> to vector<1x64x32xf32>
    tpu.vector_store %arg13[%c0_77, %c0_78, %c0_79], %134 {strides = array<i32>} : memref<1x64x32xf32, #tpu.memory_space<vmem>>, vector<1x64x32xf32>,
    return
  }
  func.func @transform_0(%arg0: i32) -> (i32, i32, i32) {
    %c0_i32 = arith.constant 0 : i32
    %c0_i32_0 = arith.constant 0 : i32
    %c0_i32_1 = arith.constant 0 : i32
    return %arg0, %c0_i32, %c0_i32_0 : i32, i32, i32
  }
  func.func @transform_1(%arg0: i32) -> (i32, i32, i32) {
    %c0_i32 = arith.constant 0 : i32
    %c0_i32_0 = arith.constant 0 : i32
    %c0_i32_1 = arith.constant 0 : i32
    return %arg0, %c0_i32, %c0_i32_0 : i32, i32, i32
  }
  func.func @transform_2(%arg0: i32) -> (i32, i32) {
    %c0_i32 = arith.constant 0 : i32
    %c0_i32_0 = arith.constant 0 : i32
    %c0_i32_1 = arith.constant 0 : i32
    return %c0_i32, %c0_i32_0 : i32, i32
  }
  func.func @transform_3(%arg0: i32) -> (i32, i32) {
    %c0_i32 = arith.constant 0 : i32
    %c0_i32_0 = arith.constant 0 : i32
    %c0_i32_1 = arith.constant 0 : i32
    return %c0_i32, %c0_i32_0 : i32, i32
  }
  func.func @transform_4(%arg0: i32) -> (i32, i32) {
    %c0_i32 = arith.constant 0 : i32
    %c0_i32_0 = arith.constant 0 : i32
    %c0_i32_1 = arith.constant 0 : i32
    return %c0_i32, %c0_i32_0 : i32, i32
  }
  func.func @transform_5(%arg0: i32) -> (i32, i32) {
    %c0_i32 = arith.constant 0 : i32
    %c0_i32_0 = arith.constant 0 : i32
    %c0_i32_1 = arith.constant 0 : i32
    return %c0_i32, %c0_i32_0 : i32, i32
  }
  func.func @transform_6(%arg0: i32) -> (i32, i32) {
    %c0_i32 = arith.constant 0 : i32
    %c0_i32_0 = arith.constant 0 : i32
    %c0_i32_1 = arith.constant 0 : i32
    return %c0_i32, %c0_i32_0 : i32, i32
  }
  func.func @transform_7(%arg0: i32) -> (i32, i32) {
    %c0_i32 = arith.constant 0 : i32
    %c0_i32_0 = arith.constant 0 : i32
    %c0_i32_1 = arith.constant 0 : i32
    return %c0_i32, %c0_i32_0 : i32, i32
  }
  func.func @transform_8(%arg0: i32) -> (i32, i32) {
    %c0_i32 = arith.constant 0 : i32
    %c0_i32_0 = arith.constant 0 : i32
    %c0_i32_1 = arith.constant 0 : i32
    return %c0_i32, %c0_i32_0 : i32, i32
  }
  func.func @transform_9(%arg0: i32) -> (i32, i32) {
    %c0_i32 = arith.constant 0 : i32
    %c0_i32_0 = arith.constant 0 : i32
    %c0_i32_1 = arith.constant 0 : i32
    return %c0_i32, %c0_i32_0 : i32, i32
  }
  func.func @transform_10(%arg0: i32) -> (i32, i32) {
    %c0_i32 = arith.constant 0 : i32
    %c0_i32_0 = arith.constant 0 : i32
    %c0_i32_1 = arith.constant 0 : i32
    return %c0_i32, %c0_i32_0 : i32, i32
  }
  func.func @transform_11(%arg0: i32) -> (i32, i32) {
    %c0_i32 = arith.constant 0 : i32
    %c0_i32_0 = arith.constant 0 : i32
    %c0_i32_1 = arith.constant 0 : i32
    return %c0_i32, %c0_i32_0 : i32, i32
  }
  func.func @transform_12(%arg0: i32) -> (i32, i32, i32) {
    %c0_i32 = arith.constant 0 : i32
    %c0_i32_0 = arith.constant 0 : i32
    %c0_i32_1 = arith.constant 0 : i32
    return %arg0, %c0_i32, %c0_i32_0 : i32, i32, i32
  }
}

</mosaic_0001>

<llo_original>
// kernel: residual_block_pallas.1
$region0: #{residual_block_pallas.1}
  #allocation0 [shape = 'u32[]', space=smem, size = 0x4, offset = 0x4, fixed_abs, tag = 'smem constant byte address 0x4 - core index']
  #allocation1 [shape = 'u32[144,128]{1,0:T(1,128)}', space=vmem, size = 0x12000, scoped, tag = 'internal scratch']
  #allocation2 [shape = 'f32[10,10,32]{2,1,0:T(8,128)}', space=vmem, size = 0x14000, scoped, tag = 'scratch operand']
  %s0 = inlined_call_operand.vmem [shape: f32[2,64,32], index: 0, kind: input, shape index: {}]
  %s1 = inlined_call_operand.vmem [shape: f32[2,64,32], index: 1, kind: input, shape index: {}]
  %s2 = inlined_call_operand.vmem [shape: f32[1,32], index: 2, kind: input, shape index: {}]
  %s3 = inlined_call_operand.vmem [shape: f32[1,32], index: 3, kind: input, shape index: {}]
  %s4 = inlined_call_operand.vmem [shape: f32[1,32], index: 4, kind: input, shape index: {}]
  %s5 = inlined_call_operand.vmem [shape: f32[1,32], index: 5, kind: input, shape index: {}]
  %s6 = inlined_call_operand.vmem [shape: f32[32,8], index: 6, kind: input, shape index: {}]
  %s7 = inlined_call_operand.vmem [shape: f32[8,32], index: 7, kind: input, shape index: {}]
  %s8 = inlined_call_operand.vmem [shape: bf16[288,32], index: 8, kind: input, shape index: {}]
  %s9 = inlined_call_operand.vmem [shape: f32[1,32], index: 9, kind: input, shape index: {}]
  %s10 = inlined_call_operand.vmem [shape: bf16[288,32], index: 10, kind: input, shape index: {}]
  %s11 = inlined_call_operand.vmem [shape: f32[1,32], index: 11, kind: input, shape index: {}]
  %s12 = inlined_call_operand.hbm [shape: f32[2,64,32], index: 12, kind: output, shape index: {}]
  %s13 = sld [smem:[#allocation0]]
  $region81: #{residual_block_pallas.1} parent=0
    _
  %s15 = ssub.s32 1, %s13
  %s16 = scalar_select 0, %s15, %s13
  $region1: #{residual_block_pallas.1} parent=0
    #allocation3 [shape = 'u8[65536]{0}', space=vmem, size = 0x10000, scoped, tag = 'output window, operand 0']
    #allocation4 [shape = 's32[2]{0}', space=sflag, size = 0x8, scoped, tag = 'scoped memory for residual_block_pallas.1']
    %17 = vsyncpa [#allocation4], 0
    %s18 = scalar_lea.sflag [#allocation4], 1
    %19 = vsyncpa %s18, 0
    loop: start=0, step=1, limit=4
    $region2: #{residual_block_pallas.1} parent=1 // loop_pre_header
      _
    $region3: #{residual_block_pallas.1} parent=1 // loop_header
      %s21 = sphi 0, %s25
      %p22 = scmp.ge.s32.totalorder %s21, 4
      %s31 = sphi 0, %s33
      %s34 = sphi 0, %s31
      %s35 = sphi 0, %s34
      %s51 = sphi 0, %s35
      %s57 = sphi 0, %s59
      %s60 = sphi 0, %s57
      %s61 = sphi 0, %s60
      %s77 = sphi 0, %s61
      %s81 = sphi 0, %s81
      %s83 = sphi 0, %s81
      %s84 = sphi 0, %s83
      %s98 = sphi 0, %s84
      %s102 = sphi 0, %s102
      %s104 = sphi 0, %s102
      %s105 = sphi 0, %s104
      %s119 = sphi 0, %s105
      %s123 = sphi 0, %s123
      %s125 = sphi 0, %s123
      %s126 = sphi 0, %s125
      %s140 = sphi 0, %s126
      %s144 = sphi 0, %s144
      %s146 = sphi 0, %s144
      %s147 = sphi 0, %s146
      %s161 = sphi 0, %s147
      %s165 = sphi 0, %s165
      %s167 = sphi 0, %s165
      %s168 = sphi 0, %s167
      %s182 = sphi 0, %s168
      %s186 = sphi 0, %s186
      %s188 = sphi 0, %s186
      %s189 = sphi 0, %s188
      %s203 = sphi 0, %s189
      %s207 = sphi 0, %s207
      %s209 = sphi 0, %s207
      %s210 = sphi 0, %s209
      %s224 = sphi 0, %s210
      %s228 = sphi 0, %s228
      %s230 = sphi 0, %s228
      %s231 = sphi 0, %s230
      %s245 = sphi 0, %s231
      %s249 = sphi 0, %s249
      %s251 = sphi 0, %s249
      %s252 = sphi 0, %s251
      %s266 = sphi 0, %s252
      %s270 = sphi 0, %s270
      %s272 = sphi 0, %s270
      %s273 = sphi 0, %s272
      %s287 = sphi 0, %s273
      %s293 = sphi 0, %s295
      %s296 = sphi 0, %s293
      %s297 = sphi 0, %s296
      %s313 = sphi 0, %s297
    $region4: #{residual_block_pallas.1} parent=1 // loop_header_branch
      %24 = sbr.rel (%p22) target = $region8
    $region5: #{residual_block_pallas.1} parent=1 // loop_body
      %s26 = ssub.s32 %s21, 1
      %s27 = ssub.s32 %s21, 2
      %s28 = sadd.s32 %s21, 1
      %s29 = ssub.s32 %s21, %s28
      %p30 = scmp.eq.s32.totalorder %s29, 0
      %s32 = sadd.s32 %s31, 1
      %s33 = scalar_select %p30, %s31, %s32
      %p36 = pneg %p30
      %p37 = scmp.eq.s32.totalorder %s21, 1
      %p38 = por %p36, %p37
      %p39 = scmp.ne.s32.totalorder %s31, %s34
      %p40 = scmp.eq.s32.totalorder %s21, 0
      %p41 = por %p39, %p40
      %p42 = scmp.ne.s32.totalorder %s31, %s34
      %p43 = scmp.eq.s32.totalorder %s26, 1
      %p44 = por %p42, %p43
      %p45 = scmp.ne.s32.totalorder %s34, %s35
      %p46 = scmp.eq.s32.totalorder %s26, 0
      %p47 = por %p45, %p46
      %p48 = scmp.ne.s32.totalorder %s34, %s35
      %p49 = scmp.eq.s32.totalorder %s27, 1
      %p50 = por %p48, %p49
      %p52 = scmp.ne.s32.totalorder %s35, %s51
      %p53 = scmp.eq.s32.totalorder %s27, 0
      %p54 = por %p52, %p53
      %s55 = ssub.s32 %s21, %s28
      %p56 = scmp.eq.s32.totalorder %s55, 0
      %s58 = sadd.s32 %s57, 1
      %s59 = scalar_select %p56, %s57, %s58
      %p62 = pneg %p56
      %p63 = scmp.eq.s32.totalorder %s21, 1
      %p64 = por %p62, %p63
      %p65 = scmp.ne.s32.totalorder %s57, %s60
      %p66 = scmp.eq.s32.totalorder %s21, 0
      %p67 = por %p65, %p66
      %p68 = scmp.ne.s32.totalorder %s57, %s60
      %p69 = scmp.eq.s32.totalorder %s26, 1
      %p70 = por %p68, %p69
      %p71 = scmp.ne.s32.totalorder %s60, %s61
      %p72 = scmp.eq.s32.totalorder %s26, 0
      %p73 = por %p71, %p72
      %p74 = scmp.ne.s32.totalorder %s60, %s61
      %p75 = scmp.eq.s32.totalorder %s27, 1
      %p76 = por %p74, %p75
      %p78 = scmp.ne.s32.totalorder %s61, %s77
      %p79 = scmp.eq.s32.totalorder %s27, 0
      %p80 = por %p78, %p79
      %s82 = sadd.s32 %s81, 1
      %p85 = scmp.eq.s32.totalorder %s21, 1
      %p86 = scmp.ne.s32.totalorder %s81, %s83
      %p87 = scmp.eq.s32.totalorder %s21, 0
      %p88 = por %p86, %p87
      %p89 = scmp.ne.s32.totalorder %s81, %s83
      %p90 = scmp.eq.s32.totalorder %s26, 1
      %p91 = por %p89, %p90
      %p92 = scmp.ne.s32.totalorder %s83, %s84
      %p93 = scmp.eq.s32.totalorder %s26, 0
      %p94 = por %p92, %p93
      %p95 = scmp.ne.s32.totalorder %s83, %s84
      %p96 = scmp.eq.s32.totalorder %s27, 1
      %p97 = por %p95, %p96
      %p99 = scmp.ne.s32.totalorder %s84, %s98
      %p100 = scmp.eq.s32.totalorder %s27, 0
      %p101 = por %p99, %p100
      %s103 = sadd.s32 %s102, 1
      %p106 = scmp.eq.s32.totalorder %s21, 1
      %p107 = scmp.ne.s32.totalorder %s102, %s104
      %p108 = scmp.eq.s32.totalorder %s21, 0
      %p109 = por %p107, %p108
      %p110 = scmp.ne.s32.totalorder %s102, %s104
      %p111 = scmp.eq.s32.totalorder %s26, 1
      %p112 = por %p110, %p111
      %p113 = scmp.ne.s32.totalorder %s104, %s105
      %p114 = scmp.eq.s32.totalorder %s26, 0
      %p115 = por %p113, %p114
      %p116 = scmp.ne.s32.totalorder %s104, %s105
      %p117 = scmp.eq.s32.totalorder %s27, 1
      %p118 = por %p116, %p117
      %p120 = scmp.ne.s32.totalorder %s105, %s119
      %p121 = scmp.eq.s32.totalorder %s27, 0
      %p122 = por %p120, %p121
      %s124 = sadd.s32 %s123, 1
      %p127 = scmp.eq.s32.totalorder %s21, 1
      %p128 = scmp.ne.s32.totalorder %s123, %s125
      %p129 = scmp.eq.s32.totalorder %s21, 0
      %p130 = por %p128, %p129
      %p131 = scmp.ne.s32.totalorder %s123, %s125
      %p132 = scmp.eq.s32.totalorder %s26, 1
      %p133 = por %p131, %p132
      %p134 = scmp.ne.s32.totalorder %s125, %s126
      %p135 = scmp.eq.s32.totalorder %s26, 0
      %p136 = por %p134, %p135
      %p137 = scmp.ne.s32.totalorder %s125, %s126
      %p138 = scmp.eq.s32.totalorder %s27, 1
      %p139 = por %p137, %p138
      %p141 = scmp.ne.s32.totalorder %s126, %s140
      %p142 = scmp.eq.s32.totalorder %s27, 0
      %p143 = por %p141, %p142
      %s145 = sadd.s32 %s144, 1
      %p148 = scmp.eq.s32.totalorder %s21, 1
      %p149 = scmp.ne.s32.totalorder %s144, %s146
      %p150 = scmp.eq.s32.totalorder %s21, 0
      %p151 = por %p149, %p150
      %p152 = scmp.ne.s32.totalorder %s144, %s146
      %p153 = scmp.eq.s32.totalorder %s26, 1
      %p154 = por %p152, %p153
      %p155 = scmp.ne.s32.totalorder %s146, %s147
      %p156 = scmp.eq.s32.totalorder %s26, 0
      %p157 = por %p155, %p156
      %p158 = scmp.ne.s32.totalorder %s146, %s147
      %p159 = scmp.eq.s32.totalorder %s27, 1
      %p160 = por %p158, %p159
      %p162 = scmp.ne.s32.totalorder %s147, %s161
      %p163 = scmp.eq.s32.totalorder %s27, 0
      %p164 = por %p162, %p163
      %s166 = sadd.s32 %s165, 1
      %p169 = scmp.eq.s32.totalorder %s21, 1
      %p170 = scmp.ne.s32.totalorder %s165, %s167
      %p171 = scmp.eq.s32.totalorder %s21, 0
      %p172 = por %p170, %p171
      %p173 = scmp.ne.s32.totalorder %s165, %s167
      %p174 = scmp.eq.s32.totalorder %s26, 1
      %p175 = por %p173, %p174
      %p176 = scmp.ne.s32.totalorder %s167, %s168
      %p177 = scmp.eq.s32.totalorder %s26, 0
      %p178 = por %p176, %p177
      %p179 = scmp.ne.s32.totalorder %s167, %s168
      %p180 = scmp.eq.s32.totalorder %s27, 1
      %p181 = por %p179, %p180
      %p183 = scmp.ne.s32.totalorder %s168, %s182
      %p184 = scmp.eq.s32.totalorder %s27, 0
      %p185 = por %p183, %p184
      %s187 = sadd.s32 %s186, 1
      %p190 = scmp.eq.s32.totalorder %s21, 1
      %p191 = scmp.ne.s32.totalorder %s186, %s188
      %p192 = scmp.eq.s32.totalorder %s21, 0
      %p193 = por %p191, %p192
      %p194 = scmp.ne.s32.totalorder %s186, %s188
      %p195 = scmp.eq.s32.totalorder %s26, 1
      %p196 = por %p194, %p195
      %p197 = scmp.ne.s32.totalorder %s188, %s189
      %p198 = scmp.eq.s32.totalorder %s26, 0
      %p199 = por %p197, %p198
      %p200 = scmp.ne.s32.totalorder %s188, %s189
      %p201 = scmp.eq.s32.totalorder %s27, 1
      %p202 = por %p200, %p201
      %p204 = scmp.ne.s32.totalorder %s189, %s203
      %p205 = scmp.eq.s32.totalorder %s27, 0
      %p206 = por %p204, %p205
      %s208 = sadd.s32 %s207, 1
      %p211 = scmp.eq.s32.totalorder %s21, 1
      %p212 = scmp.ne.s32.totalorder %s207, %s209
      %p213 = scmp.eq.s32.totalorder %s21, 0
      %p214 = por %p212, %p213
      %p215 = scmp.ne.s32.totalorder %s207, %s209
      %p216 = scmp.eq.s32.totalorder %s26, 1
      %p217 = por %p215, %p216
      %p218 = scmp.ne.s32.totalorder %s209, %s210
      %p219 = scmp.eq.s32.totalorder %s26, 0
      %p220 = por %p218, %p219
      %p221 = scmp.ne.s32.totalorder %s209, %s210
      %p222 = scmp.eq.s32.totalorder %s27, 1
      %p223 = por %p221, %p222
      %p225 = scmp.ne.s32.totalorder %s210, %s224
      %p226 = scmp.eq.s32.totalorder %s27, 0
      %p227 = por %p225, %p226
      %s229 = sadd.s32 %s228, 1
      %p232 = scmp.eq.s32.totalorder %s21, 1
      %p233 = scmp.ne.s32.totalorder %s228, %s230
      %p234 = scmp.eq.s32.totalorder %s21, 0
      %p235 = por %p233, %p234
      %p236 = scmp.ne.s32.totalorder %s228, %s230
      %p237 = scmp.eq.s32.totalorder %s26, 1
      %p238 = por %p236, %p237
      %p239 = scmp.ne.s32.totalorder %s230, %s231
      %p240 = scmp.eq.s32.totalorder %s26, 0
      %p241 = por %p239, %p240
      %p242 = scmp.ne.s32.totalorder %s230, %s231
      %p243 = scmp.eq.s32.totalorder %s27, 1
      %p244 = por %p242, %p243
      %p246 = scmp.ne.s32.totalorder %s231, %s245
      %p247 = scmp.eq.s32.totalorder %s27, 0
      %p248 = por %p246, %p247
      %s250 = sadd.s32 %s249, 1
      %p253 = scmp.eq.s32.totalorder %s21, 1
      %p254 = scmp.ne.s32.totalorder %s249, %s251
      %p255 = scmp.eq.s32.totalorder %s21, 0
      %p256 = por %p254, %p255
      %p257 = scmp.ne.s32.totalorder %s249, %s251
      %p258 = scmp.eq.s32.totalorder %s26, 1
      %p259 = por %p257, %p258
      %p260 = scmp.ne.s32.totalorder %s251, %s252
      %p261 = scmp.eq.s32.totalorder %s26, 0
      %p262 = por %p260, %p261
      %p263 = scmp.ne.s32.totalorder %s251, %s252
      %p264 = scmp.eq.s32.totalorder %s27, 1
      %p265 = por %p263, %p264
      %p267 = scmp.ne.s32.totalorder %s252, %s266
      %p268 = scmp.eq.s32.totalorder %s27, 0
      %p269 = por %p267, %p268
      %s271 = sadd.s32 %s270, 1
      %p274 = scmp.eq.s32.totalorder %s21, 1
      %p275 = scmp.ne.s32.totalorder %s270, %s272
      %p276 = scmp.eq.s32.totalorder %s21, 0
      %p277 = por %p275, %p276
      %p278 = scmp.ne.s32.totalorder %s270, %s272
      %p279 = scmp.eq.s32.totalorder %s26, 1
      %p280 = por %p278, %p279
      %p281 = scmp.ne.s32.totalorder %s272, %s273
      %p282 = scmp.eq.s32.totalorder %s26, 0
      %p283 = por %p281, %p282
      %p284 = scmp.ne.s32.totalorder %s272, %s273
      %p285 = scmp.eq.s32.totalorder %s27, 1
      %p286 = por %p284, %p285
      %p288 = scmp.ne.s32.totalorder %s273, %s287
      %p289 = scmp.eq.s32.totalorder %s27, 0
      %p290 = por %p288, %p289
      %s291 = ssub.s32 %s21, %s28
      %p292 = scmp.eq.s32.totalorder %s291, 0
      %s294 = sadd.s32 %s293, 1
      %s295 = scalar_select %p292, %s293, %s294
      %p298 = pneg %p292
      %p299 = scmp.eq.s32.totalorder %s21, 1
      %p300 = por %p298, %p299
      %p301 = scmp.ne.s32.totalorder %s293, %s296
      %p302 = scmp.eq.s32.totalorder %s21, 0
      %p303 = por %p301, %p302
      %p304 = scmp.ne.s32.totalorder %s293, %s296
      %p305 = scmp.eq.s32.totalorder %s26, 1
      %p306 = por %p304, %p305
      %p307 = scmp.ne.s32.totalorder %s296, %s297
      %p308 = scmp.eq.s32.totalorder %s26, 0
      %p309 = por %p307, %p308
      %p310 = scmp.ne.s32.totalorder %s296, %s297
      %p311 = scmp.eq.s32.totalorder %s27, 1
      %p312 = por %p310, %p311
      %p314 = scmp.ne.s32.totalorder %s297, %s313
      %p315 = scmp.eq.s32.totalorder %s27, 0
      %p316 = por %p314, %p315
      %p317 = scmp.le.s32.totalorder 1, %s21
      %p318 = scmp.lt.s32.totalorder %s21, 3
      %p319 = pnand %p317, %p318
      %p320 = pneg %p319
      // Predicated region
      $region9: #{residual_block_pallas.1} parent=5 // pred_check
        _
      $region10: #{residual_block_pallas.1} parent=5 // pred_check_branch
        %322 = sbr.rel (%p319) target = $region12
      $region11: #{residual_block_pallas.1} parent=5 // pred_region
        %s323 = ssub.s32 %s21, 1
        // Predicated region
        $region13: #{residual_block_pallas.1} parent=11 // pred_check
          %p324 = pneg %p94
        $region14: #{residual_block_pallas.1} parent=11 // pred_check_branch
          %326 = sbr.rel (%p324) target = $region16
        $region15: #{residual_block_pallas.1} parent=11 // pred_region
          _
        $region16: #{residual_block_pallas.1} parent=11 // pred_fallthru
          _
        // Predicated region
        $region17: #{residual_block_pallas.1} parent=11 // pred_check
          %p327 = pneg %p115
        $region18: #{residual_block_pallas.1} parent=11 // pred_check_branch
          %329 = sbr.rel (%p327) target = $region20
        $region19: #{residual_block_pallas.1} parent=11 // pred_region
          _
        $region20: #{residual_block_pallas.1} parent=11 // pred_fallthru
          _
        // Predicated region
        $region21: #{residual_block_pallas.1} parent=11 // pred_check
          %p330 = pneg %p136
        $region22: #{residual_block_pallas.1} parent=11 // pred_check_branch
          %332 = sbr.rel (%p330) target = $region24
        $region23: #{residual_block_pallas.1} parent=11 // pred_region
          _
        $region24: #{residual_block_pallas.1} parent=11 // pred_fallthru
          _
        // Predicated region
        $region25: #{residual_block_pallas.1} parent=11 // pred_check
          %p333 = pneg %p157
        $region26: #{residual_block_pallas.1} parent=11 // pred_check_branch
          %335 = sbr.rel (%p333) target = $region28
        $region27: #{residual_block_pallas.1} parent=11 // pred_region
          _
        $region28: #{residual_block_pallas.1} parent=11 // pred_fallthru
          _
        // Predicated region
        $region29: #{residual_block_pallas.1} parent=11 // pred_check
          %p336 = pneg %p178
        $region30: #{residual_block_pallas.1} parent=11 // pred_check_branch
          %338 = sbr.rel (%p336) target = $region32
        $region31: #{residual_block_pallas.1} parent=11 // pred_region
          _
        $region32: #{residual_block_pallas.1} parent=11 // pred_fallthru
          _
        // Predicated region
        $region33: #{residual_block_pallas.1} parent=11 // pred_check
          %p339 = pneg %p199
        $region34: #{residual_block_pallas.1} parent=11 // pred_check_branch
          %341 = sbr.rel (%p339) target = $region36
        $region35: #{residual_block_pallas.1} parent=11 // pred_region
          _
        $region36: #{residual_block_pallas.1} parent=11 // pred_fallthru
          _
        // Predicated region
        $region37: #{residual_block_pallas.1} parent=11 // pred_check
          %p342 = pneg %p220
        $region38: #{residual_block_pallas.1} parent=11 // pred_check_branch
          %344 = sbr.rel (%p342) target = $region40
        $region39: #{residual_block_pallas.1} parent=11 // pred_region
          _
        $region40: #{residual_block_pallas.1} parent=11 // pred_fallthru
          _
        // Predicated region
        $region41: #{residual_block_pallas.1} parent=11 // pred_check
          %p345 = pneg %p241
        $region42: #{residual_block_pallas.1} parent=11 // pred_check_branch
          %347 = sbr.rel (%p345) target = $region44
        $region43: #{residual_block_pallas.1} parent=11 // pred_region
          _
        $region44: #{residual_block_pallas.1} parent=11 // pred_fallthru
          _
        // Predicated region
        $region45: #{residual_block_pallas.1} parent=11 // pred_check
          %p348 = pneg %p262
        $region46: #{residual_block_pallas.1} parent=11 // pred_check_branch
          %350 = sbr.rel (%p348) target = $region48
        $region47: #{residual_block_pallas.1} parent=11 // pred_region
          _
        $region48: #{residual_block_pallas.1} parent=11 // pred_fallthru
          _
        // Predicated region
        $region49: #{residual_block_pallas.1} parent=11 // pred_check
          %p351 = pneg %p283
        $region50: #{residual_block_pallas.1} parent=11 // pred_check_branch
          %353 = sbr.rel (%p351) target = $region52
        $region51: #{residual_block_pallas.1} parent=11 // pred_region
          _
        $region52: #{residual_block_pallas.1} parent=11 // pred_fallthru
          _
      $region12: #{residual_block_pallas.1} parent=5 // pred_fallthru
        _
      %p354 = scmp.lt.s32.totalorder %s21, 2
      // Predicated region
      $region53: #{residual_block_pallas.1} parent=5 // pred_check
        %p355 = pneg %p354
      $region54: #{residual_block_pallas.1} parent=5 // pred_check_branch
        %357 = sbr.rel (%p355) target = $region56
      $region55: #{residual_block_pallas.1} parent=5 // pred_region
        // Predicated region
        $region57: #{residual_block_pallas.1} parent=55 // pred_check
          %p358 = pneg %p41
        $region58: #{residual_block_pallas.1} parent=55 // pred_check_branch
          %360 = sbr.rel (%p358) target = $region60
        $region59: #{residual_block_pallas.1} parent=55 // pred_region
          %p361 = scmp.lt.s32.totalorder %s21, 1
          %s362 = scalar_select %p361, %s21, 1
          %s363 = smul.addr %s362, 8
          %s364 = smul.addr %s363, 8
          %s365 = scalar_lea.vmem %s0, %s364
        $region60: #{residual_block_pallas.1} parent=55 // pred_fallthru
          _
        // Predicated region
        $region61: #{residual_block_pallas.1} parent=55 // pred_check
          %p366 = pneg %p67
        $region62: #{residual_block_pallas.1} parent=55 // pred_check_branch
          %368 = sbr.rel (%p366) target = $region64
        $region63: #{residual_block_pallas.1} parent=55 // pred_region
          %p369 = scmp.lt.s32.totalorder %s21, 1
          %s370 = scalar_select %p369, %s21, 1
          %s371 = smul.addr %s370, 8
          %s372 = smul.addr %s371, 8
          %s373 = scalar_lea.vmem %s1, %s372
        $region64: #{residual_block_pallas.1} parent=55 // pred_fallthru
          _
      $region56: #{residual_block_pallas.1} parent=5 // pred_fallthru
        _
      %p374 = scmp.le.s32.totalorder 1, %s21
      %p375 = scmp.lt.s32.totalorder %s21, 3
      %p376 = pnand %p374, %p375
      %p377 = pneg %p376
      // Predicated region
      $region65: #{residual_block_pallas.1} parent=5 // pred_check
        _
      $region66: #{residual_block_pallas.1} parent=5 // pred_check_branch
        %379 = sbr.rel (%p376) target = $region68
      $region67: #{residual_block_pallas.1} parent=5 // pred_region
        %s380 = ssub.s32 %s21, 1
        %p381 = scmp.lt.s32.totalorder %s26, 1
        %s382 = scalar_select %p381, %s26, 1
        %s383 = smul.addr %s382, 8
        %s384 = smul.addr %s383, 8
        %s385 = scalar_lea.vmem %s0, %s384
        %p386 = pneg %p47
        %p387 = pneg %p44
        %p388 = scmp.lt.s32.totalorder %s26, 1
        %s389 = scalar_select %p388, %s26, 1
        %s390 = smul.addr %s389, 8
        %s391 = smul.addr %s390, 8
        %s392 = scalar_lea.vmem %s1, %s391
        %p393 = pneg %p73
        %p394 = pneg %p70
        %p395 = pneg %p94
        %p396 = pneg %p91
        %p397 = pneg %p115
        %p398 = pneg %p112
        %p399 = pneg %p136
        %p400 = pneg %p133
        %p401 = pneg %p157
        %p402 = pneg %p154
        %p403 = pneg %p178
        %p404 = pneg %p175
        %p405 = pneg %p199
        %p406 = pneg %p196
        %p407 = pneg %p220
        %p408 = pneg %p217
        %p409 = pneg %p241
        %p410 = pneg %p238
        %p411 = pneg %p262
        %p412 = pneg %p259
        %p413 = pneg %p283
        %p414 = pneg %p280
        %p415 = pneg %p309
        %p416 = pneg %p306
        %s417 = sand.u32 %s296, 1
        %s418 = scalar_lea.sflag [#allocation4], %s417
        %s419 = sand.u32 %s296, 1
        %s420 = smul.addr %s419, 64
        %s421 = scalar_lea.vmem [#allocation3], %s420
        %p422 = scmp.lt.s32.totalorder %s26, 1
        %s423 = scalar_select %p422, %s26, 1
        %s424 = smul.addr %s423, 8
        %s425 = smul.addr %s424, 8
        %s426 = scalar_lea.vmem %s0, %s425
        %p427 = scmp.lt.s32.totalorder %s26, 1
        %s428 = scalar_select %p427, %s26, 1
        %s429 = smul.addr %s428, 8
        %s430 = smul.addr %s429, 8
        %s431 = scalar_lea.vmem %s1, %s430
        %v433 = vld [vmem:[%s426] sm:$0xff]
        %v434 = vld [vmem:[%s426 + $0x8] sm:$0xff]
        %v435 = vld [vmem:[%s426 + $0x10] sm:$0xff]
        %v436 = vld [vmem:[%s426 + $0x18] sm:$0xff]
        %v437 = vld [vmem:[%s426 + $0x20] sm:$0xff]
        %v438 = vld [vmem:[%s426 + $0x28] sm:$0xff]
        %v439 = vld [vmem:[%s426 + $0x30] sm:$0xff]
        %v440 = vld [vmem:[%s426 + $0x38] sm:$0xff]
        %v441 = vld [vmem:[%s431] sm:$0xff]
        %v442 = vld [vmem:[%s431 + $0x8] sm:$0xff]
        %v443 = vld [vmem:[%s431 + $0x10] sm:$0xff]
        %v444 = vld [vmem:[%s431 + $0x18] sm:$0xff]
        %v445 = vld [vmem:[%s431 + $0x20] sm:$0xff]
        %v446 = vld [vmem:[%s431 + $0x28] sm:$0xff]
        %v447 = vld [vmem:[%s431 + $0x30] sm:$0xff]
        %v448 = vld [vmem:[%s431 + $0x38] sm:$0xff]
        %v449 = vadd.f32 %v433, %v441
        %v450 = vadd.f32 %v434, %v442
        %v451 = vadd.f32 %v435, %v443
        %v452 = vadd.f32 %v436, %v444
        %v453 = vadd.f32 %v437, %v445
        %v454 = vadd.f32 %v438, %v446
        %v455 = vadd.f32 %v439, %v447
        %v456 = vadd.f32 %v440, %v448
        %v457 = vld [vmem:[%s2] sm:$0x1]
        %v458 = vld [vmem:[%s3] sm:$0x1]
        %vm459 = vcmask 261120
        %v460 = vsel %vm459, %v449, 0.0
        %v461 = vsel %vm459, %v450, 0.0
        %v462 = vadd.f32 %v460, %v461
        %v463 = vsel %vm459, %v451, 0.0
        %v464 = vadd.f32 %v462, %v463
        %v465 = vsel %vm459, %v452, 0.0
        %v466 = vadd.f32 %v464, %v465
        %v467 = vsel %vm459, %v453, 0.0
        %v468 = vadd.f32 %v466, %v467
        %v469 = vsel %vm459, %v454, 0.0
        %v470 = vadd.f32 %v468, %v469
        %v471 = vsel %vm459, %v455, 0.0
        %v472 = vadd.f32 %v470, %v471
        %v473 = vsel %vm459, %v456, 0.0
        %v474 = vadd.f32 %v472, %v473
        %v475 = vrot.slane %v474, 4
        %v476 = vadd.f32 %v474, %v475
        %v477 = vrot.slane %v476, 2
        %v478 = vadd.f32 %v476, %v477
        %v479 = vrot.slane %v478, 1
        %v480 = vadd.f32 %v478, %v479
        %v481 = vmul.f32 %v449, %v449
        %v482 = vmul.f32 %v450, %v450
        %v483 = vmul.f32 %v451, %v451
        %v484 = vmul.f32 %v452, %v452
        %v485 = vmul.f32 %v453, %v453
        %v486 = vmul.f32 %v454, %v454
        %v487 = vmul.f32 %v455, %v455
        %v488 = vmul.f32 %v456, %v456
        %v489 = vsel %vm459, %v481, 0.0
        %v490 = vsel %vm459, %v482, 0.0
        %v491 = vadd.f32 %v489, %v490
        %v492 = vsel %vm459, %v483, 0.0
        %v493 = vadd.f32 %v491, %v492
        %v494 = vsel %vm459, %v484, 0.0
        %v495 = vadd.f32 %v493, %v494
        %v496 = vsel %vm459, %v485, 0.0
        %v497 = vadd.f32 %v495, %v496
        %v498 = vsel %vm459, %v486, 0.0
        %v499 = vadd.f32 %v497, %v498
        %v500 = vsel %vm459, %v487, 0.0
        %v501 = vadd.f32 %v499, %v500
        %v502 = vsel %vm459, %v488, 0.0
        %v503 = vadd.f32 %v501, %v502
        %v504 = vrot.slane %v503, 4
        %v505 = vadd.f32 %v503, %v504
        %v506 = vrot.slane %v505, 2
        %v507 = vadd.f32 %v505, %v506
        %v508 = vrot.slane %v507, 1
        %v509 = vadd.f32 %v507, %v508
        %v510 = vld [vmem:[%s6] sm:$0xff]
        %v511 = vld [vmem:[%s6 + $0x8] sm:$0xff]
        %v512 = vld [vmem:[%s6 + $0x10] sm:$0xff]
        %v513 = vld [vmem:[%s6 + $0x18] sm:$0xff]
        %v515 = vsel %vm459, %v480, 0
        %517 = vmatprep.subr.mxu0 0.0
        %v518 = vand.u32 %v510, 4294901760
        %519 = vmatpush1.msra.mxu0 %v518
        %520 = vmatprep.subr.mxu0 0.0
        %v521 = vand.u32 %v511, 4294901760
        %522 = vmatpush1.msra.mxu0 %v521
        %523 = vmatprep.subr.mxu0 0.0
        %v524 = vand.u32 %v512, 4294901760
        %525 = vmatpush1.msra.mxu0 %v524
        %526 = vmatprep.subr.mxu0 0.0
        %v527 = vand.u32 %v513, 4294901760
        %528 = vmatpush1.msra.mxu0 %v527
        %529 = vmatprep.subr.mxu0 0.0
        %530 = vmatpush1.msra.mxu0 0.0
        %531 = vmatprep.subr.mxu0 0.0
        %532 = vmatpush1.msra.mxu0 0.0
        %533 = vmatprep.subr.mxu0 0.0
        %534 = vmatpush1.msra.mxu0 0.0
        %535 = vmatprep.subr.mxu0 0.0
        %536 = vmatpush1.msra.mxu0 0.0
        %537 = vmatprep.subr.mxu0 0.0
        %538 = vmatpush1.msra.mxu0 0.0
        %539 = vmatprep.subr.mxu0 0.0
        %540 = vmatpush1.msra.mxu0 0.0
        %541 = vmatprep.subr.mxu0 0.0
        %542 = vmatpush1.msra.mxu0 0.0
        %543 = vmatprep.subr.mxu0 0.0
        %544 = vmatpush1.msra.mxu0 0.0
        %545 = vmatprep.subr.mxu0 0.0
        %546 = vmatpush1.msra.mxu0 0.0
        %547 = vmatprep.subr.mxu0 0.0
        %548 = vmatpush1.msra.mxu0 0.0
        %549 = vmatprep.subr.mxu0 0.0
        %550 = vmatpush1.msra.mxu0 0.0
        %551 = vmatprep.subr.mxu0 0.0
        %552 = vmatpush1.msra.mxu0 0.0
        %553 = vmatprep.subr.mxu0 0.0
        %554 = vmatpush1.msra.mxu0 0.0
        %555 = vmatprep.subr.mxu0 0.0
        %556 = vmatpush1.msra.mxu0 0.0
        %557 = vmatprep.subr.mxu0 0.0
        %558 = vmatpush1.msra.mxu0 0.0
        %559 = vmatprep.subr.mxu0 0.0
        %560 = vmatpush1.msra.mxu0 0.0
        %561 = vmatprep.subr.mxu0 0.0
        %562 = vmatpush1.msra.mxu0 0.0
        %563 = vmatprep.subr.mxu0 0.0
        %564 = vmatpush1.msra.mxu0 0.0
        %565 = vmatprep.subr.mxu0 0.0
        %566 = vmatpush1.msra.mxu0 0.0
        %567 = vmatprep.subr.mxu0 0.0
        %568 = vmatpush1.msra.mxu0 0.0
        %569 = vmatprep.subr.mxu0 0.0
        %570 = vmatpush1.msra.mxu0 0.0
        %571 = vmatprep.subr.mxu0 0.0
        %572 = vmatpush1.msra.mxu0 0.0
        %573 = vmatprep.subr.mxu0 0.0
        %574 = vmatpush1.msra.mxu0 0.0
        %575 = vmatprep.subr.mxu0 0.0
        %576 = vmatpush1.msra.mxu0 0.0
        %577 = vmatprep.subr.mxu0 0.0
        %578 = vmatpush1.msra.mxu0 0.0
        %579 = vmatprep.subr.mxu0 0.0
        %580 = vmatpush1.msra.mxu0 0.0
        %581 = vmatprep.subr.mxu0 0.0
        %582 = vmatpush1.msra.mxu0 0.0
        %583 = vmatprep.subr.mxu0 0.0
        %584 = vmatpush1.msra.mxu0 0.0
        %585 = vmatprep.mubr.f32.mxu0 0.0
        %v586 = vand.u32 %v515, 4294901760
        %v587 = vsub.f32 %v515, %v586
        %v588 = vand.u32 %v587, 4294901760
        %v589 = vsub.f32 %v587, %v588
        %v590 = vand.u32 %v589, 4294901760
        %591 = vmatmul.mubr.f32.gmra.mrb[0].mxu0 %v590
        %v592 = vpop.f32.mrb[0].mxu0
        %v593 = vadd.f32 0.0, %v592
        %v594 = vpop.f32.mrb[0].mxu0
        %595 = vdwg.mxu0
        %596 = vmatprep.subr.mxu0 0.0
        %v597 = vand.u32 %v510, 4294901760
        %v598 = vsub.f32 %v510, %v597
        %v599 = vand.u32 %v598, 4294901760
        %v600 = vsub.f32 %v598, %v599
        %v601 = vand.u32 %v600, 4294901760
        %602 = vmatpush1.msra.mxu0 %v601
        %603 = vmatprep.subr.mxu0 0.0
        %v604 = vand.u32 %v511, 4294901760
        %v605 = vsub.f32 %v511, %v604
        %v606 = vand.u32 %v605, 4294901760
        %v607 = vsub.f32 %v605, %v606
        %v608 = vand.u32 %v607, 4294901760
        %609 = vmatpush1.msra.mxu0 %v608
        %610 = vmatprep.subr.mxu0 0.0
        %v611 = vand.u32 %v512, 4294901760
        %v612 = vsub.f32 %v512, %v611
        %v613 = vand.u32 %v612, 4294901760
        %v614 = vsub.f32 %v612, %v613
        %v615 = vand.u32 %v614, 4294901760
        %616 = vmatpush1.msra.mxu0 %v615
        %617 = vmatprep.subr.mxu0 0.0
        %v618 = vand.u32 %v513, 4294901760
        %v619 = vsub.f32 %v513, %v618
        %v620 = vand.u32 %v619, 4294901760
        %v621 = vsub.f32 %v619, %v620
        %v622 = vand.u32 %v621, 4294901760
        %623 = vmatpush1.msra.mxu0 %v622
        %624 = vmatprep.subr.mxu0 0.0
        %625 = vmatpush1.msra.mxu0 0.0
        %626 = vmatprep.subr.mxu0 0.0
        %627 = vmatpush1.msra.mxu0 0.0
        %628 = vmatprep.subr.mxu0 0.0
        %629 = vmatpush1.msra.mxu0 0.0
        %630 = vmatprep.subr.mxu0 0.0
        %631 = vmatpush1.msra.mxu0 0.0
        %632 = vmatprep.subr.mxu0 0.0
        %633 = vmatpush1.msra.mxu0 0.0
        %634 = vmatprep.subr.mxu0 0.0
        %635 = vmatpush1.msra.mxu0 0.0
        %636 = vmatprep.subr.mxu0 0.0
        %637 = vmatpush1.msra.mxu0 0.0
        %638 = vmatprep.subr.mxu0 0.0
        %639 = vmatpush1.msra.mxu0 0.0
        %640 = vmatprep.subr.mxu0 0.0
        %641 = vmatpush1.msra.mxu0 0.0
        %642 = vmatprep.subr.mxu0 0.0
        %643 = vmatpush1.msra.mxu0 0.0
        %644 = vmatprep.subr.mxu0 0.0
        %645 = vmatpush1.msra.mxu0 0.0
        %646 = vmatprep.subr.mxu0 0.0
        %647 = vmatpush1.msra.mxu0 0.0
        %648 = vmatprep.subr.mxu0 0.0
        %649 = vmatpush1.msra.mxu0 0.0
        %650 = vmatprep.subr.mxu0 0.0
        %651 = vmatpush1.msra.mxu0 0.0
        %652 = vmatprep.subr.mxu0 0.0
        %653 = vmatpush1.msra.mxu0 0.0
        %654 = vmatprep.subr.mxu0 0.0
        %655 = vmatpush1.msra.mxu0 0.0
        %656 = vmatprep.subr.mxu0 0.0
        %657 = vmatpush1.msra.mxu0 0.0
        %658 = vmatprep.subr.mxu0 0.0
        %659 = vmatpush1.msra.mxu0 0.0
        %660 = vmatprep.subr.mxu0 0.0
        %661 = vmatpush1.msra.mxu0 0.0
        %662 = vmatprep.subr.mxu0 0.0
        %663 = vmatpush1.msra.mxu0 0.0
        %664 = vmatprep.subr.mxu0 0.0
        %665 = vmatpush1.msra.mxu0 0.0
        %666 = vmatprep.subr.mxu0 0.0
        %667 = vmatpush1.msra.mxu0 0.0
        %668 = vmatprep.subr.mxu0 0.0
        %669 = vmatpush1.msra.mxu0 0.0
        %670 = vmatprep.subr.mxu0 0.0
        %671 = vmatpush1.msra.mxu0 0.0
        %672 = vmatprep.subr.mxu0 0.0
        %673 = vmatpush1.msra.mxu0 0.0
        %674 = vmatprep.subr.mxu0 0.0
        %675 = vmatpush1.msra.mxu0 0.0
        %676 = vmatprep.subr.mxu0 0.0
        %677 = vmatpush1.msra.mxu0 0.0
        %678 = vmatprep.subr.mxu0 0.0
        %679 = vmatpush1.msra.mxu0 0.0
        %680 = vmatprep.mubr.f32.mxu0 0.0
        %v681 = vand.u32 %v515, 4294901760
        %682 = vmatmul.mubr.f32.gmra.mrb[0].mxu0 %v681
        %v683 = vpop.f32.mrb[0].mxu0
        %v684 = vadd.f32 %v593, %v683
        %v685 = vpop.f32.mrb[0].mxu0
        %686 = vdwg.mxu0
        %687 = vmatprep.subr.mxu0 0.0
        %v688 = vand.u32 %v510, 4294901760
        %v689 = vsub.f32 %v510, %v688
        %690 = vmatpush1.msra.mxu0 %v689
        %691 = vmatprep.subr.mxu0 0.0
        %v692 = vand.u32 %v511, 4294901760
        %v693 = vsub.f32 %v511, %v692
        %694 = vmatpush1.msra.mxu0 %v693
        %695 = vmatprep.subr.mxu0 0.0
        %v696 = vand.u32 %v512, 4294901760
        %v697 = vsub.f32 %v512, %v696
        %698 = vmatpush1.msra.mxu0 %v697
        %699 = vmatprep.subr.mxu0 0.0
        %v700 = vand.u32 %v513, 4294901760
        %v701 = vsub.f32 %v513, %v700
        %702 = vmatpush1.msra.mxu0 %v701
        %703 = vmatprep.subr.mxu0 0.0
        %704 = vmatpush1.msra.mxu0 0.0
        %705 = vmatprep.subr.mxu0 0.0
        %706 = vmatpush1.msra.mxu0 0.0
        %707 = vmatprep.subr.mxu0 0.0
        %708 = vmatpush1.msra.mxu0 0.0
        %709 = vmatprep.subr.mxu0 0.0
        %710 = vmatpush1.msra.mxu0 0.0
        %711 = vmatprep.subr.mxu0 0.0
        %712 = vmatpush1.msra.mxu0 0.0
        %713 = vmatprep.subr.mxu0 0.0
        %714 = vmatpush1.msra.mxu0 0.0
        %715 = vmatprep.subr.mxu0 0.0
        %716 = vmatpush1.msra.mxu0 0.0
        %717 = vmatprep.subr.mxu0 0.0
        %718 = vmatpush1.msra.mxu0 0.0
        %719 = vmatprep.subr.mxu0 0.0
        %720 = vmatpush1.msra.mxu0 0.0
        %721 = vmatprep.subr.mxu0 0.0
        %722 = vmatpush1.msra.mxu0 0.0
        %723 = vmatprep.subr.mxu0 0.0
        %724 = vmatpush1.msra.mxu0 0.0
        %725 = vmatprep.subr.mxu0 0.0
        %726 = vmatpush1.msra.mxu0 0.0
        %727 = vmatprep.subr.mxu0 0.0
        %728 = vmatpush1.msra.mxu0 0.0
        %729 = vmatprep.subr.mxu0 0.0
        %730 = vmatpush1.msra.mxu0 0.0
        %731 = vmatprep.subr.mxu0 0.0
        %732 = vmatpush1.msra.mxu0 0.0
        %733 = vmatprep.subr.mxu0 0.0
        %734 = vmatpush1.msra.mxu0 0.0
        %735 = vmatprep.subr.mxu0 0.0
        %736 = vmatpush1.msra.mxu0 0.0
        %737 = vmatprep.subr.mxu0 0.0
        %738 = vmatpush1.msra.mxu0 0.0
        %739 = vmatprep.subr.mxu0 0.0
        %740 = vmatpush1.msra.mxu0 0.0
        %741 = vmatprep.subr.mxu0 0.0
        %742 = vmatpush1.msra.mxu0 0.0
        %743 = vmatprep.subr.mxu0 0.0
        %744 = vmatpush1.msra.mxu0 0.0
        %745 = vmatprep.subr.mxu0 0.0
        %746 = vmatpush1.msra.mxu0 0.0
        %747 = vmatprep.subr.mxu0 0.0
        %748 = vmatpush1.msra.mxu0 0.0
        %749 = vmatprep.subr.mxu0 0.0
        %750 = vmatpush1.msra.mxu0 0.0
        %751 = vmatprep.subr.mxu0 0.0
        %752 = vmatpush1.msra.mxu0 0.0
        %753 = vmatprep.subr.mxu0 0.0
        %754 = vmatpush1.msra.mxu0 0.0
        %755 = vmatprep.subr.mxu0 0.0
        %756 = vmatpush1.msra.mxu0 0.0
        %757 = vmatprep.subr.mxu0 0.0
        %758 = vmatpush1.msra.mxu0 0.0
        %759 = vmatprep.mubr.f32.mxu0 0.0
        %v760 = vand.u32 %v515, 4294901760
        %v761 = vsub.f32 %v515, %v760
        %762 = vmatmul.mubr.f32.gmra.mrb[0].mxu0 %v761
        %v763 = vpop.f32.mrb[0].mxu0
        %v764 = vadd.f32 %v684, %v763
        %v765 = vpop.f32.mrb[0].mxu0
        %766 = vdwg.mxu0
        %767 = vmatprep.subr.mxu0 0.0
        %v768 = vand.u32 %v510, 4294901760
        %769 = vmatpush1.msra.mxu0 %v768
        %770 = vmatprep.subr.mxu0 0.0
        %v771 = vand.u32 %v511, 4294901760
        %772 = vmatpush1.msra.mxu0 %v771
        %773 = vmatprep.subr.mxu0 0.0
        %v774 = vand.u32 %v512, 4294901760
        %775 = vmatpush1.msra.mxu0 %v774
        %776 = vmatprep.subr.mxu0 0.0
        %v777 = vand.u32 %v513, 4294901760
        %778 = vmatpush1.msra.mxu0 %v777
        %779 = vmatprep.subr.mxu0 0.0
        %780 = vmatpush1.msra.mxu0 0.0
        %781 = vmatprep.subr.mxu0 0.0
        %782 = vmatpush1.msra.mxu0 0.0
        %783 = vmatprep.subr.mxu0 0.0
        %784 = vmatpush1.msra.mxu0 0.0
        %785 = vmatprep.subr.mxu0 0.0
        %786 = vmatpush1.msra.mxu0 0.0
        %787 = vmatprep.subr.mxu0 0.0
        %788 = vmatpush1.msra.mxu0 0.0
        %789 = vmatprep.subr.mxu0 0.0
        %790 = vmatpush1.msra.mxu0 0.0
        %791 = vmatprep.subr.mxu0 0.0
        %792 = vmatpush1.msra.mxu0 0.0
        %793 = vmatprep.subr.mxu0 0.0
        %794 = vmatpush1.msra.mxu0 0.0
        %795 = vmatprep.subr.mxu0 0.0
        %796 = vmatpush1.msra.mxu0 0.0
        %797 = vmatprep.subr.mxu0 0.0
        %798 = vmatpush1.msra.mxu0 0.0
        %799 = vmatprep.subr.mxu0 0.0
        %800 = vmatpush1.msra.mxu0 0.0
        %801 = vmatprep.subr.mxu0 0.0
        %802 = vmatpush1.msra.mxu0 0.0
        %803 = vmatprep.subr.mxu0 0.0
        %804 = vmatpush1.msra.mxu0 0.0
        %805 = vmatprep.subr.mxu0 0.0
        %806 = vmatpush1.msra.mxu0 0.0
        %807 = vmatprep.subr.mxu0 0.0
        %808 = vmatpush1.msra.mxu0 0.0
        %809 = vmatprep.subr.mxu0 0.0
        %810 = vmatpush1.msra.mxu0 0.0
        %811 = vmatprep.subr.mxu0 0.0
        %812 = vmatpush1.msra.mxu0 0.0
        %813 = vmatprep.subr.mxu0 0.0
        %814 = vmatpush1.msra.mxu0 0.0
        %815 = vmatprep.subr.mxu0 0.0
        %816 = vmatpush1.msra.mxu0 0.0
        %817 = vmatprep.subr.mxu0 0.0
        %818 = vmatpush1.msra.mxu0 0.0
        %819 = vmatprep.subr.mxu0 0.0
        %820 = vmatpush1.msra.mxu0 0.0
        %821 = vmatprep.subr.mxu0 0.0
        %822 = vmatpush1.msra.mxu0 0.0
        %823 = vmatprep.subr.mxu0 0.0
        %824 = vmatpush1.msra.mxu0 0.0
        %825 = vmatprep.subr.mxu0 0.0
        %826 = vmatpush1.msra.mxu0 0.0
        %827 = vmatprep.subr.mxu0 0.0
        %828 = vmatpush1.msra.mxu0 0.0
        %829 = vmatprep.subr.mxu0 0.0
        %830 = vmatpush1.msra.mxu0 0.0
        %831 = vmatprep.subr.mxu0 0.0
        %832 = vmatpush1.msra.mxu0 0.0
        %833 = vmatprep.subr.mxu0 0.0
        %834 = vmatpush1.msra.mxu0 0.0
        %835 = vmatprep.mubr.f32.mxu0 0.0
        %v836 = vand.u32 %v515, 4294901760
        %v837 = vsub.f32 %v515, %v836
        %v838 = vand.u32 %v837, 4294901760
        %839 = vmatmul.mubr.f32.gmra.mrb[0].mxu0 %v838
        %v840 = vpop.f32.mrb[0].mxu0
        %v841 = vadd.f32 %v764, %v840
        %v842 = vpop.f32.mrb[0].mxu0
        %843 = vdwg.mxu0
        %844 = vmatprep.subr.mxu0 0.0
        %v845 = vand.u32 %v510, 4294901760
        %v846 = vsub.f32 %v510, %v845
        %v847 = vand.u32 %v846, 4294901760
        %848 = vmatpush1.msra.mxu0 %v847
        %849 = vmatprep.subr.mxu0 0.0
        %v850 = vand.u32 %v511, 4294901760
        %v851 = vsub.f32 %v511, %v850
        %v852 = vand.u32 %v851, 4294901760
        %853 = vmatpush1.msra.mxu0 %v852
        %854 = vmatprep.subr.mxu0 0.0
        %v855 = vand.u32 %v512, 4294901760
        %v856 = vsub.f32 %v512, %v855
        %v857 = vand.u32 %v856, 4294901760
        %858 = vmatpush1.msra.mxu0 %v857
        %859 = vmatprep.subr.mxu0 0.0
        %v860 = vand.u32 %v513, 4294901760
        %v861 = vsub.f32 %v513, %v860
        %v862 = vand.u32 %v861, 4294901760
        %863 = vmatpush1.msra.mxu0 %v862
        %864 = vmatprep.subr.mxu0 0.0
        %865 = vmatpush1.msra.mxu0 0.0
        %866 = vmatprep.subr.mxu0 0.0
        %867 = vmatpush1.msra.mxu0 0.0
        %868 = vmatprep.subr.mxu0 0.0
        %869 = vmatpush1.msra.mxu0 0.0
        %870 = vmatprep.subr.mxu0 0.0
        %871 = vmatpush1.msra.mxu0 0.0
        %872 = vmatprep.subr.mxu0 0.0
        %873 = vmatpush1.msra.mxu0 0.0
        %874 = vmatprep.subr.mxu0 0.0
        %875 = vmatpush1.msra.mxu0 0.0
        %876 = vmatprep.subr.mxu0 0.0
        %877 = vmatpush1.msra.mxu0 0.0
        %878 = vmatprep.subr.mxu0 0.0
        %879 = vmatpush1.msra.mxu0 0.0
        %880 = vmatprep.subr.mxu0 0.0
        %881 = vmatpush1.msra.mxu0 0.0
        %882 = vmatprep.subr.mxu0 0.0
        %883 = vmatpush1.msra.mxu0 0.0
        %884 = vmatprep.subr.mxu0 0.0
        %885 = vmatpush1.msra.mxu0 0.0
        %886 = vmatprep.subr.mxu0 0.0
        %887 = vmatpush1.msra.mxu0 0.0
        %888 = vmatprep.subr.mxu0 0.0
        %889 = vmatpush1.msra.mxu0 0.0
        %890 = vmatprep.subr.mxu0 0.0
        %891 = vmatpush1.msra.mxu0 0.0
        %892 = vmatprep.subr.mxu0 0.0
        %893 = vmatpush1.msra.mxu0 0.0
        %894 = vmatprep.subr.mxu0 0.0
        %895 = vmatpush1.msra.mxu0 0.0
        %896 = vmatprep.subr.mxu0 0.0
        %897 = vmatpush1.msra.mxu0 0.0
        %898 = vmatprep.subr.mxu0 0.0
        %899 = vmatpush1.msra.mxu0 0.0
        %900 = vmatprep.subr.mxu0 0.0
        %901 = vmatpush1.msra.mxu0 0.0
        %902 = vmatprep.subr.mxu0 0.0
        %903 = vmatpush1.msra.mxu0 0.0
        %904 = vmatprep.subr.mxu0 0.0
        %905 = vmatpush1.msra.mxu0 0.0
        %906 = vmatprep.subr.mxu0 0.0
        %907 = vmatpush1.msra.mxu0 0.0
        %908 = vmatprep.subr.mxu0 0.0
        %909 = vmatpush1.msra.mxu0 0.0
        %910 = vmatprep.subr.mxu0 0.0
        %911 = vmatpush1.msra.mxu0 0.0
        %912 = vmatprep.subr.mxu0 0.0
        %913 = vmatpush1.msra.mxu0 0.0
        %914 = vmatprep.subr.mxu0 0.0
        %915 = vmatpush1.msra.mxu0 0.0
        %916 = vmatprep.subr.mxu0 0.0
        %917 = vmatpush1.msra.mxu0 0.0
        %918 = vmatprep.subr.mxu0 0.0
        %919 = vmatpush1.msra.mxu0 0.0
        %920 = vmatprep.mubr.f32.mxu0 0.0
        %v921 = vand.u32 %v515, 4294901760
        %922 = vmatmul.mubr.f32.gmra.mrb[0].mxu0 %v921
        %v923 = vpop.f32.mrb[0].mxu0
        %v924 = vadd.f32 %v841, %v923
        %v925 = vpop.f32.mrb[0].mxu0
        %926 = vdwg.mxu0
        %927 = vmatprep.subr.mxu0 0.0
        %v928 = vand.u32 %v510, 4294901760
        %929 = vmatpush1.msra.mxu0 %v928
        %930 = vmatprep.subr.mxu0 0.0
        %v931 = vand.u32 %v511, 4294901760
        %932 = vmatpush1.msra.mxu0 %v931
        %933 = vmatprep.subr.mxu0 0.0
        %v934 = vand.u32 %v512, 4294901760
        %935 = vmatpush1.msra.mxu0 %v934
        %936 = vmatprep.subr.mxu0 0.0
        %v937 = vand.u32 %v513, 4294901760
        %938 = vmatpush1.msra.mxu0 %v937
        %939 = vmatprep.subr.mxu0 0.0
        %940 = vmatpush1.msra.mxu0 0.0
        %941 = vmatprep.subr.mxu0 0.0
        %942 = vmatpush1.msra.mxu0 0.0
        %943 = vmatprep.subr.mxu0 0.0
        %944 = vmatpush1.msra.mxu0 0.0
        %945 = vmatprep.subr.mxu0 0.0
        %946 = vmatpush1.msra.mxu0 0.0
        %947 = vmatprep.subr.mxu0 0.0
        %948 = vmatpush1.msra.mxu0 0.0
        %949 = vmatprep.subr.mxu0 0.0
        %950 = vmatpush1.msra.mxu0 0.0
        %951 = vmatprep.subr.mxu0 0.0
        %952 = vmatpush1.msra.mxu0 0.0
        %953 = vmatprep.subr.mxu0 0.0
        %954 = vmatpush1.msra.mxu0 0.0
        %955 = vmatprep.subr.mxu0 0.0
        %956 = vmatpush1.msra.mxu0 0.0
        %957 = vmatprep.subr.mxu0 0.0
        %958 = vmatpush1.msra.mxu0 0.0
        %959 = vmatprep.subr.mxu0 0.0
        %960 = vmatpush1.msra.mxu0 0.0
        %961 = vmatprep.subr.mxu0 0.0
        %962 = vmatpush1.msra.mxu0 0.0
        %963 = vmatprep.subr.mxu0 0.0
        %964 = vmatpush1.msra.mxu0 0.0
        %965 = vmatprep.subr.mxu0 0.0
        %966 = vmatpush1.msra.mxu0 0.0
        %967 = vmatprep.subr.mxu0 0.0
        %968 = vmatpush1.msra.mxu0 0.0
        %969 = vmatprep.subr.mxu0 0.0
        %970 = vmatpush1.msra.mxu0 0.0
        %971 = vmatprep.subr.mxu0 0.0
        %972 = vmatpush1.msra.mxu0 0.0
        %973 = vmatprep.subr.mxu0 0.0
        %974 = vmatpush1.msra.mxu0 0.0
        %975 = vmatprep.subr.mxu0 0.0
        %976 = vmatpush1.msra.mxu0 0.0
        %977 = vmatprep.subr.mxu0 0.0
        %978 = vmatpush1.msra.mxu0 0.0
        %979 = vmatprep.subr.mxu0 0.0
        %980 = vmatpush1.msra.mxu0 0.0
        %981 = vmatprep.subr.mxu0 0.0
        %982 = vmatpush1.msra.mxu0 0.0
        %983 = vmatprep.subr.mxu0 0.0
        %984 = vmatpush1.msra.mxu0 0.0
        %985 = vmatprep.subr.mxu0 0.0
        %986 = vmatpush1.msra.mxu0 0.0
        %987 = vmatprep.subr.mxu0 0.0
        %988 = vmatpush1.msra.mxu0 0.0
        %989 = vmatprep.subr.mxu0 0.0
        %990 = vmatpush1.msra.mxu0 0.0
        %991 = vmatprep.subr.mxu0 0.0
        %992 = vmatpush1.msra.mxu0 0.0
        %993 = vmatprep.subr.mxu0 0.0
        %994 = vmatpush1.msra.mxu0 0.0
        %995 = vmatprep.mubr.f32.mxu0 0.0
        %v996 = vand.u32 %v515, 4294901760
        %997 = vmatmul.mubr.f32.gmra.mrb[0].mxu0 %v996
        %v998 = vpop.f32.mrb[0].mxu0
        %v999 = vadd.f32 %v924, %v998
        %v1000 = vpop.f32.mrb[0].mxu0
        %1001 = vdwg.mxu0
        %v1003 = vsel %vm459, %v509, 0
        %1005 = vmatprep.subr.mxu0 0.0
        %v1006 = vand.u32 %v510, 4294901760
        %1007 = vmatpush1.msra.mxu0 %v1006
        %1008 = vmatprep.subr.mxu0 0.0
        %v1009 = vand.u32 %v511, 4294901760
        %1010 = vmatpush1.msra.mxu0 %v1009
        %1011 = vmatprep.subr.mxu0 0.0
        %v1012 = vand.u32 %v512, 4294901760
        %1013 = vmatpush1.msra.mxu0 %v1012
        %1014 = vmatprep.subr.mxu0 0.0
        %v1015 = vand.u32 %v513, 4294901760
        %1016 = vmatpush1.msra.mxu0 %v1015
        %1017 = vmatprep.subr.mxu0 0.0
        %1018 = vmatpush1.msra.mxu0 0.0
        %1019 = vmatprep.subr.mxu0 0.0
        %1020 = vmatpush1.msra.mxu0 0.0
        %1021 = vmatprep.subr.mxu0 0.0
        %1022 = vmatpush1.msra.mxu0 0.0
        %1023 = vmatprep.subr.mxu0 0.0
        %1024 = vmatpush1.msra.mxu0 0.0
        %1025 = vmatprep.subr.mxu0 0.0
        %1026 = vmatpush1.msra.mxu0 0.0
        %1027 = vmatprep.subr.mxu0 0.0
        %1028 = vmatpush1.msra.mxu0 0.0
        %1029 = vmatprep.subr.mxu0 0.0
        %1030 = vmatpush1.msra.mxu0 0.0
        %1031 = vmatprep.subr.mxu0 0.0
        %1032 = vmatpush1.msra.mxu0 0.0
        %1033 = vmatprep.subr.mxu0 0.0
        %1034 = vmatpush1.msra.mxu0 0.0
        %1035 = vmatprep.subr.mxu0 0.0
        %1036 = vmatpush1.msra.mxu0 0.0
        %1037 = vmatprep.subr.mxu0 0.0
        %1038 = vmatpush1.msra.mxu0 0.0
        %1039 = vmatprep.subr.mxu0 0.0
        %1040 = vmatpush1.msra.mxu0 0.0
        %1041 = vmatprep.subr.mxu0 0.0
        %1042 = vmatpush1.msra.mxu0 0.0
        %1043 = vmatprep.subr.mxu0 0.0
        %1044 = vmatpush1.msra.mxu0 0.0
        %1045 = vmatprep.subr.mxu0 0.0
        %1046 = vmatpush1.msra.mxu0 0.0
        %1047 = vmatprep.subr.mxu0 0.0
        %1048 = vmatpush1.msra.mxu0 0.0
        %1049 = vmatprep.subr.mxu0 0.0
        %1050 = vmatpush1.msra.mxu0 0.0
        %1051 = vmatprep.subr.mxu0 0.0
        %1052 = vmatpush1.msra.mxu0 0.0
        %1053 = vmatprep.subr.mxu0 0.0
        %1054 = vmatpush1.msra.mxu0 0.0
        %1055 = vmatprep.subr.mxu0 0.0
        %1056 = vmatpush1.msra.mxu0 0.0
        %1057 = vmatprep.subr.mxu0 0.0
        %1058 = vmatpush1.msra.mxu0 0.0
        %1059 = vmatprep.subr.mxu0 0.0
        %1060 = vmatpush1.msra.mxu0 0.0
        %1061 = vmatprep.subr.mxu0 0.0
        %1062 = vmatpush1.msra.mxu0 0.0
        %1063 = vmatprep.subr.mxu0 0.0
        %1064 = vmatpush1.msra.mxu0 0.0
        %1065 = vmatprep.subr.mxu0 0.0
        %1066 = vmatpush1.msra.mxu0 0.0
        %1067 = vmatprep.subr.mxu0 0.0
        %1068 = vmatpush1.msra.mxu0 0.0
        %1069 = vmatprep.subr.mxu0 0.0
        %1070 = vmatpush1.msra.mxu0 0.0
        %1071 = vmatprep.subr.mxu0 0.0
        %1072 = vmatpush1.msra.mxu0 0.0
        %1073 = vmatprep.mubr.f32.mxu0 0.0
        %v1074 = vand.u32 %v1003, 4294901760
        %v1075 = vsub.f32 %v1003, %v1074
        %v1076 = vand.u32 %v1075, 4294901760
        %v1077 = vsub.f32 %v1075, %v1076
        %v1078 = vand.u32 %v1077, 4294901760
        %1079 = vmatmul.mubr.f32.gmra.mrb[0].mxu0 %v1078
        %v1080 = vpop.f32.mrb[0].mxu0
        %v1081 = vadd.f32 0.0, %v1080
        %v1082 = vpop.f32.mrb[0].mxu0
        %1083 = vdwg.mxu0
        %1084 = vmatprep.subr.mxu0 0.0
        %v1085 = vand.u32 %v510, 4294901760
        %v1086 = vsub.f32 %v510, %v1085
        %v1087 = vand.u32 %v1086, 4294901760
        %v1088 = vsub.f32 %v1086, %v1087
        %v1089 = vand.u32 %v1088, 4294901760
        %1090 = vmatpush1.msra.mxu0 %v1089
        %1091 = vmatprep.subr.mxu0 0.0
        %v1092 = vand.u32 %v511, 4294901760
        %v1093 = vsub.f32 %v511, %v1092
        %v1094 = vand.u32 %v1093, 4294901760
        %v1095 = vsub.f32 %v1093, %v1094
        %v1096 = vand.u32 %v1095, 4294901760
        %1097 = vmatpush1.msra.mxu0 %v1096
        %1098 = vmatprep.subr.mxu0 0.0
        %v1099 = vand.u32 %v512, 4294901760
        %v1100 = vsub.f32 %v512, %v1099
        %v1101 = vand.u32 %v1100, 4294901760
        %v1102 = vsub.f32 %v1100, %v1101
        %v1103 = vand.u32 %v1102, 4294901760
        %1104 = vmatpush1.msra.mxu0 %v1103
        %1105 = vmatprep.subr.mxu0 0.0
        %v1106 = vand.u32 %v513, 4294901760
        %v1107 = vsub.f32 %v513, %v1106
        %v1108 = vand.u32 %v1107, 4294901760
        %v1109 = vsub.f32 %v1107, %v1108
        %v1110 = vand.u32 %v1109, 4294901760
        %1111 = vmatpush1.msra.mxu0 %v1110
        %1112 = vmatprep.subr.mxu0 0.0
        %1113 = vmatpush1.msra.mxu0 0.0
        %1114 = vmatprep.subr.mxu0 0.0
        %1115 = vmatpush1.msra.mxu0 0.0
        %1116 = vmatprep.subr.mxu0 0.0
        %1117 = vmatpush1.msra.mxu0 0.0
        %1118 = vmatprep.subr.mxu0 0.0
        %1119 = vmatpush1.msra.mxu0 0.0
        %1120 = vmatprep.subr.mxu0 0.0
        %1121 = vmatpush1.msra.mxu0 0.0
        %1122 = vmatprep.subr.mxu0 0.0
        %1123 = vmatpush1.msra.mxu0 0.0
        %1124 = vmatprep.subr.mxu0 0.0
        %1125 = vmatpush1.msra.mxu0 0.0
        %1126 = vmatprep.subr.mxu0 0.0
        %1127 = vmatpush1.msra.mxu0 0.0
        %1128 = vmatprep.subr.mxu0 0.0
        %1129 = vmatpush1.msra.mxu0 0.0
        %1130 = vmatprep.subr.mxu0 0.0
        %1131 = vmatpush1.msra.mxu0 0.0
        %1132 = vmatprep.subr.mxu0 0.0
        %1133 = vmatpush1.msra.mxu0 0.0
        %1134 = vmatprep.subr.mxu0 0.0
        %1135 = vmatpush1.msra.mxu0 0.0
        %1136 = vmatprep.subr.mxu0 0.0
        %1137 = vmatpush1.msra.mxu0 0.0
        %1138 = vmatprep.subr.mxu0 0.0
        %1139 = vmatpush1.msra.mxu0 0.0
        %1140 = vmatprep.subr.mxu0 0.0
        %1141 = vmatpush1.msra.mxu0 0.0
        %1142 = vmatprep.subr.mxu0 0.0
        %1143 = vmatpush1.msra.mxu0 0.0
        %1144 = vmatprep.subr.mxu0 0.0
        %1145 = vmatpush1.msra.mxu0 0.0
        %1146 = vmatprep.subr.mxu0 0.0
        %1147 = vmatpush1.msra.mxu0 0.0
        %1148 = vmatprep.subr.mxu0 0.0
        %1149 = vmatpush1.msra.mxu0 0.0
        %1150 = vmatprep.subr.mxu0 0.0
        %1151 = vmatpush1.msra.mxu0 0.0
        %1152 = vmatprep.subr.mxu0 0.0
        %1153 = vmatpush1.msra.mxu0 0.0
        %1154 = vmatprep.subr.mxu0 0.0
        %1155 = vmatpush1.msra.mxu0 0.0
        %1156 = vmatprep.subr.mxu0 0.0
        %1157 = vmatpush1.msra.mxu0 0.0
        %1158 = vmatprep.subr.mxu0 0.0
        %1159 = vmatpush1.msra.mxu0 0.0
        %1160 = vmatprep.subr.mxu0 0.0
        %1161 = vmatpush1.msra.mxu0 0.0
        %1162 = vmatprep.subr.mxu0 0.0
        %1163 = vmatpush1.msra.mxu0 0.0
        %1164 = vmatprep.subr.mxu0 0.0
        %1165 = vmatpush1.msra.mxu0 0.0
        %1166 = vmatprep.subr.mxu0 0.0
        %1167 = vmatpush1.msra.mxu0 0.0
        %1168 = vmatprep.mubr.f32.mxu0 0.0
        %v1169 = vand.u32 %v1003, 4294901760
        %1170 = vmatmul.mubr.f32.gmra.mrb[0].mxu0 %v1169
        %v1171 = vpop.f32.mrb[0].mxu0
        %v1172 = vadd.f32 %v1081, %v1171
        %v1173 = vpop.f32.mrb[0].mxu0
        %1174 = vdwg.mxu0
        %1175 = vmatprep.subr.mxu0 0.0
        %v1176 = vand.u32 %v510, 4294901760
        %v1177 = vsub.f32 %v510, %v1176
        %1178 = vmatpush1.msra.mxu0 %v1177
        %1179 = vmatprep.subr.mxu0 0.0
        %v1180 = vand.u32 %v511, 4294901760
        %v1181 = vsub.f32 %v511, %v1180
        %1182 = vmatpush1.msra.mxu0 %v1181
        %1183 = vmatprep.subr.mxu0 0.0
        %v1184 = vand.u32 %v512, 4294901760
        %v1185 = vsub.f32 %v512, %v1184
        %1186 = vmatpush1.msra.mxu0 %v1185
        %1187 = vmatprep.subr.mxu0 0.0
        %v1188 = vand.u32 %v513, 4294901760
        %v1189 = vsub.f32 %v513, %v1188
        %1190 = vmatpush1.msra.mxu0 %v1189
        %1191 = vmatprep.subr.mxu0 0.0
        %1192 = vmatpush1.msra.mxu0 0.0
        %1193 = vmatprep.subr.mxu0 0.0
        %1194 = vmatpush1.msra.mxu0 0.0
        %1195 = vmatprep.subr.mxu0 0.0
        %1196 = vmatpush1.msra.mxu0 0.0
        %1197 = vmatprep.subr.mxu0 0.0
        %1198 = vmatpush1.msra.mxu0 0.0
        %1199 = vmatprep.subr.mxu0 0.0
        %1200 = vmatpush1.msra.mxu0 0.0
        %1201 = vmatprep.subr.mxu0 0.0
        %1202 = vmatpush1.msra.mxu0 0.0
        %1203 = vmatprep.subr.mxu0 0.0
        %1204 = vmatpush1.msra.mxu0 0.0
        %1205 = vmatprep.subr.mxu0 0.0
        %1206 = vmatpush1.msra.mxu0 0.0
        %1207 = vmatprep.subr.mxu0 0.0
        %1208 = vmatpush1.msra.mxu0 0.0
        %1209 = vmatprep.subr.mxu0 0.0
        %1210 = vmatpush1.msra.mxu0 0.0
        %1211 = vmatprep.subr.mxu0 0.0
        %1212 = vmatpush1.msra.mxu0 0.0
        %1213 = vmatprep.subr.mxu0 0.0
        %1214 = vmatpush1.msra.mxu0 0.0
        %1215 = vmatprep.subr.mxu0 0.0
        %1216 = vmatpush1.msra.mxu0 0.0
        %1217 = vmatprep.subr.mxu0 0.0
        %1218 = vmatpush1.msra.mxu0 0.0
        %1219 = vmatprep.subr.mxu0 0.0
        %1220 = vmatpush1.msra.mxu0 0.0
        %1221 = vmatprep.subr.mxu0 0.0
        %1222 = vmatpush1.msra.mxu0 0.0
        %1223 = vmatprep.subr.mxu0 0.0
        %1224 = vmatpush1.msra.mxu0 0.0
        %1225 = vmatprep.subr.mxu0 0.0
        %1226 = vmatpush1.msra.mxu0 0.0
        %1227 = vmatprep.subr.mxu0 0.0
        %1228 = vmatpush1.msra.mxu0 0.0
        %1229 = vmatprep.subr.mxu0 0.0
        %1230 = vmatpush1.msra.mxu0 0.0
        %1231 = vmatprep.subr.mxu0 0.0
        %1232 = vmatpush1.msra.mxu0 0.0
        %1233 = vmatprep.subr.mxu0 0.0
        %1234 = vmatpush1.msra.mxu0 0.0
        %1235 = vmatprep.subr.mxu0 0.0
        %1236 = vmatpush1.msra.mxu0 0.0
        %1237 = vmatprep.subr.mxu0 0.0
        %1238 = vmatpush1.msra.mxu0 0.0
        %1239 = vmatprep.subr.mxu0 0.0
        %1240 = vmatpush1.msra.mxu0 0.0
        %1241 = vmatprep.subr.mxu0 0.0
        %1242 = vmatpush1.msra.mxu0 0.0
        %1243 = vmatprep.subr.mxu0 0.0
        %1244 = vmatpush1.msra.mxu0 0.0
        %1245 = vmatprep.subr.mxu0 0.0
        %1246 = vmatpush1.msra.mxu0 0.0
        %1247 = vmatprep.mubr.f32.mxu0 0.0
        %v1248 = vand.u32 %v1003, 4294901760
        %v1249 = vsub.f32 %v1003, %v1248
        %1250 = vmatmul.mubr.f32.gmra.mrb[0].mxu0 %v1249
        %v1251 = vpop.f32.mrb[0].mxu0
        %v1252 = vadd.f32 %v1172, %v1251
        %v1253 = vpop.f32.mrb[0].mxu0
        %1254 = vdwg.mxu0
        %1255 = vmatprep.subr.mxu0 0.0
        %v1256 = vand.u32 %v510, 4294901760
        %1257 = vmatpush1.msra.mxu0 %v1256
        %1258 = vmatprep.subr.mxu0 0.0
        %v1259 = vand.u32 %v511, 4294901760
        %1260 = vmatpush1.msra.mxu0 %v1259
        %1261 = vmatprep.subr.mxu0 0.0
        %v1262 = vand.u32 %v512, 4294901760
        %1263 = vmatpush1.msra.mxu0 %v1262
        %1264 = vmatprep.subr.mxu0 0.0
        %v1265 = vand.u32 %v513, 4294901760
        %1266 = vmatpush1.msra.mxu0 %v1265
        %1267 = vmatprep.subr.mxu0 0.0
        %1268 = vmatpush1.msra.mxu0 0.0
        %1269 = vmatprep.subr.mxu0 0.0
        %1270 = vmatpush1.msra.mxu0 0.0
        %1271 = vmatprep.subr.mxu0 0.0
        %1272 = vmatpush1.msra.mxu0 0.0
        %1273 = vmatprep.subr.mxu0 0.0
        %1274 = vmatpush1.msra.mxu0 0.0
        %1275 = vmatprep.subr.mxu0 0.0
        %1276 = vmatpush1.msra.mxu0 0.0
        %1277 = vmatprep.subr.mxu0 0.0
        %1278 = vmatpush1.msra.mxu0 0.0
        %1279 = vmatprep.subr.mxu0 0.0
        %1280 = vmatpush1.msra.mxu0 0.0
        %1281 = vmatprep.subr.mxu0 0.0
        %1282 = vmatpush1.msra.mxu0 0.0
        %1283 = vmatprep.subr.mxu0 0.0
        %1284 = vmatpush1.msra.mxu0 0.0
        %1285 = vmatprep.subr.mxu0 0.0
        %1286 = vmatpush1.msra.mxu0 0.0
        %1287 = vmatprep.subr.mxu0 0.0
        %1288 = vmatpush1.msra.mxu0 0.0
        %1289 = vmatprep.subr.mxu0 0.0
        %1290 = vmatpush1.msra.mxu0 0.0
        %1291 = vmatprep.subr.mxu0 0.0
        %1292 = vmatpush1.msra.mxu0 0.0
        %1293 = vmatprep.subr.mxu0 0.0
        %1294 = vmatpush1.msra.mxu0 0.0
        %1295 = vmatprep.subr.mxu0 0.0
        %1296 = vmatpush1.msra.mxu0 0.0
        %1297 = vmatprep.subr.mxu0 0.0
        %1298 = vmatpush1.msra.mxu0 0.0
        %1299 = vmatprep.subr.mxu0 0.0
        %1300 = vmatpush1.msra.mxu0 0.0
        %1301 = vmatprep.subr.mxu0 0.0
        %1302 = vmatpush1.msra.mxu0 0.0
        %1303 = vmatprep.subr.mxu0 0.0
        %1304 = vmatpush1.msra.mxu0 0.0
        %1305 = vmatprep.subr.mxu0 0.0
        %1306 = vmatpush1.msra.mxu0 0.0
        %1307 = vmatprep.subr.mxu0 0.0
        %1308 = vmatpush1.msra.mxu0 0.0
        %1309 = vmatprep.subr.mxu0 0.0
        %1310 = vmatpush1.msra.mxu0 0.0
        %1311 = vmatprep.subr.mxu0 0.0
        %1312 = vmatpush1.msra.mxu0 0.0
        %1313 = vmatprep.subr.mxu0 0.0
        %1314 = vmatpush1.msra.mxu0 0.0
        %1315 = vmatprep.subr.mxu0 0.0
        %1316 = vmatpush1.msra.mxu0 0.0
        %1317 = vmatprep.subr.mxu0 0.0
        %1318 = vmatpush1.msra.mxu0 0.0
        %1319 = vmatprep.subr.mxu0 0.0
        %1320 = vmatpush1.msra.mxu0 0.0
        %1321 = vmatprep.subr.mxu0 0.0
        %1322 = vmatpush1.msra.mxu0 0.0
        %1323 = vmatprep.mubr.f32.mxu0 0.0
        %v1324 = vand.u32 %v1003, 4294901760
        %v1325 = vsub.f32 %v1003, %v1324
        %v1326 = vand.u32 %v1325, 4294901760
        %1327 = vmatmul.mubr.f32.gmra.mrb[0].mxu0 %v1326
        %v1328 = vpop.f32.mrb[0].mxu0
        %v1329 = vadd.f32 %v1252, %v1328
        %v1330 = vpop.f32.mrb[0].mxu0
        %1331 = vdwg.mxu0
        %1332 = vmatprep.subr.mxu0 0.0
        %v1333 = vand.u32 %v510, 4294901760
        %v1334 = vsub.f32 %v510, %v1333
        %v1335 = vand.u32 %v1334, 4294901760
        %1336 = vmatpush1.msra.mxu0 %v1335
        %1337 = vmatprep.subr.mxu0 0.0
        %v1338 = vand.u32 %v511, 4294901760
        %v1339 = vsub.f32 %v511, %v1338
        %v1340 = vand.u32 %v1339, 4294901760
        %1341 = vmatpush1.msra.mxu0 %v1340
        %1342 = vmatprep.subr.mxu0 0.0
        %v1343 = vand.u32 %v512, 4294901760
        %v1344 = vsub.f32 %v512, %v1343
        %v1345 = vand.u32 %v1344, 4294901760
        %1346 = vmatpush1.msra.mxu0 %v1345
        %1347 = vmatprep.subr.mxu0 0.0
        %v1348 = vand.u32 %v513, 4294901760
        %v1349 = vsub.f32 %v513, %v1348
        %v1350 = vand.u32 %v1349, 4294901760
        %1351 = vmatpush1.msra.mxu0 %v1350
        %1352 = vmatprep.subr.mxu0 0.0
        %1353 = vmatpush1.msra.mxu0 0.0
        %1354 = vmatprep.subr.mxu0 0.0
        %1355 = vmatpush1.msra.mxu0 0.0
        %1356 = vmatprep.subr.mxu0 0.0
        %1357 = vmatpush1.msra.mxu0 0.0
        %1358 = vmatprep.subr.mxu0 0.0
        %1359 = vmatpush1.msra.mxu0 0.0
        %1360 = vmatprep.subr.mxu0 0.0
        %1361 = vmatpush1.msra.mxu0 0.0
        %1362 = vmatprep.subr.mxu0 0.0
        %1363 = vmatpush1.msra.mxu0 0.0
        %1364 = vmatprep.subr.mxu0 0.0
        %1365 = vmatpush1.msra.mxu0 0.0
        %1366 = vmatprep.subr.mxu0 0.0
        %1367 = vmatpush1.msra.mxu0 0.0
        %1368 = vmatprep.subr.mxu0 0.0
        %1369 = vmatpush1.msra.mxu0 0.0
        %1370 = vmatprep.subr.mxu0 0.0
        %1371 = vmatpush1.msra.mxu0 0.0
        %1372 = vmatprep.subr.mxu0 0.0
        %1373 = vmatpush1.msra.mxu0 0.0
        %1374 = vmatprep.subr.mxu0 0.0
        %1375 = vmatpush1.msra.mxu0 0.0
        %1376 = vmatprep.subr.mxu0 0.0
        %1377 = vmatpush1.msra.mxu0 0.0
        %1378 = vmatprep.subr.mxu0 0.0
        %1379 = vmatpush1.msra.mxu0 0.0
        %1380 = vmatprep.subr.mxu0 0.0
        %1381 = vmatpush1.msra.mxu0 0.0
        %1382 = vmatprep.subr.mxu0 0.0
        %1383 = vmatpush1.msra.mxu0 0.0
        %1384 = vmatprep.subr.mxu0 0.0
        %1385 = vmatpush1.msra.mxu0 0.0
        %1386 = vmatprep.subr.mxu0 0.0
        %1387 = vmatpush1.msra.mxu0 0.0
        %1388 = vmatprep.subr.mxu0 0.0
        %1389 = vmatpush1.msra.mxu0 0.0
        %1390 = vmatprep.subr.mxu0 0.0
        %1391 = vmatpush1.msra.mxu0 0.0
        %1392 = vmatprep.subr.mxu0 0.0
        %1393 = vmatpush1.msra.mxu0 0.0
        %1394 = vmatprep.subr.mxu0 0.0
        %1395 = vmatpush1.msra.mxu0 0.0
        %1396 = vmatprep.subr.mxu0 0.0
        %1397 = vmatpush1.msra.mxu0 0.0
        %1398 = vmatprep.subr.mxu0 0.0
        %1399 = vmatpush1.msra.mxu0 0.0
        %1400 = vmatprep.subr.mxu0 0.0
        %1401 = vmatpush1.msra.mxu0 0.0
        %1402 = vmatprep.subr.mxu0 0.0
        %1403 = vmatpush1.msra.mxu0 0.0
        %1404 = vmatprep.subr.mxu0 0.0
        %1405 = vmatpush1.msra.mxu0 0.0
        %1406 = vmatprep.subr.mxu0 0.0
        %1407 = vmatpush1.msra.mxu0 0.0
        %1408 = vmatprep.mubr.f32.mxu0 0.0
        %v1409 = vand.u32 %v1003, 4294901760
        %1410 = vmatmul.mubr.f32.gmra.mrb[0].mxu0 %v1409
        %v1411 = vpop.f32.mrb[0].mxu0
        %v1412 = vadd.f32 %v1329, %v1411
        %v1413 = vpop.f32.mrb[0].mxu0
        %1414 = vdwg.mxu0
        %1415 = vmatprep.subr.mxu0 0.0
        %v1416 = vand.u32 %v510, 4294901760
        %1417 = vmatpush1.msra.mxu0 %v1416
        %1418 = vmatprep.subr.mxu0 0.0
        %v1419 = vand.u32 %v511, 4294901760
        %1420 = vmatpush1.msra.mxu0 %v1419
        %1421 = vmatprep.subr.mxu0 0.0
        %v1422 = vand.u32 %v512, 4294901760
        %1423 = vmatpush1.msra.mxu0 %v1422
        %1424 = vmatprep.subr.mxu0 0.0
        %v1425 = vand.u32 %v513, 4294901760
        %1426 = vmatpush1.msra.mxu0 %v1425
        %1427 = vmatprep.subr.mxu0 0.0
        %1428 = vmatpush1.msra.mxu0 0.0
        %1429 = vmatprep.subr.mxu0 0.0
        %1430 = vmatpush1.msra.mxu0 0.0
        %1431 = vmatprep.subr.mxu0 0.0
        %1432 = vmatpush1.msra.mxu0 0.0
        %1433 = vmatprep.subr.mxu0 0.0
        %1434 = vmatpush1.msra.mxu0 0.0
        %1435 = vmatprep.subr.mxu0 0.0
        %1436 = vmatpush1.msra.mxu0 0.0
        %1437 = vmatprep.subr.mxu0 0.0
        %1438 = vmatpush1.msra.mxu0 0.0
        %1439 = vmatprep.subr.mxu0 0.0
        %1440 = vmatpush1.msra.mxu0 0.0
        %1441 = vmatprep.subr.mxu0 0.0
        %1442 = vmatpush1.msra.mxu0 0.0
        %1443 = vmatprep.subr.mxu0 0.0
        %1444 = vmatpush1.msra.mxu0 0.0
        %1445 = vmatprep.subr.mxu0 0.0
        %1446 = vmatpush1.msra.mxu0 0.0
        %1447 = vmatprep.subr.mxu0 0.0
        %1448 = vmatpush1.msra.mxu0 0.0
        %1449 = vmatprep.subr.mxu0 0.0
        %1450 = vmatpush1.msra.mxu0 0.0
        %1451 = vmatprep.subr.mxu0 0.0
        %1452 = vmatpush1.msra.mxu0 0.0
        %1453 = vmatprep.subr.mxu0 0.0
        %1454 = vmatpush1.msra.mxu0 0.0
        %1455 = vmatprep.subr.mxu0 0.0
        %1456 = vmatpush1.msra.mxu0 0.0
        %1457 = vmatprep.subr.mxu0 0.0
        %1458 = vmatpush1.msra.mxu0 0.0
        %1459 = vmatprep.subr.mxu0 0.0
        %1460 = vmatpush1.msra.mxu0 0.0
        %1461 = vmatprep.subr.mxu0 0.0
        %1462 = vmatpush1.msra.mxu0 0.0
        %1463 = vmatprep.subr.mxu0 0.0
        %1464 = vmatpush1.msra.mxu0 0.0
        %1465 = vmatprep.subr.mxu0 0.0
        %1466 = vmatpush1.msra.mxu0 0.0
        %1467 = vmatprep.subr.mxu0 0.0
        %1468 = vmatpush1.msra.mxu0 0.0
        %1469 = vmatprep.subr.mxu0 0.0
        %1470 = vmatpush1.msra.mxu0 0.0
        %1471 = vmatprep.subr.mxu0 0.0
        %1472 = vmatpush1.msra.mxu0 0.0
        %1473 = vmatprep.subr.mxu0 0.0
        %1474 = vmatpush1.msra.mxu0 0.0
        %1475 = vmatprep.subr.mxu0 0.0
        %1476 = vmatpush1.msra.mxu0 0.0
        %1477 = vmatprep.subr.mxu0 0.0
        %1478 = vmatpush1.msra.mxu0 0.0
        %1479 = vmatprep.subr.mxu0 0.0
        %1480 = vmatpush1.msra.mxu0 0.0
        %1481 = vmatprep.subr.mxu0 0.0
        %1482 = vmatpush1.msra.mxu0 0.0
        %1483 = vmatprep.mubr.f32.mxu0 0.0
        %v1484 = vand.u32 %v1003, 4294901760
        %1485 = vmatmul.mubr.f32.gmra.mrb[0].mxu0 %v1484
        %v1486 = vpop.f32.mrb[0].mxu0
        %v1487 = vadd.f32 %v1412, %v1486
        %v1488 = vpop.f32.mrb[0].mxu0
        %1489 = vdwg.mxu0
        %v1490 = vmul.f32 %v999, 0.00390625
        %v1491 = vmul.f32 %v1487, 0.00390625
        %v1492 = vmul.f32 %v1490, %v1490
        %v1493 = vsub.f32 %v1491, %v1492
        %v1494 = vadd.f32 %v1493, 1e-05
        %v1495 = vrsqrt.pop %v1494
        %v1496 = vld [vmem:[%s7] sm:$0xff]
        %vm1497 = vcmask 64512
        %v1499 = vsel %vm1497, %v1490, 0
        %1501 = vmatprep.subr.mxu0 0.0
        %v1502 = vand.u32 %v1496, 4294901760
        %1503 = vmatpush1.msra.mxu0 %v1502
        %1504 = vmatprep.subr.mxu0 0.0
        %1505 = vmatpush1.msra.mxu0 0.0
        %1506 = vmatprep.subr.mxu0 0.0
        %1507 = vmatpush1.msra.mxu0 0.0
        %1508 = vmatprep.subr.mxu0 0.0
        %1509 = vmatpush1.msra.mxu0 0.0
        %1510 = vmatprep.subr.mxu0 0.0
        %1511 = vmatpush1.msra.mxu0 0.0
        %1512 = vmatprep.subr.mxu0 0.0
        %1513 = vmatpush1.msra.mxu0 0.0
        %1514 = vmatprep.subr.mxu0 0.0
        %1515 = vmatpush1.msra.mxu0 0.0
        %1516 = vmatprep.subr.mxu0 0.0
        %1517 = vmatpush1.msra.mxu0 0.0
        %1518 = vmatprep.subr.mxu0 0.0
        %1519 = vmatpush1.msra.mxu0 0.0
        %1520 = vmatprep.subr.mxu0 0.0
        %1521 = vmatpush1.msra.mxu0 0.0
        %1522 = vmatprep.subr.mxu0 0.0
        %1523 = vmatpush1.msra.mxu0 0.0
        %1524 = vmatprep.subr.mxu0 0.0
        %1525 = vmatpush1.msra.mxu0 0.0
        %1526 = vmatprep.subr.mxu0 0.0
        %1527 = vmatpush1.msra.mxu0 0.0
        %1528 = vmatprep.subr.mxu0 0.0
        %1529 = vmatpush1.msra.mxu0 0.0
        %1530 = vmatprep.subr.mxu0 0.0
        %1531 = vmatpush1.msra.mxu0 0.0
        %1532 = vmatprep.subr.mxu0 0.0
        %1533 = vmatpush1.msra.mxu0 0.0
        %1534 = vmatprep.subr.mxu0 0.0
        %1535 = vmatpush1.msra.mxu0 0.0
        %1536 = vmatprep.subr.mxu0 0.0
        %1537 = vmatpush1.msra.mxu0 0.0
        %1538 = vmatprep.subr.mxu0 0.0
        %1539 = vmatpush1.msra.mxu0 0.0
        %1540 = vmatprep.subr.mxu0 0.0
        %1541 = vmatpush1.msra.mxu0 0.0
        %1542 = vmatprep.subr.mxu0 0.0
        %1543 = vmatpush1.msra.mxu0 0.0
        %1544 = vmatprep.subr.mxu0 0.0
        %1545 = vmatpush1.msra.mxu0 0.0
        %1546 = vmatprep.subr.mxu0 0.0
        %1547 = vmatpush1.msra.mxu0 0.0
        %1548 = vmatprep.subr.mxu0 0.0
        %1549 = vmatpush1.msra.mxu0 0.0
        %1550 = vmatprep.subr.mxu0 0.0
        %1551 = vmatpush1.msra.mxu0 0.0
        %1552 = vmatprep.subr.mxu0 0.0
        %1553 = vmatpush1.msra.mxu0 0.0
        %1554 = vmatprep.subr.mxu0 0.0
        %1555 = vmatpush1.msra.mxu0 0.0
        %1556 = vmatprep.subr.mxu0 0.0
        %1557 = vmatpush1.msra.mxu0 0.0
        %1558 = vmatprep.subr.mxu0 0.0
        %1559 = vmatpush1.msra.mxu0 0.0
        %1560 = vmatprep.subr.mxu0 0.0
        %1561 = vmatpush1.msra.mxu0 0.0
        %1562 = vmatprep.subr.mxu0 0.0
        %1563 = vmatpush1.msra.mxu0 0.0
        %1564 = vmatprep.subr.mxu0 0.0
        %1565 = vmatpush1.msra.mxu0 0.0
        %1566 = vmatprep.mubr.f32.mxu0 0.0
        %v1567 = vand.u32 %v1499, 4294901760
        %v1568 = vsub.f32 %v1499, %v1567
        %v1569 = vand.u32 %v1568, 4294901760
        %v1570 = vsub.f32 %v1568, %v1569
        %v1571 = vand.u32 %v1570, 4294901760
        %1572 = vmatmul.mubr.f32.gmra.mrb[0].mxu0 %v1571
        %v1573 = vpop.f32.mrb[0].mxu0
        %v1574 = vadd.f32 0.0, %v1573
        %v1575 = vpop.f32.mrb[0].mxu0
        %1576 = vdwg.mxu0
        %1577 = vmatprep.subr.mxu0 0.0
        %v1578 = vand.u32 %v1496, 4294901760
        %v1579 = vsub.f32 %v1496, %v1578
        %v1580 = vand.u32 %v1579, 4294901760
        %v1581 = vsub.f32 %v1579, %v1580
        %v1582 = vand.u32 %v1581, 4294901760
        %1583 = vmatpush1.msra.mxu0 %v1582
        %1584 = vmatprep.subr.mxu0 0.0
        %1585 = vmatpush1.msra.mxu0 0.0
        %1586 = vmatprep.subr.mxu0 0.0
        %1587 = vmatpush1.msra.mxu0 0.0
        %1588 = vmatprep.subr.mxu0 0.0
        %1589 = vmatpush1.msra.mxu0 0.0
        %1590 = vmatprep.subr.mxu0 0.0
        %1591 = vmatpush1.msra.mxu0 0.0
        %1592 = vmatprep.subr.mxu0 0.0
        %1593 = vmatpush1.msra.mxu0 0.0
        %1594 = vmatprep.subr.mxu0 0.0
        %1595 = vmatpush1.msra.mxu0 0.0
        %1596 = vmatprep.subr.mxu0 0.0
        %1597 = vmatpush1.msra.mxu0 0.0
        %1598 = vmatprep.subr.mxu0 0.0
        %1599 = vmatpush1.msra.mxu0 0.0
        %1600 = vmatprep.subr.mxu0 0.0
        %1601 = vmatpush1.msra.mxu0 0.0
        %1602 = vmatprep.subr.mxu0 0.0
        %1603 = vmatpush1.msra.mxu0 0.0
        %1604 = vmatprep.subr.mxu0 0.0
        %1605 = vmatpush1.msra.mxu0 0.0
        %1606 = vmatprep.subr.mxu0 0.0
        %1607 = vmatpush1.msra.mxu0 0.0
        %1608 = vmatprep.subr.mxu0 0.0
        %1609 = vmatpush1.msra.mxu0 0.0
        %1610 = vmatprep.subr.mxu0 0.0
        %1611 = vmatpush1.msra.mxu0 0.0
        %1612 = vmatprep.subr.mxu0 0.0
        %1613 = vmatpush1.msra.mxu0 0.0
        %1614 = vmatprep.subr.mxu0 0.0
        %1615 = vmatpush1.msra.mxu0 0.0
        %1616 = vmatprep.subr.mxu0 0.0
        %1617 = vmatpush1.msra.mxu0 0.0
        %1618 = vmatprep.subr.mxu0 0.0
        %1619 = vmatpush1.msra.mxu0 0.0
        %1620 = vmatprep.subr.mxu0 0.0
        %1621 = vmatpush1.msra.mxu0 0.0
        %1622 = vmatprep.subr.mxu0 0.0
        %1623 = vmatpush1.msra.mxu0 0.0
        %1624 = vmatprep.subr.mxu0 0.0
        %1625 = vmatpush1.msra.mxu0 0.0
        %1626 = vmatprep.subr.mxu0 0.0
        %1627 = vmatpush1.msra.mxu0 0.0
        %1628 = vmatprep.subr.mxu0 0.0
        %1629 = vmatpush1.msra.mxu0 0.0
        %1630 = vmatprep.subr.mxu0 0.0
        %1631 = vmatpush1.msra.mxu0 0.0
        %1632 = vmatprep.subr.mxu0 0.0
        %1633 = vmatpush1.msra.mxu0 0.0
        %1634 = vmatprep.subr.mxu0 0.0
        %1635 = vmatpush1.msra.mxu0 0.0
        %1636 = vmatprep.subr.mxu0 0.0
        %1637 = vmatpush1.msra.mxu0 0.0
        %1638 = vmatprep.subr.mxu0 0.0
        %1639 = vmatpush1.msra.mxu0 0.0
        %1640 = vmatprep.subr.mxu0 0.0
        %1641 = vmatpush1.msra.mxu0 0.0
        %1642 = vmatprep.subr.mxu0 0.0
        %1643 = vmatpush1.msra.mxu0 0.0
        %1644 = vmatprep.subr.mxu0 0.0
        %1645 = vmatpush1.msra.mxu0 0.0
        %1646 = vmatprep.mubr.f32.mxu0 0.0
        %v1647 = vand.u32 %v1499, 4294901760
        %1648 = vmatmul.mubr.f32.gmra.mrb[0].mxu0 %v1647
        %v1649 = vpop.f32.mrb[0].mxu0
        %v1650 = vadd.f32 %v1574, %v1649
        %v1651 = vpop.f32.mrb[0].mxu0
        %1652 = vdwg.mxu0
        %1653 = vmatprep.subr.mxu0 0.0
        %v1654 = vand.u32 %v1496, 4294901760
        %v1655 = vsub.f32 %v1496, %v1654
        %1656 = vmatpush1.msra.mxu0 %v1655
        %1657 = vmatprep.subr.mxu0 0.0
        %1658 = vmatpush1.msra.mxu0 0.0
        %1659 = vmatprep.subr.mxu0 0.0
        %1660 = vmatpush1.msra.mxu0 0.0
        %1661 = vmatprep.subr.mxu0 0.0
        %1662 = vmatpush1.msra.mxu0 0.0
        %1663 = vmatprep.subr.mxu0 0.0
        %1664 = vmatpush1.msra.mxu0 0.0
        %1665 = vmatprep.subr.mxu0 0.0
        %1666 = vmatpush1.msra.mxu0 0.0
        %1667 = vmatprep.subr.mxu0 0.0
        %1668 = vmatpush1.msra.mxu0 0.0
        %1669 = vmatprep.subr.mxu0 0.0
        %1670 = vmatpush1.msra.mxu0 0.0
        %1671 = vmatprep.subr.mxu0 0.0
        %1672 = vmatpush1.msra.mxu0 0.0
        %1673 = vmatprep.subr.mxu0 0.0
        %1674 = vmatpush1.msra.mxu0 0.0
        %1675 = vmatprep.subr.mxu0 0.0
        %1676 = vmatpush1.msra.mxu0 0.0
        %1677 = vmatprep.subr.mxu0 0.0
        %1678 = vmatpush1.msra.mxu0 0.0
        %1679 = vmatprep.subr.mxu0 0.0
        %1680 = vmatpush1.msra.mxu0 0.0
        %1681 = vmatprep.subr.mxu0 0.0
        %1682 = vmatpush1.msra.mxu0 0.0
        %1683 = vmatprep.subr.mxu0 0.0
        %1684 = vmatpush1.msra.mxu0 0.0
        %1685 = vmatprep.subr.mxu0 0.0
        %1686 = vmatpush1.msra.mxu0 0.0
        %1687 = vmatprep.subr.mxu0 0.0
        %1688 = vmatpush1.msra.mxu0 0.0
        %1689 = vmatprep.subr.mxu0 0.0
        %1690 = vmatpush1.msra.mxu0 0.0
        %1691 = vmatprep.subr.mxu0 0.0
        %1692 = vmatpush1.msra.mxu0 0.0
        %1693 = vmatprep.subr.mxu0 0.0
        %1694 = vmatpush1.msra.mxu0 0.0
        %1695 = vmatprep.subr.mxu0 0.0
        %1696 = vmatpush1.msra.mxu0 0.0
        %1697 = vmatprep.subr.mxu0 0.0
        %1698 = vmatpush1.msra.mxu0 0.0
        %1699 = vmatprep.subr.mxu0 0.0
        %1700 = vmatpush1.msra.mxu0 0.0
        %1701 = vmatprep.subr.mxu0 0.0
        %1702 = vmatpush1.msra.mxu0 0.0
        %1703 = vmatprep.subr.mxu0 0.0
        %1704 = vmatpush1.msra.mxu0 0.0
        %1705 = vmatprep.subr.mxu0 0.0
        %1706 = vmatpush1.msra.mxu0 0.0
        %1707 = vmatprep.subr.mxu0 0.0
        %1708 = vmatpush1.msra.mxu0 0.0
        %1709 = vmatprep.subr.mxu0 0.0
        %1710 = vmatpush1.msra.mxu0 0.0
        %1711 = vmatprep.subr.mxu0 0.0
        %1712 = vmatpush1.msra.mxu0 0.0
        %1713 = vmatprep.subr.mxu0 0.0
        %1714 = vmatpush1.msra.mxu0 0.0
        %1715 = vmatprep.subr.mxu0 0.0
        %1716 = vmatpush1.msra.mxu0 0.0
        %1717 = vmatprep.subr.mxu0 0.0
        %1718 = vmatpush1.msra.mxu0 0.0
        %1719 = vmatprep.mubr.f32.mxu0 0.0
        %v1720 = vand.u32 %v1499, 4294901760
        %v1721 = vsub.f32 %v1499, %v1720
        %1722 = vmatmul.mubr.f32.gmra.mrb[0].mxu0 %v1721
        %v1723 = vpop.f32.mrb[0].mxu0
        %v1724 = vadd.f32 %v1650, %v1723
        %v1725 = vpop.f32.mrb[0].mxu0
        %1726 = vdwg.mxu0
        %1727 = vmatprep.subr.mxu0 0.0
        %v1728 = vand.u32 %v1496, 4294901760
        %1729 = vmatpush1.msra.mxu0 %v1728
        %1730 = vmatprep.subr.mxu0 0.0
        %1731 = vmatpush1.msra.mxu0 0.0
        %1732 = vmatprep.subr.mxu0 0.0
        %1733 = vmatpush1.msra.mxu0 0.0
        %1734 = vmatprep.subr.mxu0 0.0
        %1735 = vmatpush1.msra.mxu0 0.0
        %1736 = vmatprep.subr.mxu0 0.0
        %1737 = vmatpush1.msra.mxu0 0.0
        %1738 = vmatprep.subr.mxu0 0.0
        %1739 = vmatpush1.msra.mxu0 0.0
        %1740 = vmatprep.subr.mxu0 0.0
        %1741 = vmatpush1.msra.mxu0 0.0
        %1742 = vmatprep.subr.mxu0 0.0
        %1743 = vmatpush1.msra.mxu0 0.0
        %1744 = vmatprep.subr.mxu0 0.0
        %1745 = vmatpush1.msra.mxu0 0.0
        %1746 = vmatprep.subr.mxu0 0.0
        %1747 = vmatpush1.msra.mxu0 0.0
        %1748 = vmatprep.subr.mxu0 0.0
        %1749 = vmatpush1.msra.mxu0 0.0
        %1750 = vmatprep.subr.mxu0 0.0
        %1751 = vmatpush1.msra.mxu0 0.0
        %1752 = vmatprep.subr.mxu0 0.0
        %1753 = vmatpush1.msra.mxu0 0.0
        %1754 = vmatprep.subr.mxu0 0.0
        %1755 = vmatpush1.msra.mxu0 0.0
        %1756 = vmatprep.subr.mxu0 0.0
        %1757 = vmatpush1.msra.mxu0 0.0
        %1758 = vmatprep.subr.mxu0 0.0
        %1759 = vmatpush1.msra.mxu0 0.0
        %1760 = vmatprep.subr.mxu0 0.0
        %1761 = vmatpush1.msra.mxu0 0.0
        %1762 = vmatprep.subr.mxu0 0.0
        %1763 = vmatpush1.msra.mxu0 0.0
        %1764 = vmatprep.subr.mxu0 0.0
        %1765 = vmatpush1.msra.mxu0 0.0
        %1766 = vmatprep.subr.mxu0 0.0
        %1767 = vmatpush1.msra.mxu0 0.0
        %1768 = vmatprep.subr.mxu0 0.0
        %1769 = vmatpush1.msra.mxu0 0.0
        %1770 = vmatprep.subr.mxu0 0.0
        %1771 = vmatpush1.msra.mxu0 0.0
        %1772 = vmatprep.subr.mxu0 0.0
        %1773 = vmatpush1.msra.mxu0 0.0
        %1774 = vmatprep.subr.mxu0 0.0
        %1775 = vmatpush1.msra.mxu0 0.0
        %1776 = vmatprep.subr.mxu0 0.0
        %1777 = vmatpush1.msra.mxu0 0.0
        %1778 = vmatprep.subr.mxu0 0.0
        %1779 = vmatpush1.msra.mxu0 0.0
        %1780 = vmatprep.subr.mxu0 0.0
        %1781 = vmatpush1.msra.mxu0 0.0
        %1782 = vmatprep.subr.mxu0 0.0
        %1783 = vmatpush1.msra.mxu0 0.0
        %1784 = vmatprep.subr.mxu0 0.0
        %1785 = vmatpush1.msra.mxu0 0.0
        %1786 = vmatprep.subr.mxu0 0.0
        %1787 = vmatpush1.msra.mxu0 0.0
        %1788 = vmatprep.subr.mxu0 0.0
        %1789 = vmatpush1.msra.mxu0 0.0
        %1790 = vmatprep.subr.mxu0 0.0
        %1791 = vmatpush1.msra.mxu0 0.0
        %1792 = vmatprep.mubr.f32.mxu0 0.0
        %v1793 = vand.u32 %v1499, 4294901760
        %v1794 = vsub.f32 %v1499, %v1793
        %v1795 = vand.u32 %v1794, 4294901760
        %1796 = vmatmul.mubr.f32.gmra.mrb[0].mxu0 %v1795
        %v1797 = vpop.f32.mrb[0].mxu0
        %v1798 = vadd.f32 %v1724, %v1797
        %v1799 = vpop.f32.mrb[0].mxu0
        %1800 = vdwg.mxu0
        %1801 = vmatprep.subr.mxu0 0.0
        %v1802 = vand.u32 %v1496, 4294901760
        %v1803 = vsub.f32 %v1496, %v1802
        %v1804 = vand.u32 %v1803, 4294901760
        %1805 = vmatpush1.msra.mxu0 %v1804
        %1806 = vmatprep.subr.mxu0 0.0
        %1807 = vmatpush1.msra.mxu0 0.0
        %1808 = vmatprep.subr.mxu0 0.0
        %1809 = vmatpush1.msra.mxu0 0.0
        %1810 = vmatprep.subr.mxu0 0.0
        %1811 = vmatpush1.msra.mxu0 0.0
        %1812 = vmatprep.subr.mxu0 0.0
        %1813 = vmatpush1.msra.mxu0 0.0
        %1814 = vmatprep.subr.mxu0 0.0
        %1815 = vmatpush1.msra.mxu0 0.0
        %1816 = vmatprep.subr.mxu0 0.0
        %1817 = vmatpush1.msra.mxu0 0.0
        %1818 = vmatprep.subr.mxu0 0.0
        %1819 = vmatpush1.msra.mxu0 0.0
        %1820 = vmatprep.subr.mxu0 0.0
        %1821 = vmatpush1.msra.mxu0 0.0
        %1822 = vmatprep.subr.mxu0 0.0
        %1823 = vmatpush1.msra.mxu0 0.0
        %1824 = vmatprep.subr.mxu0 0.0
        %1825 = vmatpush1.msra.mxu0 0.0
        %1826 = vmatprep.subr.mxu0 0.0
        %1827 = vmatpush1.msra.mxu0 0.0
        %1828 = vmatprep.subr.mxu0 0.0
        %1829 = vmatpush1.msra.mxu0 0.0
        %1830 = vmatprep.subr.mxu0 0.0
        %1831 = vmatpush1.msra.mxu0 0.0
        %1832 = vmatprep.subr.mxu0 0.0
        %1833 = vmatpush1.msra.mxu0 0.0
        %1834 = vmatprep.subr.mxu0 0.0
        %1835 = vmatpush1.msra.mxu0 0.0
        %1836 = vmatprep.subr.mxu0 0.0
        %1837 = vmatpush1.msra.mxu0 0.0
        %1838 = vmatprep.subr.mxu0 0.0
        %1839 = vmatpush1.msra.mxu0 0.0
        %1840 = vmatprep.subr.mxu0 0.0
        %1841 = vmatpush1.msra.mxu0 0.0
        %1842 = vmatprep.subr.mxu0 0.0
        %1843 = vmatpush1.msra.mxu0 0.0
        %1844 = vmatprep.subr.mxu0 0.0
        %1845 = vmatpush1.msra.mxu0 0.0
        %1846 = vmatprep.subr.mxu0 0.0
        %1847 = vmatpush1.msra.mxu0 0.0
        %1848 = vmatprep.subr.mxu0 0.0
        %1849 = vmatpush1.msra.mxu0 0.0
        %1850 = vmatprep.subr.mxu0 0.0
        %1851 = vmatpush1.msra.mxu0 0.0
        %1852 = vmatprep.subr.mxu0 0.0
        %1853 = vmatpush1.msra.mxu0 0.0
        %1854 = vmatprep.subr.mxu0 0.0
        %1855 = vmatpush1.msra.mxu0 0.0
        %1856 = vmatprep.subr.mxu0 0.0
        %1857 = vmatpush1.msra.mxu0 0.0
        %1858 = vmatprep.subr.mxu0 0.0
        %1859 = vmatpush1.msra.mxu0 0.0
        %1860 = vmatprep.subr.mxu0 0.0
        %1861 = vmatpush1.msra.mxu0 0.0
        %1862 = vmatprep.subr.mxu0 0.0
        %1863 = vmatpush1.msra.mxu0 0.0
        %1864 = vmatprep.subr.mxu0 0.0
        %1865 = vmatpush1.msra.mxu0 0.0
        %1866 = vmatprep.subr.mxu0 0.0
        %1867 = vmatpush1.msra.mxu0 0.0
        %1868 = vmatprep.mubr.f32.mxu0 0.0
        %v1869 = vand.u32 %v1499, 4294901760
        %1870 = vmatmul.mubr.f32.gmra.mrb[0].mxu0 %v1869
        %v1871 = vpop.f32.mrb[0].mxu0
        %v1872 = vadd.f32 %v1798, %v1871
        %v1873 = vpop.f32.mrb[0].mxu0
        %1874 = vdwg.mxu0
        %1875 = vmatprep.subr.mxu0 0.0
        %v1876 = vand.u32 %v1496, 4294901760
        %1877 = vmatpush1.msra.mxu0 %v1876
        %1878 = vmatprep.subr.mxu0 0.0
        %1879 = vmatpush1.msra.mxu0 0.0
        %1880 = vmatprep.subr.mxu0 0.0
        %1881 = vmatpush1.msra.mxu0 0.0
        %1882 = vmatprep.subr.mxu0 0.0
        %1883 = vmatpush1.msra.mxu0 0.0
        %1884 = vmatprep.subr.mxu0 0.0
        %1885 = vmatpush1.msra.mxu0 0.0
        %1886 = vmatprep.subr.mxu0 0.0
        %1887 = vmatpush1.msra.mxu0 0.0
        %1888 = vmatprep.subr.mxu0 0.0
        %1889 = vmatpush1.msra.mxu0 0.0
        %1890 = vmatprep.subr.mxu0 0.0
        %1891 = vmatpush1.msra.mxu0 0.0
        %1892 = vmatprep.subr.mxu0 0.0
        %1893 = vmatpush1.msra.mxu0 0.0
        %1894 = vmatprep.subr.mxu0 0.0
        %1895 = vmatpush1.msra.mxu0 0.0
        %1896 = vmatprep.subr.mxu0 0.0
        %1897 = vmatpush1.msra.mxu0 0.0
        %1898 = vmatprep.subr.mxu0 0.0
        %1899 = vmatpush1.msra.mxu0 0.0
        %1900 = vmatprep.subr.mxu0 0.0
        %1901 = vmatpush1.msra.mxu0 0.0
        %1902 = vmatprep.subr.mxu0 0.0
        %1903 = vmatpush1.msra.mxu0 0.0
        %1904 = vmatprep.subr.mxu0 0.0
        %1905 = vmatpush1.msra.mxu0 0.0
        %1906 = vmatprep.subr.mxu0 0.0
        %1907 = vmatpush1.msra.mxu0 0.0
        %1908 = vmatprep.subr.mxu0 0.0
        %1909 = vmatpush1.msra.mxu0 0.0
        %1910 = vmatprep.subr.mxu0 0.0
        %1911 = vmatpush1.msra.mxu0 0.0
        %1912 = vmatprep.subr.mxu0 0.0
        %1913 = vmatpush1.msra.mxu0 0.0
        %1914 = vmatprep.subr.mxu0 0.0
        %1915 = vmatpush1.msra.mxu0 0.0
        %1916 = vmatprep.subr.mxu0 0.0
        %1917 = vmatpush1.msra.mxu0 0.0
        %1918 = vmatprep.subr.mxu0 0.0
        %1919 = vmatpush1.msra.mxu0 0.0
        %1920 = vmatprep.subr.mxu0 0.0
        %1921 = vmatpush1.msra.mxu0 0.0
        %1922 = vmatprep.subr.mxu0 0.0
        %1923 = vmatpush1.msra.mxu0 0.0
        %1924 = vmatprep.subr.mxu0 0.0
        %1925 = vmatpush1.msra.mxu0 0.0
        %1926 = vmatprep.subr.mxu0 0.0
        %1927 = vmatpush1.msra.mxu0 0.0
        %1928 = vmatprep.subr.mxu0 0.0
        %1929 = vmatpush1.msra.mxu0 0.0
        %1930 = vmatprep.subr.mxu0 0.0
        %1931 = vmatpush1.msra.mxu0 0.0
        %1932 = vmatprep.subr.mxu0 0.0
        %1933 = vmatpush1.msra.mxu0 0.0
        %1934 = vmatprep.subr.mxu0 0.0
        %1935 = vmatpush1.msra.mxu0 0.0
        %1936 = vmatprep.subr.mxu0 0.0
        %1937 = vmatpush1.msra.mxu0 0.0
        %1938 = vmatprep.subr.mxu0 0.0
        %1939 = vmatpush1.msra.mxu0 0.0
        %1940 = vmatprep.mubr.f32.mxu0 0.0
        %v1941 = vand.u32 %v1499, 4294901760
        %1942 = vmatmul.mubr.f32.gmra.mrb[0].mxu0 %v1941
        %v1943 = vpop.f32.mrb[0].mxu0
        %v1944 = vadd.f32 %v1872, %v1943
        %v1945 = vpop.f32.mrb[0].mxu0
        %1946 = vdwg.mxu0
        %v1948 = vsel %vm1497, %v1495, 0
        %1950 = vmatprep.subr.mxu0 0.0
        %v1951 = vand.u32 %v1496, 4294901760
        %1952 = vmatpush1.msra.mxu0 %v1951
        %1953 = vmatprep.subr.mxu0 0.0
        %1954 = vmatpush1.msra.mxu0 0.0
        %1955 = vmatprep.subr.mxu0 0.0
        %1956 = vmatpush1.msra.mxu0 0.0
        %1957 = vmatprep.subr.mxu0 0.0
        %1958 = vmatpush1.msra.mxu0 0.0
        %1959 = vmatprep.subr.mxu0 0.0
        %1960 = vmatpush1.msra.mxu0 0.0
        %1961 = vmatprep.subr.mxu0 0.0
        %1962 = vmatpush1.msra.mxu0 0.0
        %1963 = vmatprep.subr.mxu0 0.0
        %1964 = vmatpush1.msra.mxu0 0.0
        %1965 = vmatprep.subr.mxu0 0.0
        %1966 = vmatpush1.msra.mxu0 0.0
        %1967 = vmatprep.subr.mxu0 0.0
        %1968 = vmatpush1.msra.mxu0 0.0
        %1969 = vmatprep.subr.mxu0 0.0
        %1970 = vmatpush1.msra.mxu0 0.0
        %1971 = vmatprep.subr.mxu0 0.0
        %1972 = vmatpush1.msra.mxu0 0.0
        %1973 = vmatprep.subr.mxu0 0.0
        %1974 = vmatpush1.msra.mxu0 0.0
        %1975 = vmatprep.subr.mxu0 0.0
        %1976 = vmatpush1.msra.mxu0 0.0
        %1977 = vmatprep.subr.mxu0 0.0
        %1978 = vmatpush1.msra.mxu0 0.0
        %1979 = vmatprep.subr.mxu0 0.0
        %1980 = vmatpush1.msra.mxu0 0.0
        %1981 = vmatprep.subr.mxu0 0.0
        %1982 = vmatpush1.msra.mxu0 0.0
        %1983 = vmatprep.subr.mxu0 0.0
        %1984 = vmatpush1.msra.mxu0 0.0
        %1985 = vmatprep.subr.mxu0 0.0
        %1986 = vmatpush1.msra.mxu0 0.0
        %1987 = vmatprep.subr.mxu0 0.0
        %1988 = vmatpush1.msra.mxu0 0.0
        %1989 = vmatprep.subr.mxu0 0.0
        %1990 = vmatpush1.msra.mxu0 0.0
        %1991 = vmatprep.subr.mxu0 0.0
        %1992 = vmatpush1.msra.mxu0 0.0
        %1993 = vmatprep.subr.mxu0 0.0
        %1994 = vmatpush1.msra.mxu0 0.0
        %1995 = vmatprep.subr.mxu0 0.0
        %1996 = vmatpush1.msra.mxu0 0.0
        %1997 = vmatprep.subr.mxu0 0.0
        %1998 = vmatpush1.msra.mxu0 0.0
        %1999 = vmatprep.subr.mxu0 0.0
        %2000 = vmatpush1.msra.mxu0 0.0
        %2001 = vmatprep.subr.mxu0 0.0
        %2002 = vmatpush1.msra.mxu0 0.0
        %2003 = vmatprep.subr.mxu0 0.0
        %2004 = vmatpush1.msra.mxu0 0.0
        %2005 = vmatprep.subr.mxu0 0.0
        %2006 = vmatpush1.msra.mxu0 0.0
        %2007 = vmatprep.subr.mxu0 0.0
        %2008 = vmatpush1.msra.mxu0 0.0
        %2009 = vmatprep.subr.mxu0 0.0
        %2010 = vmatpush1.msra.mxu0 0.0
        %2011 = vmatprep.subr.mxu0 0.0
        %2012 = vmatpush1.msra.mxu0 0.0
        %2013 = vmatprep.subr.mxu0 0.0
        %2014 = vmatpush1.msra.mxu0 0.0
        %2015 = vmatprep.mubr.f32.mxu0 0.0
        %v2016 = vand.u32 %v1948, 4294901760
        %v2017 = vsub.f32 %v1948, %v2016
        %v2018 = vand.u32 %v2017, 4294901760
        %v2019 = vsub.f32 %v2017, %v2018
        %v2020 = vand.u32 %v2019, 4294901760
        %2021 = vmatmul.mubr.f32.gmra.mrb[0].mxu0 %v2020
        %v2022 = vpop.f32.mrb[0].mxu0
        %v2023 = vadd.f32 0.0, %v2022
        %v2024 = vpop.f32.mrb[0].mxu0
        %2025 = vdwg.mxu0
        %2026 = vmatprep.subr.mxu0 0.0
        %v2027 = vand.u32 %v1496, 4294901760
        %v2028 = vsub.f32 %v1496, %v2027
        %v2029 = vand.u32 %v2028, 4294901760
        %v2030 = vsub.f32 %v2028, %v2029
        %v2031 = vand.u32 %v2030, 4294901760
        %2032 = vmatpush1.msra.mxu0 %v2031
        %2033 = vmatprep.subr.mxu0 0.0
        %2034 = vmatpush1.msra.mxu0 0.0
        %2035 = vmatprep.subr.mxu0 0.0
        %2036 = vmatpush1.msra.mxu0 0.0
        %2037 = vmatprep.subr.mxu0 0.0
        %2038 = vmatpush1.msra.mxu0 0.0
        %2039 = vmatprep.subr.mxu0 0.0
        %2040 = vmatpush1.msra.mxu0 0.0
        %2041 = vmatprep.subr.mxu0 0.0
        %2042 = vmatpush1.msra.mxu0 0.0
        %2043 = vmatprep.subr.mxu0 0.0
        %2044 = vmatpush1.msra.mxu0 0.0
        %2045 = vmatprep.subr.mxu0 0.0
        %2046 = vmatpush1.msra.mxu0 0.0
        %2047 = vmatprep.subr.mxu0 0.0
        %2048 = vmatpush1.msra.mxu0 0.0
        %2049 = vmatprep.subr.mxu0 0.0
        %2050 = vmatpush1.msra.mxu0 0.0
        %2051 = vmatprep.subr.mxu0 0.0
        %2052 = vmatpush1.msra.mxu0 0.0
        %2053 = vmatprep.subr.mxu0 0.0
        %2054 = vmatpush1.msra.mxu0 0.0
        %2055 = vmatprep.subr.mxu0 0.0
        %2056 = vmatpush1.msra.mxu0 0.0
        %2057 = vmatprep.subr.mxu0 0.0
        %2058 = vmatpush1.msra.mxu0 0.0
        %2059 = vmatprep.subr.mxu0 0.0
        %2060 = vmatpush1.msra.mxu0 0.0
        %2061 = vmatprep.subr.mxu0 0.0
        %2062 = vmatpush1.msra.mxu0 0.0
        %2063 = vmatprep.subr.mxu0 0.0
        %2064 = vmatpush1.msra.mxu0 0.0
        %2065 = vmatprep.subr.mxu0 0.0
        %2066 = vmatpush1.msra.mxu0 0.0
        %2067 = vmatprep.subr.mxu0 0.0
        %2068 = vmatpush1.msra.mxu0 0.0
        %2069 = vmatprep.subr.mxu0 0.0
        %2070 = vmatpush1.msra.mxu0 0.0
        %2071 = vmatprep.subr.mxu0 0.0
        %2072 = vmatpush1.msra.mxu0 0.0
        %2073 = vmatprep.subr.mxu0 0.0
        %2074 = vmatpush1.msra.mxu0 0.0
        %2075 = vmatprep.subr.mxu0 0.0
        %2076 = vmatpush1.msra.mxu0 0.0
        %2077 = vmatprep.subr.mxu0 0.0
        %2078 = vmatpush1.msra.mxu0 0.0
        %2079 = vmatprep.subr.mxu0 0.0
        %2080 = vmatpush1.msra.mxu0 0.0
        %2081 = vmatprep.subr.mxu0 0.0
        %2082 = vmatpush1.msra.mxu0 0.0
        %2083 = vmatprep.subr.mxu0 0.0
        %2084 = vmatpush1.msra.mxu0 0.0
        %2085 = vmatprep.subr.mxu0 0.0
        %2086 = vmatpush1.msra.mxu0 0.0
        %2087 = vmatprep.subr.mxu0 0.0
        %2088 = vmatpush1.msra.mxu0 0.0
        %2089 = vmatprep.subr.mxu0 0.0
        %2090 = vmatpush1.msra.mxu0 0.0
        %2091 = vmatprep.subr.mxu0 0.0
        %2092 = vmatpush1.msra.mxu0 0.0
        %2093 = vmatprep.subr.mxu0 0.0
        %2094 = vmatpush1.msra.mxu0 0.0
        %2095 = vmatprep.mubr.f32.mxu0 0.0
        %v2096 = vand.u32 %v1948, 4294901760
        %2097 = vmatmul.mubr.f32.gmra.mrb[0].mxu0 %v2096
        %v2098 = vpop.f32.mrb[0].mxu0
        %v2099 = vadd.f32 %v2023, %v2098
        %v2100 = vpop.f32.mrb[0].mxu0
        %2101 = vdwg.mxu0
        %2102 = vmatprep.subr.mxu0 0.0
        %v2103 = vand.u32 %v1496, 4294901760
        %v2104 = vsub.f32 %v1496, %v2103
        %2105 = vmatpush1.msra.mxu0 %v2104
        %2106 = vmatprep.subr.mxu0 0.0
        %2107 = vmatpush1.msra.mxu0 0.0
        %2108 = vmatprep.subr.mxu0 0.0
        %2109 = vmatpush1.msra.mxu0 0.0
        %2110 = vmatprep.subr.mxu0 0.0
        %2111 = vmatpush1.msra.mxu0 0.0
        %2112 = vmatprep.subr.mxu0 0.0
        %2113 = vmatpush1.msra.mxu0 0.0
        %2114 = vmatprep.subr.mxu0 0.0
        %2115 = vmatpush1.msra.mxu0 0.0
        %2116 = vmatprep.subr.mxu0 0.0
        %2117 = vmatpush1.msra.mxu0 0.0
        %2118 = vmatprep.subr.mxu0 0.0
        %2119 = vmatpush1.msra.mxu0 0.0
        %2120 = vmatprep.subr.mxu0 0.0
        %2121 = vmatpush1.msra.mxu0 0.0
        %2122 = vmatprep.subr.mxu0 0.0
        %2123 = vmatpush1.msra.mxu0 0.0
        %2124 = vmatprep.subr.mxu0 0.0
        %2125 = vmatpush1.msra.mxu0 0.0
        %2126 = vmatprep.subr.mxu0 0.0
        %2127 = vmatpush1.msra.mxu0 0.0
        %2128 = vmatprep.subr.mxu0 0.0
        %2129 = vmatpush1.msra.mxu0 0.0
        %2130 = vmatprep.subr.mxu0 0.0
        %2131 = vmatpush1.msra.mxu0 0.0
        %2132 = vmatprep.subr.mxu0 0.0
        %2133 = vmatpush1.msra.mxu0 0.0
        %2134 = vmatprep.subr.mxu0 0.0
        %2135 = vmatpush1.msra.mxu0 0.0
        %2136 = vmatprep.subr.mxu0 0.0
        %2137 = vmatpush1.msra.mxu0 0.0
        %2138 = vmatprep.subr.mxu0 0.0
        %2139 = vmatpush1.msra.mxu0 0.0
        %2140 = vmatprep.subr.mxu0 0.0
        %2141 = vmatpush1.msra.mxu0 0.0
        %2142 = vmatprep.subr.mxu0 0.0
        %2143 = vmatpush1.msra.mxu0 0.0
        %2144 = vmatprep.subr.mxu0 0.0
        %2145 = vmatpush1.msra.mxu0 0.0
        %2146 = vmatprep.subr.mxu0 0.0
        %2147 = vmatpush1.msra.mxu0 0.0
        %2148 = vmatprep.subr.mxu0 0.0
        %2149 = vmatpush1.msra.mxu0 0.0
        %2150 = vmatprep.subr.mxu0 0.0
        %2151 = vmatpush1.msra.mxu0 0.0
        %2152 = vmatprep.subr.mxu0 0.0
        %2153 = vmatpush1.msra.mxu0 0.0
        %2154 = vmatprep.subr.mxu0 0.0
        %2155 = vmatpush1.msra.mxu0 0.0
        %2156 = vmatprep.subr.mxu0 0.0
        %2157 = vmatpush1.msra.mxu0 0.0
        %2158 = vmatprep.subr.mxu0 0.0
        %2159 = vmatpush1.msra.mxu0 0.0
        %2160 = vmatprep.subr.mxu0 0.0
        %2161 = vmatpush1.msra.mxu0 0.0
        %2162 = vmatprep.subr.mxu0 0.0
        %2163 = vmatpush1.msra.mxu0 0.0
        %2164 = vmatprep.subr.mxu0 0.0
        %2165 = vmatpush1.msra.mxu0 0.0
        %2166 = vmatprep.subr.mxu0 0.0
        %2167 = vmatpush1.msra.mxu0 0.0
        %2168 = vmatprep.mubr.f32.mxu0 0.0
        %v2169 = vand.u32 %v1948, 4294901760
        %v2170 = vsub.f32 %v1948, %v2169
        %2171 = vmatmul.mubr.f32.gmra.mrb[0].mxu0 %v2170
        %v2172 = vpop.f32.mrb[0].mxu0
        %v2173 = vadd.f32 %v2099, %v2172
        %v2174 = vpop.f32.mrb[0].mxu0
        %2175 = vdwg.mxu0
        %2176 = vmatprep.subr.mxu0 0.0
        %v2177 = vand.u32 %v1496, 4294901760
        %2178 = vmatpush1.msra.mxu0 %v2177
        %2179 = vmatprep.subr.mxu0 0.0
        %2180 = vmatpush1.msra.mxu0 0.0
        %2181 = vmatprep.subr.mxu0 0.0
        %2182 = vmatpush1.msra.mxu0 0.0
        %2183 = vmatprep.subr.mxu0 0.0
        %2184 = vmatpush1.msra.mxu0 0.0
        %2185 = vmatprep.subr.mxu0 0.0
        %2186 = vmatpush1.msra.mxu0 0.0
        %2187 = vmatprep.subr.mxu0 0.0
        %2188 = vmatpush1.msra.mxu0 0.0
        %2189 = vmatprep.subr.mxu0 0.0
        %2190 = vmatpush1.msra.mxu0 0.0
        %2191 = vmatprep.subr.mxu0 0.0
        %2192 = vmatpush1.msra.mxu0 0.0
        %2193 = vmatprep.subr.mxu0 0.0
        %2194 = vmatpush1.msra.mxu0 0.0
        %2195 = vmatprep.subr.mxu0 0.0
        %2196 = vmatpush1.msra.mxu0 0.0
        %2197 = vmatprep.subr.mxu0 0.0
        %2198 = vmatpush1.msra.mxu0 0.0
        %2199 = vmatprep.subr.mxu0 0.0
        %2200 = vmatpush1.msra.mxu0 0.0
        %2201 = vmatprep.subr.mxu0 0.0
        %2202 = vmatpush1.msra.mxu0 0.0
        %2203 = vmatprep.subr.mxu0 0.0
        %2204 = vmatpush1.msra.mxu0 0.0
        %2205 = vmatprep.subr.mxu0 0.0
        %2206 = vmatpush1.msra.mxu0 0.0
        %2207 = vmatprep.subr.mxu0 0.0
        %2208 = vmatpush1.msra.mxu0 0.0
        %2209 = vmatprep.subr.mxu0 0.0
        %2210 = vmatpush1.msra.mxu0 0.0
        %2211 = vmatprep.subr.mxu0 0.0
        %2212 = vmatpush1.msra.mxu0 0.0
        %2213 = vmatprep.subr.mxu0 0.0
        %2214 = vmatpush1.msra.mxu0 0.0
        %2215 = vmatprep.subr.mxu0 0.0
        %2216 = vmatpush1.msra.mxu0 0.0
        %2217 = vmatprep.subr.mxu0 0.0
        %2218 = vmatpush1.msra.mxu0 0.0
        %2219 = vmatprep.subr.mxu0 0.0
        %2220 = vmatpush1.msra.mxu0 0.0
        %2221 = vmatprep.subr.mxu0 0.0
        %2222 = vmatpush1.msra.mxu0 0.0
        %2223 = vmatprep.subr.mxu0 0.0
        %2224 = vmatpush1.msra.mxu0 0.0
        %2225 = vmatprep.subr.mxu0 0.0
        %2226 = vmatpush1.msra.mxu0 0.0
        %2227 = vmatprep.subr.mxu0 0.0
        %2228 = vmatpush1.msra.mxu0 0.0
        %2229 = vmatprep.subr.mxu0 0.0
        %2230 = vmatpush1.msra.mxu0 0.0
        %2231 = vmatprep.subr.mxu0 0.0
        %2232 = vmatpush1.msra.mxu0 0.0
        %2233 = vmatprep.subr.mxu0 0.0
        %2234 = vmatpush1.msra.mxu0 0.0
        %2235 = vmatprep.subr.mxu0 0.0
        %2236 = vmatpush1.msra.mxu0 0.0
        %2237 = vmatprep.subr.mxu0 0.0
        %2238 = vmatpush1.msra.mxu0 0.0
        %2239 = vmatprep.subr.mxu0 0.0
        %2240 = vmatpush1.msra.mxu0 0.0
        %2241 = vmatprep.mubr.f32.mxu0 0.0
        %v2242 = vand.u32 %v1948, 4294901760
        %v2243 = vsub.f32 %v1948, %v2242
        %v2244 = vand.u32 %v2243, 4294901760
        %2245 = vmatmul.mubr.f32.gmra.mrb[0].mxu0 %v2244
        %v2246 = vpop.f32.mrb[0].mxu0
        %v2247 = vadd.f32 %v2173, %v2246
        %v2248 = vpop.f32.mrb[0].mxu0
        %2249 = vdwg.mxu0
        %2250 = vmatprep.subr.mxu0 0.0
        %v2251 = vand.u32 %v1496, 4294901760
        %v2252 = vsub.f32 %v1496, %v2251
        %v2253 = vand.u32 %v2252, 4294901760
        %2254 = vmatpush1.msra.mxu0 %v2253
        %2255 = vmatprep.subr.mxu0 0.0
        %2256 = vmatpush1.msra.mxu0 0.0
        %2257 = vmatprep.subr.mxu0 0.0
        %2258 = vmatpush1.msra.mxu0 0.0
        %2259 = vmatprep.subr.mxu0 0.0
        %2260 = vmatpush1.msra.mxu0 0.0
        %2261 = vmatprep.subr.mxu0 0.0
        %2262 = vmatpush1.msra.mxu0 0.0
        %2263 = vmatprep.subr.mxu0 0.0
        %2264 = vmatpush1.msra.mxu0 0.0
        %2265 = vmatprep.subr.mxu0 0.0
        %2266 = vmatpush1.msra.mxu0 0.0
        %2267 = vmatprep.subr.mxu0 0.0
        %2268 = vmatpush1.msra.mxu0 0.0
        %2269 = vmatprep.subr.mxu0 0.0
        %2270 = vmatpush1.msra.mxu0 0.0
        %2271 = vmatprep.subr.mxu0 0.0
        %2272 = vmatpush1.msra.mxu0 0.0
        %2273 = vmatprep.subr.mxu0 0.0
        %2274 = vmatpush1.msra.mxu0 0.0
        %2275 = vmatprep.subr.mxu0 0.0
        %2276 = vmatpush1.msra.mxu0 0.0
        %2277 = vmatprep.subr.mxu0 0.0
        %2278 = vmatpush1.msra.mxu0 0.0
        %2279 = vmatprep.subr.mxu0 0.0
        %2280 = vmatpush1.msra.mxu0 0.0
        %2281 = vmatprep.subr.mxu0 0.0
        %2282 = vmatpush1.msra.mxu0 0.0
        %2283 = vmatprep.subr.mxu0 0.0
        %2284 = vmatpush1.msra.mxu0 0.0
        %2285 = vmatprep.subr.mxu0 0.0
        %2286 = vmatpush1.msra.mxu0 0.0
        %2287 = vmatprep.subr.mxu0 0.0
        %2288 = vmatpush1.msra.mxu0 0.0
        %2289 = vmatprep.subr.mxu0 0.0
        %2290 = vmatpush1.msra.mxu0 0.0
        %2291 = vmatprep.subr.mxu0 0.0
        %2292 = vmatpush1.msra.mxu0 0.0
        %2293 = vmatprep.subr.mxu0 0.0
        %2294 = vmatpush1.msra.mxu0 0.0
        %2295 = vmatprep.subr.mxu0 0.0
        %2296 = vmatpush1.msra.mxu0 0.0
        %2297 = vmatprep.subr.mxu0 0.0
        %2298 = vmatpush1.msra.mxu0 0.0
        %2299 = vmatprep.subr.mxu0 0.0
        %2300 = vmatpush1.msra.mxu0 0.0
        %2301 = vmatprep.subr.mxu0 0.0
        %2302 = vmatpush1.msra.mxu0 0.0
        %2303 = vmatprep.subr.mxu0 0.0
        %2304 = vmatpush1.msra.mxu0 0.0
        %2305 = vmatprep.subr.mxu0 0.0
        %2306 = vmatpush1.msra.mxu0 0.0
        %2307 = vmatprep.subr.mxu0 0.0
        %2308 = vmatpush1.msra.mxu0 0.0
        %2309 = vmatprep.subr.mxu0 0.0
        %2310 = vmatpush1.msra.mxu0 0.0
        %2311 = vmatprep.subr.mxu0 0.0
        %2312 = vmatpush1.msra.mxu0 0.0
        %2313 = vmatprep.subr.mxu0 0.0
        %2314 = vmatpush1.msra.mxu0 0.0
        %2315 = vmatprep.subr.mxu0 0.0
        %2316 = vmatpush1.msra.mxu0 0.0
        %2317 = vmatprep.mubr.f32.mxu0 0.0
        %v2318 = vand.u32 %v1948, 4294901760
        %2319 = vmatmul.mubr.f32.gmra.mrb[0].mxu0 %v2318
        %v2320 = vpop.f32.mrb[0].mxu0
        %v2321 = vadd.f32 %v2247, %v2320
        %v2322 = vpop.f32.mrb[0].mxu0
        %2323 = vdwg.mxu0
        %2324 = vmatprep.subr.mxu0 0.0
        %v2325 = vand.u32 %v1496, 4294901760
        %2326 = vmatpush1.msra.mxu0 %v2325
        %2327 = vmatprep.subr.mxu0 0.0
        %2328 = vmatpush1.msra.mxu0 0.0
        %2329 = vmatprep.subr.mxu0 0.0
        %2330 = vmatpush1.msra.mxu0 0.0
        %2331 = vmatprep.subr.mxu0 0.0
        %2332 = vmatpush1.msra.mxu0 0.0
        %2333 = vmatprep.subr.mxu0 0.0
        %2334 = vmatpush1.msra.mxu0 0.0
        %2335 = vmatprep.subr.mxu0 0.0
        %2336 = vmatpush1.msra.mxu0 0.0
        %2337 = vmatprep.subr.mxu0 0.0
        %2338 = vmatpush1.msra.mxu0 0.0
        %2339 = vmatprep.subr.mxu0 0.0
        %2340 = vmatpush1.msra.mxu0 0.0
        %2341 = vmatprep.subr.mxu0 0.0
        %2342 = vmatpush1.msra.mxu0 0.0
        %2343 = vmatprep.subr.mxu0 0.0
        %2344 = vmatpush1.msra.mxu0 0.0
        %2345 = vmatprep.subr.mxu0 0.0
        %2346 = vmatpush1.msra.mxu0 0.0
        %2347 = vmatprep.subr.mxu0 0.0
        %2348 = vmatpush1.msra.mxu0 0.0
        %2349 = vmatprep.subr.mxu0 0.0
        %2350 = vmatpush1.msra.mxu0 0.0
        %2351 = vmatprep.subr.mxu0 0.0
        %2352 = vmatpush1.msra.mxu0 0.0
        %2353 = vmatprep.subr.mxu0 0.0
        %2354 = vmatpush1.msra.mxu0 0.0
        %2355 = vmatprep.subr.mxu0 0.0
        %2356 = vmatpush1.msra.mxu0 0.0
        %2357 = vmatprep.subr.mxu0 0.0
        %2358 = vmatpush1.msra.mxu0 0.0
        %2359 = vmatprep.subr.mxu0 0.0
        %2360 = vmatpush1.msra.mxu0 0.0
        %2361 = vmatprep.subr.mxu0 0.0
        %2362 = vmatpush1.msra.mxu0 0.0
        %2363 = vmatprep.subr.mxu0 0.0
        %2364 = vmatpush1.msra.mxu0 0.0
        %2365 = vmatprep.subr.mxu0 0.0
        %2366 = vmatpush1.msra.mxu0 0.0
        %2367 = vmatprep.subr.mxu0 0.0
        %2368 = vmatpush1.msra.mxu0 0.0
        %2369 = vmatprep.subr.mxu0 0.0
        %2370 = vmatpush1.msra.mxu0 0.0
        %2371 = vmatprep.subr.mxu0 0.0
        %2372 = vmatpush1.msra.mxu0 0.0
        %2373 = vmatprep.subr.mxu0 0.0
        %2374 = vmatpush1.msra.mxu0 0.0
        %2375 = vmatprep.subr.mxu0 0.0
        %2376 = vmatpush1.msra.mxu0 0.0
        %2377 = vmatprep.subr.mxu0 0.0
        %2378 = vmatpush1.msra.mxu0 0.0
        %2379 = vmatprep.subr.mxu0 0.0
        %2380 = vmatpush1.msra.mxu0 0.0
        %2381 = vmatprep.subr.mxu0 0.0
        %2382 = vmatpush1.msra.mxu0 0.0
        %2383 = vmatprep.subr.mxu0 0.0
        %2384 = vmatpush1.msra.mxu0 0.0
        %2385 = vmatprep.subr.mxu0 0.0
        %2386 = vmatpush1.msra.mxu0 0.0
        %2387 = vmatprep.subr.mxu0 0.0
        %2388 = vmatpush1.msra.mxu0 0.0
        %2389 = vmatprep.mubr.f32.mxu0 0.0
        %v2390 = vand.u32 %v1948, 4294901760
        %2391 = vmatmul.mubr.f32.gmra.mrb[0].mxu0 %v2390
        %v2392 = vpop.f32.mrb[0].mxu0
        %v2393 = vadd.f32 %v2321, %v2392
        %v2394 = vpop.f32.mrb[0].mxu0
        %2395 = vdwg.mxu0
        %v2396 = vlaneseq
        %v2397 = vshrl.u32 %v2396, 7
        %v2398 = vsub.s32 0, %v2397
        %v2399 = vrot.slane %v1944, %v2398
        %v2400 = vsub.f32 %v449, %v2399
        %v2401 = vsub.f32 %v450, %v2399
        %v2402 = vsub.f32 %v451, %v2399
        %v2403 = vsub.f32 %v452, %v2399
        %v2404 = vsub.f32 %v453, %v2399
        %v2405 = vsub.f32 %v454, %v2399
        %v2406 = vsub.f32 %v455, %v2399
        %v2407 = vsub.f32 %v456, %v2399
        %v2408 = vmul.f32 %v2393, %v457
        %v2409 = vlaneseq
        %v2410 = vshrl.u32 %v2409, 7
        %v2411 = vsub.s32 0, %v2410
        %v2412 = vrot.slane %v2408, %v2411
        %v2413 = vmul.f32 %v2400, %v2412
        %v2414 = vmul.f32 %v2401, %v2412
        %v2415 = vmul.f32 %v2402, %v2412
        %v2416 = vmul.f32 %v2403, %v2412
        %v2417 = vmul.f32 %v2404, %v2412
        %v2418 = vmul.f32 %v2405, %v2412
        %v2419 = vmul.f32 %v2406, %v2412
        %v2420 = vmul.f32 %v2407, %v2412
        %v2422 = vlaneseq
        %v2423 = vshrl.u32 %v2422, 7
        %v2424 = vsub.s32 0, %v2423
        %v2425 = vrot.slane %v458, %v2424
        %v2427 = vadd.f32 %v2413, %v2425
        %v2428 = vadd.f32 %v2414, %v2425
        %v2429 = vadd.f32 %v2415, %v2425
        %v2430 = vadd.f32 %v2416, %v2425
        %v2431 = vadd.f32 %v2417, %v2425
        %v2432 = vadd.f32 %v2418, %v2425
        %v2433 = vadd.f32 %v2419, %v2425
        %v2434 = vadd.f32 %v2420, %v2425
        %v2435 = vmax.f32 %v2427, 0.0
        %v2436 = vmax.f32 %v2428, 0.0
        %v2437 = vmax.f32 %v2429, 0.0
        %v2438 = vmax.f32 %v2430, 0.0
        %v2439 = vmax.f32 %v2431, 0.0
        %v2440 = vmax.f32 %v2432, 0.0
        %v2441 = vmax.f32 %v2433, 0.0
        %v2442 = vmax.f32 %v2434, 0.0
        %2443 = vst.msk [vmem:[#allocation2] sm:$0xff] %vm459, 0.0
        %vm2444 = vcmask 254976
        %2445 = vst.msk [vmem:[#allocation2 + $0x8] sm:$0x3] %vm2444, 0.0
        %2446 = vst.msk [vmem:[#allocation2 + $0x10] sm:$0xff] %vm459, 0.0
        %2447 = vst.msk [vmem:[#allocation2 + $0x18] sm:$0x3] %vm2444, 0.0
        %2448 = vst.msk [vmem:[#allocation2 + $0x20] sm:$0xff] %vm459, 0.0
        %2449 = vst.msk [vmem:[#allocation2 + $0x28] sm:$0x3] %vm2444, 0.0
        %2450 = vst.msk [vmem:[#allocation2 + $0x30] sm:$0xff] %vm459, 0.0
        %2451 = vst.msk [vmem:[#allocation2 + $0x38] sm:$0x3] %vm2444, 0.0
        %2452 = vst.msk [vmem:[#allocation2 + $0x40] sm:$0xff] %vm459, 0.0
        %2453 = vst.msk [vmem:[#allocation2 + $0x48] sm:$0x3] %vm2444, 0.0
        %2454 = vst.msk [vmem:[#allocation2 + $0x50] sm:$0xff] %vm459, 0.0
        %2455 = vst.msk [vmem:[#allocation2 + $0x58] sm:$0x3] %vm2444, 0.0
        %2456 = vst.msk [vmem:[#allocation2 + $0x60] sm:$0xff] %vm459, 0.0
        %2457 = vst.msk [vmem:[#allocation2 + $0x68] sm:$0x3] %vm2444, 0.0
        %2458 = vst.msk [vmem:[#allocation2 + $0x70] sm:$0xff] %vm459, 0.0
        %2459 = vst.msk [vmem:[#allocation2 + $0x78] sm:$0x3] %vm2444, 0.0
        %2460 = vst.msk [vmem:[#allocation2 + $0x80] sm:$0xff] %vm459, 0.0
        %2461 = vst.msk [vmem:[#allocation2 + $0x88] sm:$0x3] %vm2444, 0.0
        %2462 = vst.msk [vmem:[#allocation2 + $0x90] sm:$0xff] %vm459, 0.0
        %2463 = vst.msk [vmem:[#allocation2 + $0x98] sm:$0x3] %vm2444, 0.0
        %s2464 = scalar_lea.vmem [#allocation2], 16
        %2465 = vst.msk [vmem:[%s2464 + $0x1] sm:$0xff] %vm459, %v2435
        %2466 = vst.msk [vmem:[%s2464 + $0x11] sm:$0xff] %vm459, %v2436
        %2467 = vst.msk [vmem:[%s2464 + $0x21] sm:$0xff] %vm459, %v2437
        %2468 = vst.msk [vmem:[%s2464 + $0x31] sm:$0xff] %vm459, %v2438
        %2469 = vst.msk [vmem:[%s2464 + $0x41] sm:$0xff] %vm459, %v2439
        %2470 = vst.msk [vmem:[%s2464 + $0x51] sm:$0xff] %vm459, %v2440
        %2471 = vst.msk [vmem:[%s2464 + $0x61] sm:$0xff] %vm459, %v2441
        %2472 = vst.msk [vmem:[%s2464 + $0x71] sm:$0xff] %vm459, %v2442
        %v2473 = vld [vmem:[#allocation2] sm:$0xff]
        %v2474 = vld [vmem:[#allocation2 + $0x8] sm:$0x3]
        %v2475 = vld [vmem:[#allocation2 + $0x10] sm:$0xff]
        %v2476 = vld [vmem:[#allocation2 + $0x18] sm:$0x3]
        %v2477 = vld [vmem:[#allocation2 + $0x20] sm:$0xff]
        %v2478 = vld [vmem:[#allocation2 + $0x28] sm:$0x3]
        %v2479 = vld [vmem:[#allocation2 + $0x30] sm:$0xff]
        %v2480 = vld [vmem:[#allocation2 + $0x38] sm:$0x3]
        %v2481 = vld [vmem:[#allocation2 + $0x40] sm:$0xff]
        %v2482 = vld [vmem:[#allocation2 + $0x48] sm:$0x3]
        %v2483 = vld [vmem:[#allocation2 + $0x50] sm:$0xff]
        %v2484 = vld [vmem:[#allocation2 + $0x58] sm:$0x3]
        %v2485 = vld [vmem:[#allocation2 + $0x60] sm:$0xff]
        %v2486 = vld [vmem:[#allocation2 + $0x68] sm:$0x3]
        %v2487 = vld [vmem:[#allocation2 + $0x70] sm:$0xff]
        %v2488 = vld [vmem:[#allocation2 + $0x78] sm:$0x3]
        %v2489 = vld [vmem:[#allocation2 + $0x80] sm:$0xff]
        %v2490 = vld [vmem:[#allocation2 + $0x88] sm:$0x3]
        %v2491 = vld [vmem:[#allocation2 + $0x90] sm:$0xff]
        %v2492 = vld [vmem:[#allocation2 + $0x98] sm:$0x3]
        %vm2509 = vcmask 1046528
        %v2510 = vrot.slane %v2473, 1
        %v2511 = vrot.slane %v2474, 1
        %v2512 = vsel %vm2509, %v2510, %v2511
        %v2513 = vrot.slane %v2475, 1
        %v2514 = vrot.slane %v2476, 1
        %v2515 = vsel %vm2509, %v2513, %v2514
        %v2516 = vrot.slane %v2477, 1
        %v2517 = vrot.slane %v2478, 1
        %v2518 = vsel %vm2509, %v2516, %v2517
        %v2519 = vrot.slane %v2479, 1
        %v2520 = vrot.slane %v2480, 1
        %v2521 = vsel %vm2509, %v2519, %v2520
        %v2522 = vrot.slane %v2481, 1
        %v2523 = vrot.slane %v2482, 1
        %v2524 = vsel %vm2509, %v2522, %v2523
        %v2525 = vrot.slane %v2483, 1
        %v2526 = vrot.slane %v2484, 1
        %v2527 = vsel %vm2509, %v2525, %v2526
        %v2528 = vrot.slane %v2485, 1
        %v2529 = vrot.slane %v2486, 1
        %v2530 = vsel %vm2509, %v2528, %v2529
        %v2531 = vrot.slane %v2487, 1
        %v2532 = vrot.slane %v2488, 1
        %v2533 = vsel %vm2509, %v2531, %v2532
        %vm2534 = vcmask 1045504
        %v2535 = vrot.slane %v2473, 2
        %v2536 = vrot.slane %v2474, 2
        %v2537 = vsel %vm2534, %v2535, %v2536
        %v2538 = vrot.slane %v2475, 2
        %v2539 = vrot.slane %v2476, 2
        %v2540 = vsel %vm2534, %v2538, %v2539
        %v2541 = vrot.slane %v2477, 2
        %v2542 = vrot.slane %v2478, 2
        %v2543 = vsel %vm2534, %v2541, %v2542
        %v2544 = vrot.slane %v2479, 2
        %v2545 = vrot.slane %v2480, 2
        %v2546 = vsel %vm2534, %v2544, %v2545
        %v2547 = vrot.slane %v2481, 2
        %v2548 = vrot.slane %v2482, 2
        %v2549 = vsel %vm2534, %v2547, %v2548
        %v2550 = vrot.slane %v2483, 2
        %v2551 = vrot.slane %v2484, 2
        %v2552 = vsel %vm2534, %v2550, %v2551
        %v2553 = vrot.slane %v2485, 2
        %v2554 = vrot.slane %v2486, 2
        %v2555 = vsel %vm2534, %v2553, %v2554
        %v2556 = vrot.slane %v2487, 2
        %v2557 = vrot.slane %v2488, 2
        %v2558 = vsel %vm2534, %v2556, %v2557
        %v2561 = vrot.slane %v2489, 1
        %v2562 = vrot.slane %v2490, 1
        %v2563 = vsel %vm2509, %v2561, %v2562
        %v2572 = vrot.slane %v2489, 2
        %v2573 = vrot.slane %v2490, 2
        %v2574 = vsel %vm2534, %v2572, %v2573
        %v2577 = vrot.slane %v2491, 1
        %v2578 = vrot.slane %v2492, 1
        %v2579 = vsel %vm2509, %v2577, %v2578
        %v2580 = vrot.slane %v2491, 2
        %v2581 = vrot.slane %v2492, 2
        %v2582 = vsel %vm2534, %v2580, %v2581
        %2591 = vrot.lane.b32.xlu0 %v2512, 32
        %v2592 = vpop.permute.xlu0 %2591
        %2593 = vrot.lane.b32.xlu0 %v2515, 32
        %v2594 = vpop.permute.xlu0 %2593
        %2595 = vrot.lane.b32.xlu0 %v2518, 32
        %v2596 = vpop.permute.xlu0 %2595
        %2597 = vrot.lane.b32.xlu0 %v2521, 32
        %v2598 = vpop.permute.xlu0 %2597
        %2599 = vrot.lane.b32.xlu0 %v2524, 32
        %v2600 = vpop.permute.xlu0 %2599
        %2601 = vrot.lane.b32.xlu0 %v2527, 32
        %v2602 = vpop.permute.xlu0 %2601
        %2603 = vrot.lane.b32.xlu0 %v2530, 32
        %v2604 = vpop.permute.xlu0 %2603
        %2605 = vrot.lane.b32.xlu0 %v2533, 32
        %v2606 = vpop.permute.xlu0 %2605
        %2615 = vrot.lane.b32.xlu0 %v2537, 64
        %v2616 = vpop.permute.xlu0 %2615
        %2617 = vrot.lane.b32.xlu0 %v2540, 64
        %v2618 = vpop.permute.xlu0 %2617
        %2619 = vrot.lane.b32.xlu0 %v2543, 64
        %v2620 = vpop.permute.xlu0 %2619
        %2621 = vrot.lane.b32.xlu0 %v2546, 64
        %v2622 = vpop.permute.xlu0 %2621
        %2623 = vrot.lane.b32.xlu0 %v2549, 64
        %v2624 = vpop.permute.xlu0 %2623
        %2625 = vrot.lane.b32.xlu0 %v2552, 64
        %v2626 = vpop.permute.xlu0 %2625
        %2627 = vrot.lane.b32.xlu0 %v2555, 64
        %v2628 = vpop.permute.xlu0 %2627
        %2629 = vrot.lane.b32.xlu0 %v2558, 64
        %v2630 = vpop.permute.xlu0 %2629
        %2639 = vrot.lane.b32.xlu0 %v2475, 96
        %v2640 = vpop.permute.xlu0 %2639
        %2641 = vrot.lane.b32.xlu0 %v2477, 96
        %v2642 = vpop.permute.xlu0 %2641
        %2643 = vrot.lane.b32.xlu0 %v2479, 96
        %v2644 = vpop.permute.xlu0 %2643
        %2645 = vrot.lane.b32.xlu0 %v2481, 96
        %v2646 = vpop.permute.xlu0 %2645
        %2647 = vrot.lane.b32.xlu0 %v2483, 96
        %v2648 = vpop.permute.xlu0 %2647
        %2649 = vrot.lane.b32.xlu0 %v2485, 96
        %v2650 = vpop.permute.xlu0 %2649
        %2651 = vrot.lane.b32.xlu0 %v2487, 96
        %v2652 = vpop.permute.xlu0 %2651
        %2653 = vrot.lane.b32.xlu0 %v2489, 96
        %v2654 = vpop.permute.xlu0 %2653
        %2663 = vrot.lane.b32.xlu0 %v2540, 32
        %v2664 = vpop.permute.xlu0 %2663
        %2665 = vrot.lane.b32.xlu0 %v2543, 32
        %v2666 = vpop.permute.xlu0 %2665
        %2667 = vrot.lane.b32.xlu0 %v2546, 32
        %v2668 = vpop.permute.xlu0 %2667
        %2669 = vrot.lane.b32.xlu0 %v2549, 32
        %v2670 = vpop.permute.xlu0 %2669
        %2671 = vrot.lane.b32.xlu0 %v2552, 32
        %v2672 = vpop.permute.xlu0 %2671
        %2673 = vrot.lane.b32.xlu0 %v2555, 32
        %v2674 = vpop.permute.xlu0 %2673
        %2675 = vrot.lane.b32.xlu0 %v2558, 32
        %v2676 = vpop.permute.xlu0 %2675
        %2677 = vrot.lane.b32.xlu0 %v2574, 32
        %v2678 = vpop.permute.xlu0 %2677
        %2687 = vrot.lane.b32.xlu0 %v2477, 64
        %v2688 = vpop.permute.xlu0 %2687
        %2689 = vrot.lane.b32.xlu0 %v2479, 64
        %v2690 = vpop.permute.xlu0 %2689
        %2691 = vrot.lane.b32.xlu0 %v2481, 64
        %v2692 = vpop.permute.xlu0 %2691
        %2693 = vrot.lane.b32.xlu0 %v2483, 64
        %v2694 = vpop.permute.xlu0 %2693
        %2695 = vrot.lane.b32.xlu0 %v2485, 64
        %v2696 = vpop.permute.xlu0 %2695
        %2697 = vrot.lane.b32.xlu0 %v2487, 64
        %v2698 = vpop.permute.xlu0 %2697
        %2699 = vrot.lane.b32.xlu0 %v2489, 64
        %v2700 = vpop.permute.xlu0 %2699
        %2701 = vrot.lane.b32.xlu0 %v2491, 64
        %v2702 = vpop.permute.xlu0 %2701
        %2711 = vrot.lane.b32.xlu0 %v2518, 96
        %v2712 = vpop.permute.xlu0 %2711
        %2713 = vrot.lane.b32.xlu0 %v2521, 96
        %v2714 = vpop.permute.xlu0 %2713
        %2715 = vrot.lane.b32.xlu0 %v2524, 96
        %v2716 = vpop.permute.xlu0 %2715
        %2717 = vrot.lane.b32.xlu0 %v2527, 96
        %v2718 = vpop.permute.xlu0 %2717
        %2719 = vrot.lane.b32.xlu0 %v2530, 96
        %v2720 = vpop.permute.xlu0 %2719
        %2721 = vrot.lane.b32.xlu0 %v2533, 96
        %v2722 = vpop.permute.xlu0 %2721
        %2723 = vrot.lane.b32.xlu0 %v2563, 96
        %v2724 = vpop.permute.xlu0 %2723
        %2725 = vrot.lane.b32.xlu0 %v2579, 96
        %v2726 = vpop.permute.xlu0 %2725
        %v2735 = vsel %vm459, %v2473, %v2592
        %v2736 = vsel %vm459, %v2475, %v2594
        %v2737 = vsel %vm459, %v2477, %v2596
        %v2738 = vsel %vm459, %v2479, %v2598
        %v2739 = vsel %vm459, %v2481, %v2600
        %v2740 = vsel %vm459, %v2483, %v2602
        %v2741 = vsel %vm459, %v2485, %v2604
        %v2742 = vsel %vm459, %v2487, %v2606
        %vm2743 = vcmask 523264
        %v2744 = vsel %vm2743, %v2735, %v2616
        %v2745 = vsel %vm2743, %v2736, %v2618
        %v2746 = vsel %vm2743, %v2737, %v2620
        %v2747 = vsel %vm2743, %v2738, %v2622
        %v2748 = vsel %vm2743, %v2739, %v2624
        %v2749 = vsel %vm2743, %v2740, %v2626
        %v2750 = vsel %vm2743, %v2741, %v2628
        %v2751 = vsel %vm2743, %v2742, %v2630
        %vm2752 = vcmask 785408
        %v2753 = vsel %vm2752, %v2744, %v2640
        %v2754 = vsel %vm2752, %v2745, %v2642
        %v2755 = vsel %vm2752, %v2746, %v2644
        %v2756 = vsel %vm2752, %v2747, %v2646
        %v2757 = vsel %vm2752, %v2748, %v2648
        %v2758 = vsel %vm2752, %v2749, %v2650
        %v2759 = vsel %vm2752, %v2750, %v2652
        %v2760 = vsel %vm2752, %v2751, %v2654
        %v2761 = vsel %vm459, %v2515, %v2664
        %v2762 = vsel %vm459, %v2518, %v2666
        %v2763 = vsel %vm459, %v2521, %v2668
        %v2764 = vsel %vm459, %v2524, %v2670
        %v2765 = vsel %vm459, %v2527, %v2672
        %v2766 = vsel %vm459, %v2530, %v2674
        %v2767 = vsel %vm459, %v2533, %v2676
        %v2768 = vsel %vm459, %v2563, %v2678
        %v2769 = vsel %vm2743, %v2761, %v2688
        %v2770 = vsel %vm2743, %v2762, %v2690
        %v2771 = vsel %vm2743, %v2763, %v2692
        %v2772 = vsel %vm2743, %v2764, %v2694
        %v2773 = vsel %vm2743, %v2765, %v2696
        %v2774 = vsel %vm2743, %v2766, %v2698
        %v2775 = vsel %vm2743, %v2767, %v2700
        %v2776 = vsel %vm2743, %v2768, %v2702
        %v2777 = vsel %vm2752, %v2769, %v2712
        %v2778 = vsel %vm2752, %v2770, %v2714
        %v2779 = vsel %vm2752, %v2771, %v2716
        %v2780 = vsel %vm2752, %v2772, %v2718
        %v2781 = vsel %vm2752, %v2773, %v2720
        %v2782 = vsel %vm2752, %v2774, %v2722
        %v2783 = vsel %vm2752, %v2775, %v2724
        %v2784 = vsel %vm2752, %v2776, %v2726
        %v2785 = vpack.c.bf16 %v2754, %v2753
        %v2786 = vpack.c.bf16 %v2778, %v2777
        %v2787 = vpack.c.bf16 %v2546, %v2543
        %v2788 = vpack.c.bf16 %v2756, %v2755
        %v2789 = vpack.c.bf16 %v2780, %v2779
        %v2790 = vpack.c.bf16 %v2552, %v2549
        %v2791 = vpack.c.bf16 %v2758, %v2757
        %v2792 = vpack.c.bf16 %v2782, %v2781
        %v2793 = vpack.c.bf16 %v2558, %v2555
        %v2794 = vpack.c.bf16 %v2760, %v2759
        %v2795 = vpack.c.bf16 %v2784, %v2783
        %v2796 = vpack.c.bf16 %v2582, %v2574
        %v2797 = vld [vmem:[%s8] sm:$0xf]
        %v2798 = vld [vmem:[%s8 + $0x4] sm:$0xf]
        %v2799 = vld [vmem:[%s8 + $0x8] sm:$0xf]
        %v2800 = vld [vmem:[%s8 + $0xc] sm:$0xf]
        %v2801 = vld [vmem:[%s8 + $0x10] sm:$0xf]
        %v2802 = vld [vmem:[%s8 + $0x14] sm:$0xf]
        %v2803 = vld [vmem:[%s8 + $0x18] sm:$0xf]
        %v2804 = vld [vmem:[%s8 + $0x1c] sm:$0xf]
        %v2805 = vld [vmem:[%s8 + $0x20] sm:$0xf]
        %v2806 = vld [vmem:[%s8 + $0x24] sm:$0xf]
        %v2807 = vld [vmem:[%s8 + $0x28] sm:$0xf]
        %v2808 = vld [vmem:[%s8 + $0x2c] sm:$0xf]
        %v2809 = vld [vmem:[%s8 + $0x30] sm:$0xf]
        %v2810 = vld [vmem:[%s8 + $0x34] sm:$0xf]
        %v2811 = vld [vmem:[%s8 + $0x38] sm:$0xf]
        %v2812 = vld [vmem:[%s8 + $0x3c] sm:$0xf]
        %v2813 = vld [vmem:[%s8 + $0x40] sm:$0xf]
        %v2814 = vld [vmem:[%s8 + $0x44] sm:$0xf]
        %v2815 = vld [vmem:[%s8 + $0x48] sm:$0xf]
        %v2816 = vld [vmem:[%s8 + $0x4c] sm:$0xf]
        %v2817 = vld [vmem:[%s8 + $0x50] sm:$0xf]
        %v2818 = vld [vmem:[%s8 + $0x54] sm:$0xf]
        %v2819 = vld [vmem:[%s8 + $0x58] sm:$0xf]
        %v2820 = vld [vmem:[%s8 + $0x5c] sm:$0xf]
        %v2821 = vld [vmem:[%s8 + $0x60] sm:$0xf]
        %v2822 = vld [vmem:[%s8 + $0x64] sm:$0xf]
        %v2823 = vld [vmem:[%s8 + $0x68] sm:$0xf]
        %v2824 = vld [vmem:[%s8 + $0x6c] sm:$0xf]
        %v2825 = vld [vmem:[%s8 + $0x70] sm:$0xf]
        %v2826 = vld [vmem:[%s8 + $0x74] sm:$0xf]
        %v2827 = vld [vmem:[%s8 + $0x78] sm:$0xf]
        %v2828 = vld [vmem:[%s8 + $0x7c] sm:$0xf]
        %v2829 = vld [vmem:[%s8 + $0x80] sm:$0xf]
        %v2830 = vld [vmem:[%s8 + $0x84] sm:$0xf]
        %v2831 = vld [vmem:[%s8 + $0x88] sm:$0xf]
        %v2832 = vld [vmem:[%s8 + $0x8c] sm:$0xf]
        %v2833 = vld [vmem:[%s9] sm:$0x1]
        %v2835 = vlaneseq
        %v2836 = vshrl.u32 %v2835, 7
        %v2837 = vsub.s32 0, %v2836
        %v2838 = vrot.slane %v2833, %v2837
        %v2876 = vunpack.c.l.b16 %v2797
        %v2877 = vunpack.c.l.b16 %v2798
        %v2878 = vunpack.c.l.b16 %v2799
        %v2879 = vunpack.c.l.b16 %v2800
        %v2880 = vunpack.c.l.b16 %v2801
        %v2881 = vunpack.c.l.b16 %v2802
        %v2882 = vunpack.c.l.b16 %v2803
        %v2883 = vunpack.c.l.b16 %v2804
        %v2884 = vunpack.c.l.b16 %v2805
        %v2885 = vunpack.c.l.b16 %v2806
        %v2886 = vunpack.c.l.b16 %v2807
        %v2887 = vunpack.c.l.b16 %v2808
        %v2888 = vunpack.c.l.b16 %v2809
        %v2889 = vunpack.c.l.b16 %v2810
        %v2890 = vunpack.c.l.b16 %v2811
        %v2891 = vunpack.c.l.b16 %v2812
        %v2892 = vunpack.c.l.b16 %v2813
        %v2893 = vunpack.c.l.b16 %v2814
        %v2894 = vunpack.c.l.b16 %v2815
        %v2895 = vunpack.c.l.b16 %v2816
        %v2896 = vunpack.c.l.b16 %v2817
        %v2897 = vunpack.c.l.b16 %v2818
        %v2898 = vunpack.c.l.b16 %v2819
        %v2899 = vunpack.c.l.b16 %v2820
        %v2900 = vunpack.c.l.b16 %v2821
        %v2901 = vunpack.c.l.b16 %v2822
        %v2902 = vunpack.c.l.b16 %v2823
        %v2903 = vunpack.c.l.b16 %v2824
        %v2904 = vunpack.c.l.b16 %v2825
        %v2905 = vunpack.c.l.b16 %v2826
        %v2906 = vunpack.c.l.b16 %v2827
        %v2907 = vunpack.c.l.b16 %v2828
        %v2908 = vunpack.c.l.b16 %v2829
        %v2909 = vunpack.c.l.b16 %v2830
        %v2910 = vunpack.c.l.b16 %v2831
        %v2911 = vunpack.c.l.b16 %v2832
        %v2912 = vpack.c.b16 %v2877, %v2876
        %v2913 = vpack.c.b16 %v2879, %v2878
        %v2914 = vpack.c.b16 %v2881, %v2880
        %v2915 = vpack.c.b16 %v2883, %v2882
        %v2916 = vpack.c.b16 %v2885, %v2884
        %v2917 = vpack.c.b16 %v2887, %v2886
        %v2918 = vpack.c.b16 %v2889, %v2888
        %v2919 = vpack.c.b16 %v2891, %v2890
        %v2920 = vpack.c.b16 %v2893, %v2892
        %v2921 = vpack.c.b16 %v2895, %v2894
        %v2922 = vpack.c.b16 %v2897, %v2896
        %v2923 = vpack.c.b16 %v2899, %v2898
        %v2924 = vpack.c.b16 %v2901, %v2900
        %v2925 = vpack.c.b16 %v2903, %v2902
        %v2926 = vpack.c.b16 %v2905, %v2904
        %v2927 = vpack.c.b16 %v2907, %v2906
        %v2928 = vpack.c.b16 %v2909, %v2908
        %v2929 = vpack.c.b16 %v2911, %v2910
        %v2949 = vsel %vm459, %v2787, 0
        %v2952 = vsel %vm459, %v2790, 0
        %v2955 = vsel %vm459, %v2793, 0
        %v2958 = vsel %vm459, %v2796, 0
        %2960 = vmatprep.subr.bf16.mxu0 0
        %2961 = vmatpush1.bf16.msra.mxu0 %v2912
        %2962 = vmatprep.subr.bf16.mxu0 0
        %2963 = vmatpush1.bf16.msra.mxu0 %v2913
        %2964 = vmatprep.subr.bf16.mxu0 0
        %2965 = vmatpush1.bf16.msra.mxu0 %v2914
        %2966 = vmatprep.subr.bf16.mxu0 0
        %2967 = vmatpush1.bf16.msra.mxu0 %v2915
        %2968 = vmatprep.subr.bf16.mxu0 0
        %2969 = vmatpush1.bf16.msra.mxu0 %v2916
        %2970 = vmatprep.subr.bf16.mxu0 0
        %2971 = vmatpush1.bf16.msra.mxu0 %v2917
        %2972 = vmatprep.subr.bf16.mxu0 0
        %2973 = vmatpush1.bf16.msra.mxu0 %v2918
        %2974 = vmatprep.subr.bf16.mxu0 0
        %2975 = vmatpush1.bf16.msra.mxu0 %v2919
        %2976 = vmatprep.subr.bf16.mxu0 0
        %2977 = vmatpush1.bf16.msra.mxu0 %v2920
        %2978 = vmatprep.subr.bf16.mxu0 0
        %2979 = vmatpush1.bf16.msra.mxu0 %v2921
        %2980 = vmatprep.subr.bf16.mxu0 0
        %2981 = vmatpush1.bf16.msra.mxu0 %v2922
        %2982 = vmatprep.subr.bf16.mxu0 0
        %2983 = vmatpush1.bf16.msra.mxu0 %v2923
        %2984 = vmatprep.subr.bf16.mxu0 0
        %2985 = vmatpush1.bf16.msra.mxu0 %v2924
        %2986 = vmatprep.subr.bf16.mxu0 0
        %2987 = vmatpush1.bf16.msra.mxu0 %v2925
        %2988 = vmatprep.subr.bf16.mxu0 0
        %2989 = vmatpush1.bf16.msra.mxu0 %v2926
        %2990 = vmatprep.subr.bf16.mxu0 0
        %2991 = vmatpush1.bf16.msra.mxu0 %v2927
        %2992 = vmatprep.mubr.bf16.mxu0 %v2786
        %2993 = vmatmul.mubr.bf16.gmra.mrb[0].mxu0 %v2785
        %v2994 = vpop.f32.mrb[0].mxu0
        %v2995 = vadd.f32 %v2838, %v2994
        %v2996 = vpop.f32.mrb[0].mxu0
        %v2997 = vpop.f32.mrb[0].mxu0
        %v2998 = vadd.f32 %v2838, %v2997
        %v2999 = vpop.f32.mrb[0].mxu0
        %3000 = vmatprep.mubr.bf16.mxu0 %v2789
        %3001 = vmatmul.mubr.bf16.gmra.mrb[0].mxu0 %v2788
        %v3002 = vpop.f32.mrb[0].mxu0
        %v3003 = vadd.f32 %v2838, %v3002
        %v3004 = vpop.f32.mrb[0].mxu0
        %v3005 = vpop.f32.mrb[0].mxu0
        %v3006 = vadd.f32 %v2838, %v3005
        %v3007 = vpop.f32.mrb[0].mxu0
        %3008 = vmatprep.mubr.bf16.mxu0 %v2792
        %3009 = vmatmul.mubr.bf16.gmra.mrb[0].mxu0 %v2791
        %v3010 = vpop.f32.mrb[0].mxu0
        %v3011 = vadd.f32 %v2838, %v3010
        %v3012 = vpop.f32.mrb[0].mxu0
        %v3013 = vpop.f32.mrb[0].mxu0
        %v3014 = vadd.f32 %v2838, %v3013
        %v3015 = vpop.f32.mrb[0].mxu0
        %3016 = vmatprep.mubr.bf16.mxu0 %v2795
        %3017 = vmatmul.mubr.bf16.gmra.mrb[0].mxu0 %v2794
        %v3018 = vpop.f32.mrb[0].mxu0
        %v3019 = vadd.f32 %v2838, %v3018
        %v3020 = vpop.f32.mrb[0].mxu0
        %v3021 = vpop.f32.mrb[0].mxu0
        %v3022 = vadd.f32 %v2838, %v3021
        %v3023 = vpop.f32.mrb[0].mxu0
        %3024 = vdwg.mxu0
        %3025 = vmatprep.subr.bf16.mxu0 0
        %3026 = vmatpush1.bf16.msra.mxu0 %v2928
        %3027 = vmatprep.subr.bf16.mxu0 0
        %3028 = vmatpush1.bf16.msra.mxu0 %v2929
        %3029 = vmatprep.subr.bf16.mxu0 0
        %3030 = vmatpush1.bf16.msra.mxu0 0
        %3031 = vmatprep.subr.bf16.mxu0 0
        %3032 = vmatpush1.bf16.msra.mxu0 0
        %3033 = vmatprep.subr.bf16.mxu0 0
        %3034 = vmatpush1.bf16.msra.mxu0 0
        %3035 = vmatprep.subr.bf16.mxu0 0
        %3036 = vmatpush1.bf16.msra.mxu0 0
        %3037 = vmatprep.subr.bf16.mxu0 0
        %3038 = vmatpush1.bf16.msra.mxu0 0
        %3039 = vmatprep.subr.bf16.mxu0 0
        %3040 = vmatpush1.bf16.msra.mxu0 0
        %3041 = vmatprep.subr.bf16.mxu0 0
        %3042 = vmatpush1.bf16.msra.mxu0 0
        %3043 = vmatprep.subr.bf16.mxu0 0
        %3044 = vmatpush1.bf16.msra.mxu0 0
        %3045 = vmatprep.subr.bf16.mxu0 0
        %3046 = vmatpush1.bf16.msra.mxu0 0
        %3047 = vmatprep.subr.bf16.mxu0 0
        %3048 = vmatpush1.bf16.msra.mxu0 0
        %3049 = vmatprep.subr.bf16.mxu0 0
        %3050 = vmatpush1.bf16.msra.mxu0 0
        %3051 = vmatprep.subr.bf16.mxu0 0
        %3052 = vmatpush1.bf16.msra.mxu0 0
        %3053 = vmatprep.subr.bf16.mxu0 0
        %3054 = vmatpush1.bf16.msra.mxu0 0
        %3055 = vmatprep.subr.bf16.mxu0 0
        %3056 = vmatpush1.bf16.msra.mxu0 0
        %3057 = vmatprep.mubr.bf16.mxu0 0
        %3058 = vmatmul.mubr.bf16.gmra.mrb[0].mxu0 %v2949
        %v3059 = vpop.f32.mrb[0].mxu0
        %v3060 = vadd.f32 %v2995, %v3059
        %v3061 = vpop.f32.mrb[0].mxu0
        %v3062 = vpop.f32.mrb[0].mxu0
        %v3063 = vadd.f32 %v2998, %v3062
        %v3064 = vpop.f32.mrb[0].mxu0
        %3065 = vmatprep.mubr.bf16.mxu0 0
        %3066 = vmatmul.mubr.bf16.gmra.mrb[0].mxu0 %v2952
        %v3067 = vpop.f32.mrb[0].mxu0
        %v3068 = vadd.f32 %v3003, %v3067
        %v3069 = vpop.f32.mrb[0].mxu0
        %v3070 = vpop.f32.mrb[0].mxu0
        %v3071 = vadd.f32 %v3006, %v3070
        %v3072 = vpop.f32.mrb[0].mxu0
        %3073 = vmatprep.mubr.bf16.mxu0 0
        %3074 = vmatmul.mubr.bf16.gmra.mrb[0].mxu0 %v2955
        %v3075 = vpop.f32.mrb[0].mxu0
        %v3076 = vadd.f32 %v3011, %v3075
        %v3077 = vpop.f32.mrb[0].mxu0
        %v3078 = vpop.f32.mrb[0].mxu0
        %v3079 = vadd.f32 %v3014, %v3078
        %v3080 = vpop.f32.mrb[0].mxu0
        %3081 = vmatprep.mubr.bf16.mxu0 0
        %3082 = vmatmul.mubr.bf16.gmra.mrb[0].mxu0 %v2958
        %v3083 = vpop.f32.mrb[0].mxu0
        %v3084 = vadd.f32 %v3019, %v3083
        %v3085 = vpop.f32.mrb[0].mxu0
        %v3086 = vpop.f32.mrb[0].mxu0
        %v3087 = vadd.f32 %v3022, %v3086
        %v3088 = vpop.f32.mrb[0].mxu0
        %3089 = vdwg.mxu0
        %v3090 = vld [vmem:[%s4] sm:$0x1]
        %v3091 = vld [vmem:[%s5] sm:$0x1]
        %v3092 = vsel %vm459, %v3060, 0.0
        %v3093 = vsel %vm459, %v3063, 0.0
        %v3094 = vadd.f32 %v3092, %v3093
        %v3095 = vsel %vm459, %v3068, 0.0
        %v3096 = vadd.f32 %v3094, %v3095
        %v3097 = vsel %vm459, %v3071, 0.0
        %v3098 = vadd.f32 %v3096, %v3097
        %v3099 = vsel %vm459, %v3076, 0.0
        %v3100 = vadd.f32 %v3098, %v3099
        %v3101 = vsel %vm459, %v3079, 0.0
        %v3102 = vadd.f32 %v3100, %v3101
        %v3103 = vsel %vm459, %v3084, 0.0
        %v3104 = vadd.f32 %v3102, %v3103
        %v3105 = vsel %vm459, %v3087, 0.0
        %v3106 = vadd.f32 %v3104, %v3105
        %v3107 = vrot.slane %v3106, 4
        %v3108 = vadd.f32 %v3106, %v3107
        %v3109 = vrot.slane %v3108, 2
        %v3110 = vadd.f32 %v3108, %v3109
        %v3111 = vrot.slane %v3110, 1
        %v3112 = vadd.f32 %v3110, %v3111
        %v3113 = vmul.f32 %v3060, %v3060
        %v3114 = vmul.f32 %v3063, %v3063
        %v3115 = vmul.f32 %v3068, %v3068
        %v3116 = vmul.f32 %v3071, %v3071
        %v3117 = vmul.f32 %v3076, %v3076
        %v3118 = vmul.f32 %v3079, %v3079
        %v3119 = vmul.f32 %v3084, %v3084
        %v3120 = vmul.f32 %v3087, %v3087
        %v3121 = vsel %vm459, %v3113, 0.0
        %v3122 = vsel %vm459, %v3114, 0.0
        %v3123 = vadd.f32 %v3121, %v3122
        %v3124 = vsel %vm459, %v3115, 0.0
        %v3125 = vadd.f32 %v3123, %v3124
        %v3126 = vsel %vm459, %v3116, 0.0
        %v3127 = vadd.f32 %v3125, %v3126
        %v3128 = vsel %vm459, %v3117, 0.0
        %v3129 = vadd.f32 %v3127, %v3128
        %v3130 = vsel %vm459, %v3118, 0.0
        %v3131 = vadd.f32 %v3129, %v3130
        %v3132 = vsel %vm459, %v3119, 0.0
        %v3133 = vadd.f32 %v3131, %v3132
        %v3134 = vsel %vm459, %v3120, 0.0
        %v3135 = vadd.f32 %v3133, %v3134
        %v3136 = vrot.slane %v3135, 4
        %v3137 = vadd.f32 %v3135, %v3136
        %v3138 = vrot.slane %v3137, 2
        %v3139 = vadd.f32 %v3137, %v3138
        %v3140 = vrot.slane %v3139, 1
        %v3141 = vadd.f32 %v3139, %v3140
        %v3142 = vld [vmem:[%s6] sm:$0xff]
        %v3143 = vld [vmem:[%s6 + $0x8] sm:$0xff]
        %v3144 = vld [vmem:[%s6 + $0x10] sm:$0xff]
        %v3145 = vld [vmem:[%s6 + $0x18] sm:$0xff]
        %v3147 = vsel %vm459, %v3112, 0
        %3149 = vmatprep.subr.mxu0 0.0
        %v3150 = vand.u32 %v3142, 4294901760
        %3151 = vmatpush1.msra.mxu0 %v3150
        %3152 = vmatprep.subr.mxu0 0.0
        %v3153 = vand.u32 %v3143, 4294901760
        %3154 = vmatpush1.msra.mxu0 %v3153
        %3155 = vmatprep.subr.mxu0 0.0
        %v3156 = vand.u32 %v3144, 4294901760
        %3157 = vmatpush1.msra.mxu0 %v3156
        %3158 = vmatprep.subr.mxu0 0.0
        %v3159 = vand.u32 %v3145, 4294901760
        %3160 = vmatpush1.msra.mxu0 %v3159
        %3161 = vmatprep.subr.mxu0 0.0
        %3162 = vmatpush1.msra.mxu0 0.0
        %3163 = vmatprep.subr.mxu0 0.0
        %3164 = vmatpush1.msra.mxu0 0.0
        %3165 = vmatprep.subr.mxu0 0.0
        %3166 = vmatpush1.msra.mxu0 0.0
        %3167 = vmatprep.subr.mxu0 0.0
        %3168 = vmatpush1.msra.mxu0 0.0
        %3169 = vmatprep.subr.mxu0 0.0
        %3170 = vmatpush1.msra.mxu0 0.0
        %3171 = vmatprep.subr.mxu0 0.0
        %3172 = vmatpush1.msra.mxu0 0.0
        %3173 = vmatprep.subr.mxu0 0.0
        %3174 = vmatpush1.msra.mxu0 0.0
        %3175 = vmatprep.subr.mxu0 0.0
        %3176 = vmatpush1.msra.mxu0 0.0
        %3177 = vmatprep.subr.mxu0 0.0
        %3178 = vmatpush1.msra.mxu0 0.0
        %3179 = vmatprep.subr.mxu0 0.0
        %3180 = vmatpush1.msra.mxu0 0.0
        %3181 = vmatprep.subr.mxu0 0.0
        %3182 = vmatpush1.msra.mxu0 0.0
        %3183 = vmatprep.subr.mxu0 0.0
        %3184 = vmatpush1.msra.mxu0 0.0
        %3185 = vmatprep.subr.mxu0 0.0
        %3186 = vmatpush1.msra.mxu0 0.0
        %3187 = vmatprep.subr.mxu0 0.0
        %3188 = vmatpush1.msra.mxu0 0.0
        %3189 = vmatprep.subr.mxu0 0.0
        %3190 = vmatpush1.msra.mxu0 0.0
        %3191 = vmatprep.subr.mxu0 0.0
        %3192 = vmatpush1.msra.mxu0 0.0
        %3193 = vmatprep.subr.mxu0 0.0
        %3194 = vmatpush1.msra.mxu0 0.0
        %3195 = vmatprep.subr.mxu0 0.0
        %3196 = vmatpush1.msra.mxu0 0.0
        %3197 = vmatprep.subr.mxu0 0.0
        %3198 = vmatpush1.msra.mxu0 0.0
        %3199 = vmatprep.subr.mxu0 0.0
        %3200 = vmatpush1.msra.mxu0 0.0
        %3201 = vmatprep.subr.mxu0 0.0
        %3202 = vmatpush1.msra.mxu0 0.0
        %3203 = vmatprep.subr.mxu0 0.0
        %3204 = vmatpush1.msra.mxu0 0.0
        %3205 = vmatprep.subr.mxu0 0.0
        %3206 = vmatpush1.msra.mxu0 0.0
        %3207 = vmatprep.subr.mxu0 0.0
        %3208 = vmatpush1.msra.mxu0 0.0
        %3209 = vmatprep.subr.mxu0 0.0
        %3210 = vmatpush1.msra.mxu0 0.0
        %3211 = vmatprep.subr.mxu0 0.0
        %3212 = vmatpush1.msra.mxu0 0.0
        %3213 = vmatprep.subr.mxu0 0.0
        %3214 = vmatpush1.msra.mxu0 0.0
        %3215 = vmatprep.subr.mxu0 0.0
        %3216 = vmatpush1.msra.mxu0 0.0
        %3217 = vmatprep.mubr.f32.mxu0 0.0
        %v3218 = vand.u32 %v3147, 4294901760
        %v3219 = vsub.f32 %v3147, %v3218
        %v3220 = vand.u32 %v3219, 4294901760
        %v3221 = vsub.f32 %v3219, %v3220
        %v3222 = vand.u32 %v3221, 4294901760
        %3223 = vmatmul.mubr.f32.gmra.mrb[0].mxu0 %v3222
        %v3224 = vpop.f32.mrb[0].mxu0
        %v3225 = vadd.f32 0.0, %v3224
        %v3226 = vpop.f32.mrb[0].mxu0
        %3227 = vdwg.mxu0
        %3228 = vmatprep.subr.mxu0 0.0
        %v3229 = vand.u32 %v3142, 4294901760
        %v3230 = vsub.f32 %v3142, %v3229
        %v3231 = vand.u32 %v3230, 4294901760
        %v3232 = vsub.f32 %v3230, %v3231
        %v3233 = vand.u32 %v3232, 4294901760
        %3234 = vmatpush1.msra.mxu0 %v3233
        %3235 = vmatprep.subr.mxu0 0.0
        %v3236 = vand.u32 %v3143, 4294901760
        %v3237 = vsub.f32 %v3143, %v3236
        %v3238 = vand.u32 %v3237, 4294901760
        %v3239 = vsub.f32 %v3237, %v3238
        %v3240 = vand.u32 %v3239, 4294901760
        %3241 = vmatpush1.msra.mxu0 %v3240
        %3242 = vmatprep.subr.mxu0 0.0
        %v3243 = vand.u32 %v3144, 4294901760
        %v3244 = vsub.f32 %v3144, %v3243
        %v3245 = vand.u32 %v3244, 4294901760
        %v3246 = vsub.f32 %v3244, %v3245
        %v3247 = vand.u32 %v3246, 4294901760
        %3248 = vmatpush1.msra.mxu0 %v3247
        %3249 = vmatprep.subr.mxu0 0.0
        %v3250 = vand.u32 %v3145, 4294901760
        %v3251 = vsub.f32 %v3145, %v3250
        %v3252 = vand.u32 %v3251, 4294901760
        %v3253 = vsub.f32 %v3251, %v3252
        %v3254 = vand.u32 %v3253, 4294901760
        %3255 = vmatpush1.msra.mxu0 %v3254
        %3256 = vmatprep.subr.mxu0 0.0
        %3257 = vmatpush1.msra.mxu0 0.0
        %3258 = vmatprep.subr.mxu0 0.0
        %3259 = vmatpush1.msra.mxu0 0.0
        %3260 = vmatprep.subr.mxu0 0.0
        %3261 = vmatpush1.msra.mxu0 0.0
        %3262 = vmatprep.subr.mxu0 0.0
        %3263 = vmatpush1.msra.mxu0 0.0
        %3264 = vmatprep.subr.mxu0 0.0
        %3265 = vmatpush1.msra.mxu0 0.0
        %3266 = vmatprep.subr.mxu0 0.0
        %3267 = vmatpush1.msra.mxu0 0.0
        %3268 = vmatprep.subr.mxu0 0.0
        %3269 = vmatpush1.msra.mxu0 0.0
        %3270 = vmatprep.subr.mxu0 0.0
        %3271 = vmatpush1.msra.mxu0 0.0
        %3272 = vmatprep.subr.mxu0 0.0
        %3273 = vmatpush1.msra.mxu0 0.0
        %3274 = vmatprep.subr.mxu0 0.0
        %3275 = vmatpush1.msra.mxu0 0.0
        %3276 = vmatprep.subr.mxu0 0.0
        %3277 = vmatpush1.msra.mxu0 0.0
        %3278 = vmatprep.subr.mxu0 0.0
        %3279 = vmatpush1.msra.mxu0 0.0
        %3280 = vmatprep.subr.mxu0 0.0
        %3281 = vmatpush1.msra.mxu0 0.0
        %3282 = vmatprep.subr.mxu0 0.0
        %3283 = vmatpush1.msra.mxu0 0.0
        %3284 = vmatprep.subr.mxu0 0.0
        %3285 = vmatpush1.msra.mxu0 0.0
        %3286 = vmatprep.subr.mxu0 0.0
        %3287 = vmatpush1.msra.mxu0 0.0
        %3288 = vmatprep.subr.mxu0 0.0
        %3289 = vmatpush1.msra.mxu0 0.0
        %3290 = vmatprep.subr.mxu0 0.0
        %3291 = vmatpush1.msra.mxu0 0.0
        %3292 = vmatprep.subr.mxu0 0.0
        %3293 = vmatpush1.msra.mxu0 0.0
        %3294 = vmatprep.subr.mxu0 0.0
        %3295 = vmatpush1.msra.mxu0 0.0
        %3296 = vmatprep.subr.mxu0 0.0
        %3297 = vmatpush1.msra.mxu0 0.0
        %3298 = vmatprep.subr.mxu0 0.0
        %3299 = vmatpush1.msra.mxu0 0.0
        %3300 = vmatprep.subr.mxu0 0.0
        %3301 = vmatpush1.msra.mxu0 0.0
        %3302 = vmatprep.subr.mxu0 0.0
        %3303 = vmatpush1.msra.mxu0 0.0
        %3304 = vmatprep.subr.mxu0 0.0
        %3305 = vmatpush1.msra.mxu0 0.0
        %3306 = vmatprep.subr.mxu0 0.0
        %3307 = vmatpush1.msra.mxu0 0.0
        %3308 = vmatprep.subr.mxu0 0.0
        %3309 = vmatpush1.msra.mxu0 0.0
        %3310 = vmatprep.subr.mxu0 0.0
        %3311 = vmatpush1.msra.mxu0 0.0
        %3312 = vmatprep.mubr.f32.mxu0 0.0
        %v3313 = vand.u32 %v3147, 4294901760
        %3314 = vmatmul.mubr.f32.gmra.mrb[0].mxu0 %v3313
        %v3315 = vpop.f32.mrb[0].mxu0
        %v3316 = vadd.f32 %v3225, %v3315
        %v3317 = vpop.f32.mrb[0].mxu0
        %3318 = vdwg.mxu0
        %3319 = vmatprep.subr.mxu0 0.0
        %v3320 = vand.u32 %v3142, 4294901760
        %v3321 = vsub.f32 %v3142, %v3320
        %3322 = vmatpush1.msra.mxu0 %v3321
        %3323 = vmatprep.subr.mxu0 0.0
        %v3324 = vand.u32 %v3143, 4294901760
        %v3325 = vsub.f32 %v3143, %v3324
        %3326 = vmatpush1.msra.mxu0 %v3325
        %3327 = vmatprep.subr.mxu0 0.0
        %v3328 = vand.u32 %v3144, 4294901760
        %v3329 = vsub.f32 %v3144, %v3328
        %3330 = vmatpush1.msra.mxu0 %v3329
        %3331 = vmatprep.subr.mxu0 0.0
        %v3332 = vand.u32 %v3145, 4294901760
        %v3333 = vsub.f32 %v3145, %v3332
        %3334 = vmatpush1.msra.mxu0 %v3333
        %3335 = vmatprep.subr.mxu0 0.0
        %3336 = vmatpush1.msra.mxu0 0.0
        %3337 = vmatprep.subr.mxu0 0.0
        %3338 = vmatpush1.msra.mxu0 0.0
        %3339 = vmatprep.subr.mxu0 0.0
        %3340 = vmatpush1.msra.mxu0 0.0
        %3341 = vmatprep.subr.mxu0 0.0
        %3342 = vmatpush1.msra.mxu0 0.0
        %3343 = vmatprep.subr.mxu0 0.0
        %3344 = vmatpush1.msra.mxu0 0.0
        %3345 = vmatprep.subr.mxu0 0.0
        %3346 = vmatpush1.msra.mxu0 0.0
        %3347 = vmatprep.subr.mxu0 0.0
        %3348 = vmatpush1.msra.mxu0 0.0
        %3349 = vmatprep.subr.mxu0 0.0
        %3350 = vmatpush1.msra.mxu0 0.0
        %3351 = vmatprep.subr.mxu0 0.0
        %3352 = vmatpush1.msra.mxu0 0.0
        %3353 = vmatprep.subr.mxu0 0.0
        %3354 = vmatpush1.msra.mxu0 0.0
        %3355 = vmatprep.subr.mxu0 0.0
        %3356 = vmatpush1.msra.mxu0 0.0
        %3357 = vmatprep.subr.mxu0 0.0
        %3358 = vmatpush1.msra.mxu0 0.0
        %3359 = vmatprep.subr.mxu0 0.0
        %3360 = vmatpush1.msra.mxu0 0.0
        %3361 = vmatprep.subr.mxu0 0.0
        %3362 = vmatpush1.msra.mxu0 0.0
        %3363 = vmatprep.subr.mxu0 0.0
        %3364 = vmatpush1.msra.mxu0 0.0
        %3365 = vmatprep.subr.mxu0 0.0
        %3366 = vmatpush1.msra.mxu0 0.0
        %3367 = vmatprep.subr.mxu0 0.0
        %3368 = vmatpush1.msra.mxu0 0.0
        %3369 = vmatprep.subr.mxu0 0.0
        %3370 = vmatpush1.msra.mxu0 0.0
        %3371 = vmatprep.subr.mxu0 0.0
        %3372 = vmatpush1.msra.mxu0 0.0
        %3373 = vmatprep.subr.mxu0 0.0
        %3374 = vmatpush1.msra.mxu0 0.0
        %3375 = vmatprep.subr.mxu0 0.0
        %3376 = vmatpush1.msra.mxu0 0.0
        %3377 = vmatprep.subr.mxu0 0.0
        %3378 = vmatpush1.msra.mxu0 0.0
        %3379 = vmatprep.subr.mxu0 0.0
        %3380 = vmatpush1.msra.mxu0 0.0
        %3381 = vmatprep.subr.mxu0 0.0
        %3382 = vmatpush1.msra.mxu0 0.0
        %3383 = vmatprep.subr.mxu0 0.0
        %3384 = vmatpush1.msra.mxu0 0.0
        %3385 = vmatprep.subr.mxu0 0.0
        %3386 = vmatpush1.msra.mxu0 0.0
        %3387 = vmatprep.subr.mxu0 0.0
        %3388 = vmatpush1.msra.mxu0 0.0
        %3389 = vmatprep.subr.mxu0 0.0
        %3390 = vmatpush1.msra.mxu0 0.0
        %3391 = vmatprep.mubr.f32.mxu0 0.0
        %v3392 = vand.u32 %v3147, 4294901760
        %v3393 = vsub.f32 %v3147, %v3392
        %3394 = vmatmul.mubr.f32.gmra.mrb[0].mxu0 %v3393
        %v3395 = vpop.f32.mrb[0].mxu0
        %v3396 = vadd.f32 %v3316, %v3395
        %v3397 = vpop.f32.mrb[0].mxu0
        %3398 = vdwg.mxu0
        %3399 = vmatprep.subr.mxu0 0.0
        %v3400 = vand.u32 %v3142, 4294901760
        %3401 = vmatpush1.msra.mxu0 %v3400
        %3402 = vmatprep.subr.mxu0 0.0
        %v3403 = vand.u32 %v3143, 4294901760
        %3404 = vmatpush1.msra.mxu0 %v3403
        %3405 = vmatprep.subr.mxu0 0.0
        %v3406 = vand.u32 %v3144, 4294901760
        %3407 = vmatpush1.msra.mxu0 %v3406
        %3408 = vmatprep.subr.mxu0 0.0
        %v3409 = vand.u32 %v3145, 4294901760
        %3410 = vmatpush1.msra.mxu0 %v3409
        %3411 = vmatprep.subr.mxu0 0.0
        %3412 = vmatpush1.msra.mxu0 0.0
        %3413 = vmatprep.subr.mxu0 0.0
        %3414 = vmatpush1.msra.mxu0 0.0
        %3415 = vmatprep.subr.mxu0 0.0
        %3416 = vmatpush1.msra.mxu0 0.0
        %3417 = vmatprep.subr.mxu0 0.0
        %3418 = vmatpush1.msra.mxu0 0.0
        %3419 = vmatprep.subr.mxu0 0.0
        %3420 = vmatpush1.msra.mxu0 0.0
        %3421 = vmatprep.subr.mxu0 0.0
        %3422 = vmatpush1.msra.mxu0 0.0
        %3423 = vmatprep.subr.mxu0 0.0
        %3424 = vmatpush1.msra.mxu0 0.0
        %3425 = vmatprep.subr.mxu0 0.0
        %3426 = vmatpush1.msra.mxu0 0.0
        %3427 = vmatprep.subr.mxu0 0.0
        %3428 = vmatpush1.msra.mxu0 0.0
        %3429 = vmatprep.subr.mxu0 0.0
        %3430 = vmatpush1.msra.mxu0 0.0
        %3431 = vmatprep.subr.mxu0 0.0
        %3432 = vmatpush1.msra.mxu0 0.0
        %3433 = vmatprep.subr.mxu0 0.0
        %3434 = vmatpush1.msra.mxu0 0.0
        %3435 = vmatprep.subr.mxu0 0.0
        %3436 = vmatpush1.msra.mxu0 0.0
        %3437 = vmatprep.subr.mxu0 0.0
        %3438 = vmatpush1.msra.mxu0 0.0
        %3439 = vmatprep.subr.mxu0 0.0
        %3440 = vmatpush1.msra.mxu0 0.0
        %3441 = vmatprep.subr.mxu0 0.0
        %3442 = vmatpush1.msra.mxu0 0.0
        %3443 = vmatprep.subr.mxu0 0.0
        %3444 = vmatpush1.msra.mxu0 0.0
        %3445 = vmatprep.subr.mxu0 0.0
        %3446 = vmatpush1.msra.mxu0 0.0
        %3447 = vmatprep.subr.mxu0 0.0
        %3448 = vmatpush1.msra.mxu0 0.0
        %3449 = vmatprep.subr.mxu0 0.0
        %3450 = vmatpush1.msra.mxu0 0.0
        %3451 = vmatprep.subr.mxu0 0.0
        %3452 = vmatpush1.msra.mxu0 0.0
        %3453 = vmatprep.subr.mxu0 0.0
        %3454 = vmatpush1.msra.mxu0 0.0
        %3455 = vmatprep.subr.mxu0 0.0
        %3456 = vmatpush1.msra.mxu0 0.0
        %3457 = vmatprep.subr.mxu0 0.0
        %3458 = vmatpush1.msra.mxu0 0.0
        %3459 = vmatprep.subr.mxu0 0.0
        %3460 = vmatpush1.msra.mxu0 0.0
        %3461 = vmatprep.subr.mxu0 0.0
        %3462 = vmatpush1.msra.mxu0 0.0
        %3463 = vmatprep.subr.mxu0 0.0
        %3464 = vmatpush1.msra.mxu0 0.0
        %3465 = vmatprep.subr.mxu0 0.0
        %3466 = vmatpush1.msra.mxu0 0.0
        %3467 = vmatprep.mubr.f32.mxu0 0.0
        %v3468 = vand.u32 %v3147, 4294901760
        %v3469 = vsub.f32 %v3147, %v3468
        %v3470 = vand.u32 %v3469, 4294901760
        %3471 = vmatmul.mubr.f32.gmra.mrb[0].mxu0 %v3470
        %v3472 = vpop.f32.mrb[0].mxu0
        %v3473 = vadd.f32 %v3396, %v3472
        %v3474 = vpop.f32.mrb[0].mxu0
        %3475 = vdwg.mxu0
        %3476 = vmatprep.subr.mxu0 0.0
        %v3477 = vand.u32 %v3142, 4294901760
        %v3478 = vsub.f32 %v3142, %v3477
        %v3479 = vand.u32 %v3478, 4294901760
        %3480 = vmatpush1.msra.mxu0 %v3479
        %3481 = vmatprep.subr.mxu0 0.0
        %v3482 = vand.u32 %v3143, 4294901760
        %v3483 = vsub.f32 %v3143, %v3482
        %v3484 = vand.u32 %v3483, 4294901760
        %3485 = vmatpush1.msra.mxu0 %v3484
        %3486 = vmatprep.subr.mxu0 0.0
        %v3487 = vand.u32 %v3144, 4294901760
        %v3488 = vsub.f32 %v3144, %v3487
        %v3489 = vand.u32 %v3488, 4294901760
        %3490 = vmatpush1.msra.mxu0 %v3489
        %3491 = vmatprep.subr.mxu0 0.0
        %v3492 = vand.u32 %v3145, 4294901760
        %v3493 = vsub.f32 %v3145, %v3492
        %v3494 = vand.u32 %v3493, 4294901760
        %3495 = vmatpush1.msra.mxu0 %v3494
        %3496 = vmatprep.subr.mxu0 0.0
        %3497 = vmatpush1.msra.mxu0 0.0
        %3498 = vmatprep.subr.mxu0 0.0
        %3499 = vmatpush1.msra.mxu0 0.0
        %3500 = vmatprep.subr.mxu0 0.0
        %3501 = vmatpush1.msra.mxu0 0.0
        %3502 = vmatprep.subr.mxu0 0.0
        %3503 = vmatpush1.msra.mxu0 0.0
        %3504 = vmatprep.subr.mxu0 0.0
        %3505 = vmatpush1.msra.mxu0 0.0
        %3506 = vmatprep.subr.mxu0 0.0
        %3507 = vmatpush1.msra.mxu0 0.0
        %3508 = vmatprep.subr.mxu0 0.0
        %3509 = vmatpush1.msra.mxu0 0.0
        %3510 = vmatprep.subr.mxu0 0.0
        %3511 = vmatpush1.msra.mxu0 0.0
        %3512 = vmatprep.subr.mxu0 0.0
        %3513 = vmatpush1.msra.mxu0 0.0
        %3514 = vmatprep.subr.mxu0 0.0
        %3515 = vmatpush1.msra.mxu0 0.0
        %3516 = vmatprep.subr.mxu0 0.0
        %3517 = vmatpush1.msra.mxu0 0.0
        %3518 = vmatprep.subr.mxu0 0.0
        %3519 = vmatpush1.msra.mxu0 0.0
        %3520 = vmatprep.subr.mxu0 0.0
        %3521 = vmatpush1.msra.mxu0 0.0
        %3522 = vmatprep.subr.mxu0 0.0
        %3523 = vmatpush1.msra.mxu0 0.0
        %3524 = vmatprep.subr.mxu0 0.0
        %3525 = vmatpush1.msra.mxu0 0.0
        %3526 = vmatprep.subr.mxu0 0.0
        %3527 = vmatpush1.msra.mxu0 0.0
        %3528 = vmatprep.subr.mxu0 0.0
        %3529 = vmatpush1.msra.mxu0 0.0
        %3530 = vmatprep.subr.mxu0 0.0
        %3531 = vmatpush1.msra.mxu0 0.0
        %3532 = vmatprep.subr.mxu0 0.0
        %3533 = vmatpush1.msra.mxu0 0.0
        %3534 = vmatprep.subr.mxu0 0.0
        %3535 = vmatpush1.msra.mxu0 0.0
        %3536 = vmatprep.subr.mxu0 0.0
        %3537 = vmatpush1.msra.mxu0 0.0
        %3538 = vmatprep.subr.mxu0 0.0
        %3539 = vmatpush1.msra.mxu0 0.0
        %3540 = vmatprep.subr.mxu0 0.0
        %3541 = vmatpush1.msra.mxu0 0.0
        %3542 = vmatprep.subr.mxu0 0.0
        %3543 = vmatpush1.msra.mxu0 0.0
        %3544 = vmatprep.subr.mxu0 0.0
        %3545 = vmatpush1.msra.mxu0 0.0
        %3546 = vmatprep.subr.mxu0 0.0
        %3547 = vmatpush1.msra.mxu0 0.0
        %3548 = vmatprep.subr.mxu0 0.0
        %3549 = vmatpush1.msra.mxu0 0.0
        %3550 = vmatprep.subr.mxu0 0.0
        %3551 = vmatpush1.msra.mxu0 0.0
        %3552 = vmatprep.mubr.f32.mxu0 0.0
        %v3553 = vand.u32 %v3147, 4294901760
        %3554 = vmatmul.mubr.f32.gmra.mrb[0].mxu0 %v3553
        %v3555 = vpop.f32.mrb[0].mxu0
        %v3556 = vadd.f32 %v3473, %v3555
        %v3557 = vpop.f32.mrb[0].mxu0
        %3558 = vdwg.mxu0
        %3559 = vmatprep.subr.mxu0 0.0
        %v3560 = vand.u32 %v3142, 4294901760
        %3561 = vmatpush1.msra.mxu0 %v3560
        %3562 = vmatprep.subr.mxu0 0.0
        %v3563 = vand.u32 %v3143, 4294901760
        %3564 = vmatpush1.msra.mxu0 %v3563
        %3565 = vmatprep.subr.mxu0 0.0
        %v3566 = vand.u32 %v3144, 4294901760
        %3567 = vmatpush1.msra.mxu0 %v3566
        %3568 = vmatprep.subr.mxu0 0.0
        %v3569 = vand.u32 %v3145, 4294901760
        %3570 = vmatpush1.msra.mxu0 %v3569
        %3571 = vmatprep.subr.mxu0 0.0
        %3572 = vmatpush1.msra.mxu0 0.0
        %3573 = vmatprep.subr.mxu0 0.0
        %3574 = vmatpush1.msra.mxu0 0.0
        %3575 = vmatprep.subr.mxu0 0.0
        %3576 = vmatpush1.msra.mxu0 0.0
        %3577 = vmatprep.subr.mxu0 0.0
        %3578 = vmatpush1.msra.mxu0 0.0
        %3579 = vmatprep.subr.mxu0 0.0
        %3580 = vmatpush1.msra.mxu0 0.0
        %3581 = vmatprep.subr.mxu0 0.0
        %3582 = vmatpush1.msra.mxu0 0.0
        %3583 = vmatprep.subr.mxu0 0.0
        %3584 = vmatpush1.msra.mxu0 0.0
        %3585 = vmatprep.subr.mxu0 0.0
        %3586 = vmatpush1.msra.mxu0 0.0
        %3587 = vmatprep.subr.mxu0 0.0
        %3588 = vmatpush1.msra.mxu0 0.0
        %3589 = vmatprep.subr.mxu0 0.0
        %3590 = vmatpush1.msra.mxu0 0.0
        %3591 = vmatprep.subr.mxu0 0.0
        %3592 = vmatpush1.msra.mxu0 0.0
        %3593 = vmatprep.subr.mxu0 0.0
        %3594 = vmatpush1.msra.mxu0 0.0
        %3595 = vmatprep.subr.mxu0 0.0
        %3596 = vmatpush1.msra.mxu0 0.0
        %3597 = vmatprep.subr.mxu0 0.0
        %3598 = vmatpush1.msra.mxu0 0.0
        %3599 = vmatprep.subr.mxu0 0.0
        %3600 = vmatpush1.msra.mxu0 0.0
        %3601 = vmatprep.subr.mxu0 0.0
        %3602 = vmatpush1.msra.mxu0 0.0
        %3603 = vmatprep.subr.mxu0 0.0
        %3604 = vmatpush1.msra.mxu0 0.0
        %3605 = vmatprep.subr.mxu0 0.0
        %3606 = vmatpush1.msra.mxu0 0.0
        %3607 = vmatprep.subr.mxu0 0.0
        %3608 = vmatpush1.msra.mxu0 0.0
        %3609 = vmatprep.subr.mxu0 0.0
        %3610 = vmatpush1.msra.mxu0 0.0
        %3611 = vmatprep.subr.mxu0 0.0
        %3612 = vmatpush1.msra.mxu0 0.0
        %3613 = vmatprep.subr.mxu0 0.0
        %3614 = vmatpush1.msra.mxu0 0.0
        %3615 = vmatprep.subr.mxu0 0.0
        %3616 = vmatpush1.msra.mxu0 0.0
        %3617 = vmatprep.subr.mxu0 0.0
        %3618 = vmatpush1.msra.mxu0 0.0
        %3619 = vmatprep.subr.mxu0 0.0
        %3620 = vmatpush1.msra.mxu0 0.0
        %3621 = vmatprep.subr.mxu0 0.0
        %3622 = vmatpush1.msra.mxu0 0.0
        %3623 = vmatprep.subr.mxu0 0.0
        %3624 = vmatpush1.msra.mxu0 0.0
        %3625 = vmatprep.subr.mxu0 0.0
        %3626 = vmatpush1.msra.mxu0 0.0
        %3627 = vmatprep.mubr.f32.mxu0 0.0
        %v3628 = vand.u32 %v3147, 4294901760
        %3629 = vmatmul.mubr.f32.gmra.mrb[0].mxu0 %v3628
        %v3630 = vpop.f32.mrb[0].mxu0
        %v3631 = vadd.f32 %v3556, %v3630
        %v3632 = vpop.f32.mrb[0].mxu0
        %3633 = vdwg.mxu0
        %v3635 = vsel %vm459, %v3141, 0
        %3637 = vmatprep.subr.mxu0 0.0
        %v3638 = vand.u32 %v3142, 4294901760
        %3639 = vmatpush1.msra.mxu0 %v3638
        %3640 = vmatprep.subr.mxu0 0.0
        %v3641 = vand.u32 %v3143, 4294901760
        %3642 = vmatpush1.msra.mxu0 %v3641
        %3643 = vmatprep.subr.mxu0 0.0
        %v3644 = vand.u32 %v3144, 4294901760
        %3645 = vmatpush1.msra.mxu0 %v3644
        %3646 = vmatprep.subr.mxu0 0.0
        %v3647 = vand.u32 %v3145, 4294901760
        %3648 = vmatpush1.msra.mxu0 %v3647
        %3649 = vmatprep.subr.mxu0 0.0
        %3650 = vmatpush1.msra.mxu0 0.0
        %3651 = vmatprep.subr.mxu0 0.0
        %3652 = vmatpush1.msra.mxu0 0.0
        %3653 = vmatprep.subr.mxu0 0.0
        %3654 = vmatpush1.msra.mxu0 0.0
        %3655 = vmatprep.subr.mxu0 0.0
        %3656 = vmatpush1.msra.mxu0 0.0
        %3657 = vmatprep.subr.mxu0 0.0
        %3658 = vmatpush1.msra.mxu0 0.0
        %3659 = vmatprep.subr.mxu0 0.0
        %3660 = vmatpush1.msra.mxu0 0.0
        %3661 = vmatprep.subr.mxu0 0.0
        %3662 = vmatpush1.msra.mxu0 0.0
        %3663 = vmatprep.subr.mxu0 0.0
        %3664 = vmatpush1.msra.mxu0 0.0
        %3665 = vmatprep.subr.mxu0 0.0
        %3666 = vmatpush1.msra.mxu0 0.0
        %3667 = vmatprep.subr.mxu0 0.0
        %3668 = vmatpush1.msra.mxu0 0.0
        %3669 = vmatprep.subr.mxu0 0.0
        %3670 = vmatpush1.msra.mxu0 0.0
        %3671 = vmatprep.subr.mxu0 0.0
        %3672 = vmatpush1.msra.mxu0 0.0
        %3673 = vmatprep.subr.mxu0 0.0
        %3674 = vmatpush1.msra.mxu0 0.0
        %3675 = vmatprep.subr.mxu0 0.0
        %3676 = vmatpush1.msra.mxu0 0.0
        %3677 = vmatprep.subr.mxu0 0.0
        %3678 = vmatpush1.msra.mxu0 0.0
        %3679 = vmatprep.subr.mxu0 0.0
        %3680 = vmatpush1.msra.mxu0 0.0
        %3681 = vmatprep.subr.mxu0 0.0
        %3682 = vmatpush1.msra.mxu0 0.0
        %3683 = vmatprep.subr.mxu0 0.0
        %3684 = vmatpush1.msra.mxu0 0.0
        %3685 = vmatprep.subr.mxu0 0.0
        %3686 = vmatpush1.msra.mxu0 0.0
        %3687 = vmatprep.subr.mxu0 0.0
        %3688 = vmatpush1.msra.mxu0 0.0
        %3689 = vmatprep.subr.mxu0 0.0
        %3690 = vmatpush1.msra.mxu0 0.0
        %3691 = vmatprep.subr.mxu0 0.0
        %3692 = vmatpush1.msra.mxu0 0.0
        %3693 = vmatprep.subr.mxu0 0.0
        %3694 = vmatpush1.msra.mxu0 0.0
        %3695 = vmatprep.subr.mxu0 0.0
        %3696 = vmatpush1.msra.mxu0 0.0
        %3697 = vmatprep.subr.mxu0 0.0
        %3698 = vmatpush1.msra.mxu0 0.0
        %3699 = vmatprep.subr.mxu0 0.0
        %3700 = vmatpush1.msra.mxu0 0.0
        %3701 = vmatprep.subr.mxu0 0.0
        %3702 = vmatpush1.msra.mxu0 0.0
        %3703 = vmatprep.subr.mxu0 0.0
        %3704 = vmatpush1.msra.mxu0 0.0
        %3705 = vmatprep.mubr.f32.mxu0 0.0
        %v3706 = vand.u32 %v3635, 4294901760
        %v3707 = vsub.f32 %v3635, %v3706
        %v3708 = vand.u32 %v3707, 4294901760
        %v3709 = vsub.f32 %v3707, %v3708
        %v3710 = vand.u32 %v3709, 4294901760
        %3711 = vmatmul.mubr.f32.gmra.mrb[0].mxu0 %v3710
        %v3712 = vpop.f32.mrb[0].mxu0
        %v3713 = vadd.f32 0.0, %v3712
        %v3714 = vpop.f32.mrb[0].mxu0
        %3715 = vdwg.mxu0
        %3716 = vmatprep.subr.mxu0 0.0
        %v3717 = vand.u32 %v3142, 4294901760
        %v3718 = vsub.f32 %v3142, %v3717
        %v3719 = vand.u32 %v3718, 4294901760
        %v3720 = vsub.f32 %v3718, %v3719
        %v3721 = vand.u32 %v3720, 4294901760
        %3722 = vmatpush1.msra.mxu0 %v3721
        %3723 = vmatprep.subr.mxu0 0.0
        %v3724 = vand.u32 %v3143, 4294901760
        %v3725 = vsub.f32 %v3143, %v3724
        %v3726 = vand.u32 %v3725, 4294901760
        %v3727 = vsub.f32 %v3725, %v3726
        %v3728 = vand.u32 %v3727, 4294901760
        %3729 = vmatpush1.msra.mxu0 %v3728
        %3730 = vmatprep.subr.mxu0 0.0
        %v3731 = vand.u32 %v3144, 4294901760
        %v3732 = vsub.f32 %v3144, %v3731
        %v3733 = vand.u32 %v3732, 4294901760
        %v3734 = vsub.f32 %v3732, %v3733
        %v3735 = vand.u32 %v3734, 4294901760
        %3736 = vmatpush1.msra.mxu0 %v3735
        %3737 = vmatprep.subr.mxu0 0.0
        %v3738 = vand.u32 %v3145, 4294901760
        %v3739 = vsub.f32 %v3145, %v3738
        %v3740 = vand.u32 %v3739, 4294901760
        %v3741 = vsub.f32 %v3739, %v3740
        %v3742 = vand.u32 %v3741, 4294901760
        %3743 = vmatpush1.msra.mxu0 %v3742
        %3744 = vmatprep.subr.mxu0 0.0
        %3745 = vmatpush1.msra.mxu0 0.0
        %3746 = vmatprep.subr.mxu0 0.0
        %3747 = vmatpush1.msra.mxu0 0.0
        %3748 = vmatprep.subr.mxu0 0.0
        %3749 = vmatpush1.msra.mxu0 0.0
        %3750 = vmatprep.subr.mxu0 0.0
        %3751 = vmatpush1.msra.mxu0 0.0
        %3752 = vmatprep.subr.mxu0 0.0
        %3753 = vmatpush1.msra.mxu0 0.0
        %3754 = vmatprep.subr.mxu0 0.0
        %3755 = vmatpush1.msra.mxu0 0.0
        %3756 = vmatprep.subr.mxu0 0.0
        %3757 = vmatpush1.msra.mxu0 0.0
        %3758 = vmatprep.subr.mxu0 0.0
        %3759 = vmatpush1.msra.mxu0 0.0
        %3760 = vmatprep.subr.mxu0 0.0
        %3761 = vmatpush1.msra.mxu0 0.0
        %3762 = vmatprep.subr.mxu0 0.0
        %3763 = vmatpush1.msra.mxu0 0.0
        %3764 = vmatprep.subr.mxu0 0.0
        %3765 = vmatpush1.msra.mxu0 0.0
        %3766 = vmatprep.subr.mxu0 0.0
        %3767 = vmatpush1.msra.mxu0 0.0
        %3768 = vmatprep.subr.mxu0 0.0
        %3769 = vmatpush1.msra.mxu0 0.0
        %3770 = vmatprep.subr.mxu0 0.0
        %3771 = vmatpush1.msra.mxu0 0.0
        %3772 = vmatprep.subr.mxu0 0.0
        %3773 = vmatpush1.msra.mxu0 0.0
        %3774 = vmatprep.subr.mxu0 0.0
        %3775 = vmatpush1.msra.mxu0 0.0
        %3776 = vmatprep.subr.mxu0 0.0
        %3777 = vmatpush1.msra.mxu0 0.0
        %3778 = vmatprep.subr.mxu0 0.0
        %3779 = vmatpush1.msra.mxu0 0.0
        %3780 = vmatprep.subr.mxu0 0.0
        %3781 = vmatpush1.msra.mxu0 0.0
        %3782 = vmatprep.subr.mxu0 0.0
        %3783 = vmatpush1.msra.mxu0 0.0
        %3784 = vmatprep.subr.mxu0 0.0
        %3785 = vmatpush1.msra.mxu0 0.0
        %3786 = vmatprep.subr.mxu0 0.0
        %3787 = vmatpush1.msra.mxu0 0.0
        %3788 = vmatprep.subr.mxu0 0.0
        %3789 = vmatpush1.msra.mxu0 0.0
        %3790 = vmatprep.subr.mxu0 0.0
        %3791 = vmatpush1.msra.mxu0 0.0
        %3792 = vmatprep.subr.mxu0 0.0
        %3793 = vmatpush1.msra.mxu0 0.0
        %3794 = vmatprep.subr.mxu0 0.0
        %3795 = vmatpush1.msra.mxu0 0.0
        %3796 = vmatprep.subr.mxu0 0.0
        %3797 = vmatpush1.msra.mxu0 0.0
        %3798 = vmatprep.subr.mxu0 0.0
        %3799 = vmatpush1.msra.mxu0 0.0
        %3800 = vmatprep.mubr.f32.mxu0 0.0
        %v3801 = vand.u32 %v3635, 4294901760
        %3802 = vmatmul.mubr.f32.gmra.mrb[0].mxu0 %v3801
        %v3803 = vpop.f32.mrb[0].mxu0
        %v3804 = vadd.f32 %v3713, %v3803
        %v3805 = vpop.f32.mrb[0].mxu0
        %3806 = vdwg.mxu0
        %3807 = vmatprep.subr.mxu0 0.0
        %v3808 = vand.u32 %v3142, 4294901760
        %v3809 = vsub.f32 %v3142, %v3808
        %3810 = vmatpush1.msra.mxu0 %v3809
        %3811 = vmatprep.subr.mxu0 0.0
        %v3812 = vand.u32 %v3143, 4294901760
        %v3813 = vsub.f32 %v3143, %v3812
        %3814 = vmatpush1.msra.mxu0 %v3813
        %3815 = vmatprep.subr.mxu0 0.0
        %v3816 = vand.u32 %v3144, 4294901760
        %v3817 = vsub.f32 %v3144, %v3816
        %3818 = vmatpush1.msra.mxu0 %v3817
        %3819 = vmatprep.subr.mxu0 0.0
        %v3820 = vand.u32 %v3145, 4294901760
        %v3821 = vsub.f32 %v3145, %v3820
        %3822 = vmatpush1.msra.mxu0 %v3821
        %3823 = vmatprep.subr.mxu0 0.0
        %3824 = vmatpush1.msra.mxu0 0.0
        %3825 = vmatprep.subr.mxu0 0.0
        %3826 = vmatpush1.msra.mxu0 0.0
        %3827 = vmatprep.subr.mxu0 0.0
        %3828 = vmatpush1.msra.mxu0 0.0
        %3829 = vmatprep.subr.mxu0 0.0
        %3830 = vmatpush1.msra.mxu0 0.0
        %3831 = vmatprep.subr.mxu0 0.0
        %3832 = vmatpush1.msra.mxu0 0.0
        %3833 = vmatprep.subr.mxu0 0.0
        %3834 = vmatpush1.msra.mxu0 0.0
        %3835 = vmatprep.subr.mxu0 0.0
        %3836 = vmatpush1.msra.mxu0 0.0
        %3837 = vmatprep.subr.mxu0 0.0
        %3838 = vmatpush1.msra.mxu0 0.0
        %3839 = vmatprep.subr.mxu0 0.0
        %3840 = vmatpush1.msra.mxu0 0.0
        %3841 = vmatprep.subr.mxu0 0.0
        %3842 = vmatpush1.msra.mxu0 0.0
        %3843 = vmatprep.subr.mxu0 0.0
        %3844 = vmatpush1.msra.mxu0 0.0
        %3845 = vmatprep.subr.mxu0 0.0
        %3846 = vmatpush1.msra.mxu0 0.0
        %3847 = vmatprep.subr.mxu0 0.0
        %3848 = vmatpush1.msra.mxu0 0.0
        %3849 = vmatprep.subr.mxu0 0.0
        %3850 = vmatpush1.msra.mxu0 0.0
        %3851 = vmatprep.subr.mxu0 0.0
        %3852 = vmatpush1.msra.mxu0 0.0
        %3853 = vmatprep.subr.mxu0 0.0
        %3854 = vmatpush1.msra.mxu0 0.0
        %3855 = vmatprep.subr.mxu0 0.0
        %3856 = vmatpush1.msra.mxu0 0.0
        %3857 = vmatprep.subr.mxu0 0.0
        %3858 = vmatpush1.msra.mxu0 0.0
        %3859 = vmatprep.subr.mxu0 0.0
        %3860 = vmatpush1.msra.mxu0 0.0
        %3861 = vmatprep.subr.mxu0 0.0
        %3862 = vmatpush1.msra.mxu0 0.0
        %3863 = vmatprep.subr.mxu0 0.0
        %3864 = vmatpush1.msra.mxu0 0.0
        %3865 = vmatprep.subr.mxu0 0.0
        %3866 = vmatpush1.msra.mxu0 0.0
        %3867 = vmatprep.subr.mxu0 0.0
        %3868 = vmatpush1.msra.mxu0 0.0
        %3869 = vmatprep.subr.mxu0 0.0
        %3870 = vmatpush1.msra.mxu0 0.0
        %3871 = vmatprep.subr.mxu0 0.0
        %3872 = vmatpush1.msra.mxu0 0.0
        %3873 = vmatprep.subr.mxu0 0.0
        %3874 = vmatpush1.msra.mxu0 0.0
        %3875 = vmatprep.subr.mxu0 0.0
        %3876 = vmatpush1.msra.mxu0 0.0
        %3877 = vmatprep.subr.mxu0 0.0
        %3878 = vmatpush1.msra.mxu0 0.0
        %3879 = vmatprep.mubr.f32.mxu0 0.0
        %v3880 = vand.u32 %v3635, 4294901760
        %v3881 = vsub.f32 %v3635, %v3880
        %3882 = vmatmul.mubr.f32.gmra.mrb[0].mxu0 %v3881
        %v3883 = vpop.f32.mrb[0].mxu0
        %v3884 = vadd.f32 %v3804, %v3883
        %v3885 = vpop.f32.mrb[0].mxu0
        %3886 = vdwg.mxu0
        %3887 = vmatprep.subr.mxu0 0.0
        %v3888 = vand.u32 %v3142, 4294901760
        %3889 = vmatpush1.msra.mxu0 %v3888
        %3890 = vmatprep.subr.mxu0 0.0
        %v3891 = vand.u32 %v3143, 4294901760
        %3892 = vmatpush1.msra.mxu0 %v3891
        %3893 = vmatprep.subr.mxu0 0.0
        %v3894 = vand.u32 %v3144, 4294901760
        %3895 = vmatpush1.msra.mxu0 %v3894
        %3896 = vmatprep.subr.mxu0 0.0
        %v3897 = vand.u32 %v3145, 4294901760
        %3898 = vmatpush1.msra.mxu0 %v3897
        %3899 = vmatprep.subr.mxu0 0.0
        %3900 = vmatpush1.msra.mxu0 0.0
        %3901 = vmatprep.subr.mxu0 0.0
        %3902 = vmatpush1.msra.mxu0 0.0
        %3903 = vmatprep.subr.mxu0 0.0
        %3904 = vmatpush1.msra.mxu0 0.0
        %3905 = vmatprep.subr.mxu0 0.0
        %3906 = vmatpush1.msra.mxu0 0.0
        %3907 = vmatprep.subr.mxu0 0.0
        %3908 = vmatpush1.msra.mxu0 0.0
        %3909 = vmatprep.subr.mxu0 0.0
        %3910 = vmatpush1.msra.mxu0 0.0
        %3911 = vmatprep.subr.mxu0 0.0
        %3912 = vmatpush1.msra.mxu0 0.0
        %3913 = vmatprep.subr.mxu0 0.0
        %3914 = vmatpush1.msra.mxu0 0.0
        %3915 = vmatprep.subr.mxu0 0.0
        %3916 = vmatpush1.msra.mxu0 0.0
        %3917 = vmatprep.subr.mxu0 0.0
        %3918 = vmatpush1.msra.mxu0 0.0
        %3919 = vmatprep.subr.mxu0 0.0
        %3920 = vmatpush1.msra.mxu0 0.0
        %3921 = vmatprep.subr.mxu0 0.0
        %3922 = vmatpush1.msra.mxu0 0.0
        %3923 = vmatprep.subr.mxu0 0.0
        %3924 = vmatpush1.msra.mxu0 0.0
        %3925 = vmatprep.subr.mxu0 0.0
        %3926 = vmatpush1.msra.mxu0 0.0
        %3927 = vmatprep.subr.mxu0 0.0
        %3928 = vmatpush1.msra.mxu0 0.0
        %3929 = vmatprep.subr.mxu0 0.0
        %3930 = vmatpush1.msra.mxu0 0.0
        %3931 = vmatprep.subr.mxu0 0.0
        %3932 = vmatpush1.msra.mxu0 0.0
        %3933 = vmatprep.subr.mxu0 0.0
        %3934 = vmatpush1.msra.mxu0 0.0
        %3935 = vmatprep.subr.mxu0 0.0
        %3936 = vmatpush1.msra.mxu0 0.0
        %3937 = vmatprep.subr.mxu0 0.0
        %3938 = vmatpush1.msra.mxu0 0.0
        %3939 = vmatprep.subr.mxu0 0.0
        %3940 = vmatpush1.msra.mxu0 0.0
        %3941 = vmatprep.subr.mxu0 0.0
        %3942 = vmatpush1.msra.mxu0 0.0
        %3943 = vmatprep.subr.mxu0 0.0
        %3944 = vmatpush1.msra.mxu0 0.0
        %3945 = vmatprep.subr.mxu0 0.0
        %3946 = vmatpush1.msra.mxu0 0.0
        %3947 = vmatprep.subr.mxu0 0.0
        %3948 = vmatpush1.msra.mxu0 0.0
        %3949 = vmatprep.subr.mxu0 0.0
        %3950 = vmatpush1.msra.mxu0 0.0
        %3951 = vmatprep.subr.mxu0 0.0
        %3952 = vmatpush1.msra.mxu0 0.0
        %3953 = vmatprep.subr.mxu0 0.0
        %3954 = vmatpush1.msra.mxu0 0.0
        %3955 = vmatprep.mubr.f32.mxu0 0.0
        %v3956 = vand.u32 %v3635, 4294901760
        %v3957 = vsub.f32 %v3635, %v3956
        %v3958 = vand.u32 %v3957, 4294901760
        %3959 = vmatmul.mubr.f32.gmra.mrb[0].mxu0 %v3958
        %v3960 = vpop.f32.mrb[0].mxu0
        %v3961 = vadd.f32 %v3884, %v3960
        %v3962 = vpop.f32.mrb[0].mxu0
        %3963 = vdwg.mxu0
        %3964 = vmatprep.subr.mxu0 0.0
        %v3965 = vand.u32 %v3142, 4294901760
        %v3966 = vsub.f32 %v3142, %v3965
        %v3967 = vand.u32 %v3966, 4294901760
        %3968 = vmatpush1.msra.mxu0 %v3967
        %3969 = vmatprep.subr.mxu0 0.0
        %v3970 = vand.u32 %v3143, 4294901760
        %v3971 = vsub.f32 %v3143, %v3970
        %v3972 = vand.u32 %v3971, 4294901760
        %3973 = vmatpush1.msra.mxu0 %v3972
        %3974 = vmatprep.subr.mxu0 0.0
        %v3975 = vand.u32 %v3144, 4294901760
        %v3976 = vsub.f32 %v3144, %v3975
        %v3977 = vand.u32 %v3976, 4294901760
        %3978 = vmatpush1.msra.mxu0 %v3977
        %3979 = vmatprep.subr.mxu0 0.0
        %v3980 = vand.u32 %v3145, 4294901760
        %v3981 = vsub.f32 %v3145, %v3980
        %v3982 = vand.u32 %v3981, 4294901760
        %3983 = vmatpush1.msra.mxu0 %v3982
        %3984 = vmatprep.subr.mxu0 0.0
        %3985 = vmatpush1.msra.mxu0 0.0
        %3986 = vmatprep.subr.mxu0 0.0
        %3987 = vmatpush1.msra.mxu0 0.0
        %3988 = vmatprep.subr.mxu0 0.0
        %3989 = vmatpush1.msra.mxu0 0.0
        %3990 = vmatprep.subr.mxu0 0.0
        %3991 = vmatpush1.msra.mxu0 0.0
        %3992 = vmatprep.subr.mxu0 0.0
        %3993 = vmatpush1.msra.mxu0 0.0
        %3994 = vmatprep.subr.mxu0 0.0
        %3995 = vmatpush1.msra.mxu0 0.0
        %3996 = vmatprep.subr.mxu0 0.0
        %3997 = vmatpush1.msra.mxu0 0.0
        %3998 = vmatprep.subr.mxu0 0.0
        %3999 = vmatpush1.msra.mxu0 0.0
        %4000 = vmatprep.subr.mxu0 0.0
        %4001 = vmatpush1.msra.mxu0 0.0
        %4002 = vmatprep.subr.mxu0 0.0
        %4003 = vmatpush1.msra.mxu0 0.0
        %4004 = vmatprep.subr.mxu0 0.0
        %4005 = vmatpush1.msra.mxu0 0.0
        %4006 = vmatprep.subr.mxu0 0.0
        %4007 = vmatpush1.msra.mxu0 0.0
        %4008 = vmatprep.subr.mxu0 0.0
        %4009 = vmatpush1.msra.mxu0 0.0
        %4010 = vmatprep.subr.mxu0 0.0
        %4011 = vmatpush1.msra.mxu0 0.0
        %4012 = vmatprep.subr.mxu0 0.0
        %4013 = vmatpush1.msra.mxu0 0.0
        %4014 = vmatprep.subr.mxu0 0.0
        %4015 = vmatpush1.msra.mxu0 0.0
        %4016 = vmatprep.subr.mxu0 0.0
        %4017 = vmatpush1.msra.mxu0 0.0
        %4018 = vmatprep.subr.mxu0 0.0
        %4019 = vmatpush1.msra.mxu0 0.0
        %4020 = vmatprep.subr.mxu0 0.0
        %4021 = vmatpush1.msra.mxu0 0.0
        %4022 = vmatprep.subr.mxu0 0.0
        %4023 = vmatpush1.msra.mxu0 0.0
        %4024 = vmatprep.subr.mxu0 0.0
        %4025 = vmatpush1.msra.mxu0 0.0
        %4026 = vmatprep.subr.mxu0 0.0
        %4027 = vmatpush1.msra.mxu0 0.0
        %4028 = vmatprep.subr.mxu0 0.0
        %4029 = vmatpush1.msra.mxu0 0.0
        %4030 = vmatprep.subr.mxu0 0.0
        %4031 = vmatpush1.msra.mxu0 0.0
        %4032 = vmatprep.subr.mxu0 0.0
        %4033 = vmatpush1.msra.mxu0 0.0
        %4034 = vmatprep.subr.mxu0 0.0
        %4035 = vmatpush1.msra.mxu0 0.0
        %4036 = vmatprep.subr.mxu0 0.0
        %4037 = vmatpush1.msra.mxu0 0.0
        %4038 = vmatprep.subr.mxu0 0.0
        %4039 = vmatpush1.msra.mxu0 0.0
        %4040 = vmatprep.mubr.f32.mxu0 0.0
        %v4041 = vand.u32 %v3635, 4294901760
        %4042 = vmatmul.mubr.f32.gmra.mrb[0].mxu0 %v4041
        %v4043 = vpop.f32.mrb[0].mxu0
        %v4044 = vadd.f32 %v3961, %v4043
        %v4045 = vpop.f32.mrb[0].mxu0
        %4046 = vdwg.mxu0
        %4047 = vmatprep.subr.mxu0 0.0
        %v4048 = vand.u32 %v3142, 4294901760
        %4049 = vmatpush1.msra.mxu0 %v4048
        %4050 = vmatprep.subr.mxu0 0.0
        %v4051 = vand.u32 %v3143, 4294901760
        %4052 = vmatpush1.msra.mxu0 %v4051
        %4053 = vmatprep.subr.mxu0 0.0
        %v4054 = vand.u32 %v3144, 4294901760
        %4055 = vmatpush1.msra.mxu0 %v4054
        %4056 = vmatprep.subr.mxu0 0.0
        %v4057 = vand.u32 %v3145, 4294901760
        %4058 = vmatpush1.msra.mxu0 %v4057
        %4059 = vmatprep.subr.mxu0 0.0
        %4060 = vmatpush1.msra.mxu0 0.0
        %4061 = vmatprep.subr.mxu0 0.0
        %4062 = vmatpush1.msra.mxu0 0.0
        %4063 = vmatprep.subr.mxu0 0.0
        %4064 = vmatpush1.msra.mxu0 0.0
        %4065 = vmatprep.subr.mxu0 0.0
        %4066 = vmatpush1.msra.mxu0 0.0
        %4067 = vmatprep.subr.mxu0 0.0
        %4068 = vmatpush1.msra.mxu0 0.0
        %4069 = vmatprep.subr.mxu0 0.0
        %4070 = vmatpush1.msra.mxu0 0.0
        %4071 = vmatprep.subr.mxu0 0.0
        %4072 = vmatpush1.msra.mxu0 0.0
        %4073 = vmatprep.subr.mxu0 0.0
        %4074 = vmatpush1.msra.mxu0 0.0
        %4075 = vmatprep.subr.mxu0 0.0
        %4076 = vmatpush1.msra.mxu0 0.0
        %4077 = vmatprep.subr.mxu0 0.0
        %4078 = vmatpush1.msra.mxu0 0.0
        %4079 = vmatprep.subr.mxu0 0.0
        %4080 = vmatpush1.msra.mxu0 0.0
        %4081 = vmatprep.subr.mxu0 0.0
        %4082 = vmatpush1.msra.mxu0 0.0
        %4083 = vmatprep.subr.mxu0 0.0
        %4084 = vmatpush1.msra.mxu0 0.0
        %4085 = vmatprep.subr.mxu0 0.0
        %4086 = vmatpush1.msra.mxu0 0.0
        %4087 = vmatprep.subr.mxu0 0.0
        %4088 = vmatpush1.msra.mxu0 0.0
        %4089 = vmatprep.subr.mxu0 0.0
        %4090 = vmatpush1.msra.mxu0 0.0
        %4091 = vmatprep.subr.mxu0 0.0
        %4092 = vmatpush1.msra.mxu0 0.0
        %4093 = vmatprep.subr.mxu0 0.0
        %4094 = vmatpush1.msra.mxu0 0.0
        %4095 = vmatprep.subr.mxu0 0.0
        %4096 = vmatpush1.msra.mxu0 0.0
        %4097 = vmatprep.subr.mxu0 0.0
        %4098 = vmatpush1.msra.mxu0 0.0
        %4099 = vmatprep.subr.mxu0 0.0
        %4100 = vmatpush1.msra.mxu0 0.0
        %4101 = vmatprep.subr.mxu0 0.0
        %4102 = vmatpush1.msra.mxu0 0.0
        %4103 = vmatprep.subr.mxu0 0.0
        %4104 = vmatpush1.msra.mxu0 0.0
        %4105 = vmatprep.subr.mxu0 0.0
        %4106 = vmatpush1.msra.mxu0 0.0
        %4107 = vmatprep.subr.mxu0 0.0
        %4108 = vmatpush1.msra.mxu0 0.0
        %4109 = vmatprep.subr.mxu0 0.0
        %4110 = vmatpush1.msra.mxu0 0.0
        %4111 = vmatprep.subr.mxu0 0.0
        %4112 = vmatpush1.msra.mxu0 0.0
        %4113 = vmatprep.subr.mxu0 0.0
        %4114 = vmatpush1.msra.mxu0 0.0
        %4115 = vmatprep.mubr.f32.mxu0 0.0
        %v4116 = vand.u32 %v3635, 4294901760
        %4117 = vmatmul.mubr.f32.gmra.mrb[0].mxu0 %v4116
        %v4118 = vpop.f32.mrb[0].mxu0
        %v4119 = vadd.f32 %v4044, %v4118
        %v4120 = vpop.f32.mrb[0].mxu0
        %4121 = vdwg.mxu0
        %v4122 = vmul.f32 %v3631, 0.00390625
        %v4123 = vmul.f32 %v4119, 0.00390625
        %v4124 = vmul.f32 %v4122, %v4122
        %v4125 = vsub.f32 %v4123, %v4124
        %v4126 = vadd.f32 %v4125, 1e-05
        %v4127 = vrsqrt.pop %v4126
        %v4128 = vld [vmem:[%s7] sm:$0xff]
        %v4130 = vsel %vm1497, %v4122, 0
        %4132 = vmatprep.subr.mxu0 0.0
        %v4133 = vand.u32 %v4128, 4294901760
        %4134 = vmatpush1.msra.mxu0 %v4133
        %4135 = vmatprep.subr.mxu0 0.0
        %4136 = vmatpush1.msra.mxu0 0.0
        %4137 = vmatprep.subr.mxu0 0.0
        %4138 = vmatpush1.msra.mxu0 0.0
        %4139 = vmatprep.subr.mxu0 0.0
        %4140 = vmatpush1.msra.mxu0 0.0
        %4141 = vmatprep.subr.mxu0 0.0
        %4142 = vmatpush1.msra.mxu0 0.0
        %4143 = vmatprep.subr.mxu0 0.0
        %4144 = vmatpush1.msra.mxu0 0.0
        %4145 = vmatprep.subr.mxu0 0.0
        %4146 = vmatpush1.msra.mxu0 0.0
        %4147 = vmatprep.subr.mxu0 0.0
        %4148 = vmatpush1.msra.mxu0 0.0
        %4149 = vmatprep.subr.mxu0 0.0
        %4150 = vmatpush1.msra.mxu0 0.0
        %4151 = vmatprep.subr.mxu0 0.0
        %4152 = vmatpush1.msra.mxu0 0.0
        %4153 = vmatprep.subr.mxu0 0.0
        %4154 = vmatpush1.msra.mxu0 0.0
        %4155 = vmatprep.subr.mxu0 0.0
        %4156 = vmatpush1.msra.mxu0 0.0
        %4157 = vmatprep.subr.mxu0 0.0
        %4158 = vmatpush1.msra.mxu0 0.0
        %4159 = vmatprep.subr.mxu0 0.0
        %4160 = vmatpush1.msra.mxu0 0.0
        %4161 = vmatprep.subr.mxu0 0.0
        %4162 = vmatpush1.msra.mxu0 0.0
        %4163 = vmatprep.subr.mxu0 0.0
        %4164 = vmatpush1.msra.mxu0 0.0
        %4165 = vmatprep.subr.mxu0 0.0
        %4166 = vmatpush1.msra.mxu0 0.0
        %4167 = vmatprep.subr.mxu0 0.0
        %4168 = vmatpush1.msra.mxu0 0.0
        %4169 = vmatprep.subr.mxu0 0.0
        %4170 = vmatpush1.msra.mxu0 0.0
        %4171 = vmatprep.subr.mxu0 0.0
        %4172 = vmatpush1.msra.mxu0 0.0
        %4173 = vmatprep.subr.mxu0 0.0
        %4174 = vmatpush1.msra.mxu0 0.0
        %4175 = vmatprep.subr.mxu0 0.0
        %4176 = vmatpush1.msra.mxu0 0.0
        %4177 = vmatprep.subr.mxu0 0.0
        %4178 = vmatpush1.msra.mxu0 0.0
        %4179 = vmatprep.subr.mxu0 0.0
        %4180 = vmatpush1.msra.mxu0 0.0
        %4181 = vmatprep.subr.mxu0 0.0
        %4182 = vmatpush1.msra.mxu0 0.0
        %4183 = vmatprep.subr.mxu0 0.0
        %4184 = vmatpush1.msra.mxu0 0.0
        %4185 = vmatprep.subr.mxu0 0.0
        %4186 = vmatpush1.msra.mxu0 0.0
        %4187 = vmatprep.subr.mxu0 0.0
        %4188 = vmatpush1.msra.mxu0 0.0
        %4189 = vmatprep.subr.mxu0 0.0
        %4190 = vmatpush1.msra.mxu0 0.0
        %4191 = vmatprep.subr.mxu0 0.0
        %4192 = vmatpush1.msra.mxu0 0.0
        %4193 = vmatprep.subr.mxu0 0.0
        %4194 = vmatpush1.msra.mxu0 0.0
        %4195 = vmatprep.subr.mxu0 0.0
        %4196 = vmatpush1.msra.mxu0 0.0
        %4197 = vmatprep.mubr.f32.mxu0 0.0
        %v4198 = vand.u32 %v4130, 4294901760
        %v4199 = vsub.f32 %v4130, %v4198
        %v4200 = vand.u32 %v4199, 4294901760
        %v4201 = vsub.f32 %v4199, %v4200
        %v4202 = vand.u32 %v4201, 4294901760
        %4203 = vmatmul.mubr.f32.gmra.mrb[0].mxu0 %v4202
        %v4204 = vpop.f32.mrb[0].mxu0
        %v4205 = vadd.f32 0.0, %v4204
        %v4206 = vpop.f32.mrb[0].mxu0
        %4207 = vdwg.mxu0
        %4208 = vmatprep.subr.mxu0 0.0
        %v4209 = vand.u32 %v4128, 4294901760
        %v4210 = vsub.f32 %v4128, %v4209
        %v4211 = vand.u32 %v4210, 4294901760
        %v4212 = vsub.f32 %v4210, %v4211
        %v4213 = vand.u32 %v4212, 4294901760
        %4214 = vmatpush1.msra.mxu0 %v4213
        %4215 = vmatprep.subr.mxu0 0.0
        %4216 = vmatpush1.msra.mxu0 0.0
        %4217 = vmatprep.subr.mxu0 0.0
        %4218 = vmatpush1.msra.mxu0 0.0
        %4219 = vmatprep.subr.mxu0 0.0
        %4220 = vmatpush1.msra.mxu0 0.0
        %4221 = vmatprep.subr.mxu0 0.0
        %4222 = vmatpush1.msra.mxu0 0.0
        %4223 = vmatprep.subr.mxu0 0.0
        %4224 = vmatpush1.msra.mxu0 0.0
        %4225 = vmatprep.subr.mxu0 0.0
        %4226 = vmatpush1.msra.mxu0 0.0
        %4227 = vmatprep.subr.mxu0 0.0
        %4228 = vmatpush1.msra.mxu0 0.0
        %4229 = vmatprep.subr.mxu0 0.0
        %4230 = vmatpush1.msra.mxu0 0.0
        %4231 = vmatprep.subr.mxu0 0.0
        %4232 = vmatpush1.msra.mxu0 0.0
        %4233 = vmatprep.subr.mxu0 0.0
        %4234 = vmatpush1.msra.mxu0 0.0
        %4235 = vmatprep.subr.mxu0 0.0
        %4236 = vmatpush1.msra.mxu0 0.0
        %4237 = vmatprep.subr.mxu0 0.0
        %4238 = vmatpush1.msra.mxu0 0.0
        %4239 = vmatprep.subr.mxu0 0.0
        %4240 = vmatpush1.msra.mxu0 0.0
        %4241 = vmatprep.subr.mxu0 0.0
        %4242 = vmatpush1.msra.mxu0 0.0
        %4243 = vmatprep.subr.mxu0 0.0
        %4244 = vmatpush1.msra.mxu0 0.0
        %4245 = vmatprep.subr.mxu0 0.0
        %4246 = vmatpush1.msra.mxu0 0.0
        %4247 = vmatprep.subr.mxu0 0.0
        %4248 = vmatpush1.msra.mxu0 0.0
        %4249 = vmatprep.subr.mxu0 0.0
        %4250 = vmatpush1.msra.mxu0 0.0
        %4251 = vmatprep.subr.mxu0 0.0
        %4252 = vmatpush1.msra.mxu0 0.0
        %4253 = vmatprep.subr.mxu0 0.0
        %4254 = vmatpush1.msra.mxu0 0.0
        %4255 = vmatprep.subr.mxu0 0.0
        %4256 = vmatpush1.msra.mxu0 0.0
        %4257 = vmatprep.subr.mxu0 0.0
        %4258 = vmatpush1.msra.mxu0 0.0
        %4259 = vmatprep.subr.mxu0 0.0
        %4260 = vmatpush1.msra.mxu0 0.0
        %4261 = vmatprep.subr.mxu0 0.0
        %4262 = vmatpush1.msra.mxu0 0.0
        %4263 = vmatprep.subr.mxu0 0.0
        %4264 = vmatpush1.msra.mxu0 0.0
        %4265 = vmatprep.subr.mxu0 0.0
        %4266 = vmatpush1.msra.mxu0 0.0
        %4267 = vmatprep.subr.mxu0 0.0
        %4268 = vmatpush1.msra.mxu0 0.0
        %4269 = vmatprep.subr.mxu0 0.0
        %4270 = vmatpush1.msra.mxu0 0.0
        %4271 = vmatprep.subr.mxu0 0.0
        %4272 = vmatpush1.msra.mxu0 0.0
        %4273 = vmatprep.subr.mxu0 0.0
        %4274 = vmatpush1.msra.mxu0 0.0
        %4275 = vmatprep.subr.mxu0 0.0
        %4276 = vmatpush1.msra.mxu0 0.0
        %4277 = vmatprep.mubr.f32.mxu0 0.0
        %v4278 = vand.u32 %v4130, 4294901760
        %4279 = vmatmul.mubr.f32.gmra.mrb[0].mxu0 %v4278
        %v4280 = vpop.f32.mrb[0].mxu0
        %v4281 = vadd.f32 %v4205, %v4280
        %v4282 = vpop.f32.mrb[0].mxu0
        %4283 = vdwg.mxu0
        %4284 = vmatprep.subr.mxu0 0.0
        %v4285 = vand.u32 %v4128, 4294901760
        %v4286 = vsub.f32 %v4128, %v4285
        %4287 = vmatpush1.msra.mxu0 %v4286
        %4288 = vmatprep.subr.mxu0 0.0
        %4289 = vmatpush1.msra.mxu0 0.0
        %4290 = vmatprep.subr.mxu0 0.0
        %4291 = vmatpush1.msra.mxu0 0.0
        %4292 = vmatprep.subr.mxu0 0.0
        %4293 = vmatpush1.msra.mxu0 0.0
        %4294 = vmatprep.subr.mxu0 0.0
        %4295 = vmatpush1.msra.mxu0 0.0
        %4296 = vmatprep.subr.mxu0 0.0
        %4297 = vmatpush1.msra.mxu0 0.0
        %4298 = vmatprep.subr.mxu0 0.0
        %4299 = vmatpush1.msra.mxu0 0.0
        %4300 = vmatprep.subr.mxu0 0.0
        %4301 = vmatpush1.msra.mxu0 0.0
        %4302 = vmatprep.subr.mxu0 0.0
        %4303 = vmatpush1.msra.mxu0 0.0
        %4304 = vmatprep.subr.mxu0 0.0
        %4305 = vmatpush1.msra.mxu0 0.0
        %4306 = vmatprep.subr.mxu0 0.0
        %4307 = vmatpush1.msra.mxu0 0.0
        %4308 = vmatprep.subr.mxu0 0.0
        %4309 = vmatpush1.msra.mxu0 0.0
        %4310 = vmatprep.subr.mxu0 0.0
        %4311 = vmatpush1.msra.mxu0 0.0
        %4312 = vmatprep.subr.mxu0 0.0
        %4313 = vmatpush1.msra.mxu0 0.0
        %4314 = vmatprep.subr.mxu0 0.0
        %4315 = vmatpush1.msra.mxu0 0.0
        %4316 = vmatprep.subr.mxu0 0.0
        %4317 = vmatpush1.msra.mxu0 0.0
        %4318 = vmatprep.subr.mxu0 0.0
        %4319 = vmatpush1.msra.mxu0 0.0
        %4320 = vmatprep.subr.mxu0 0.0
        %4321 = vmatpush1.msra.mxu0 0.0
        %4322 = vmatprep.subr.mxu0 0.0
        %4323 = vmatpush1.msra.mxu0 0.0
        %4324 = vmatprep.subr.mxu0 0.0
        %4325 = vmatpush1.msra.mxu0 0.0
        %4326 = vmatprep.subr.mxu0 0.0
        %4327 = vmatpush1.msra.mxu0 0.0
        %4328 = vmatprep.subr.mxu0 0.0
        %4329 = vmatpush1.msra.mxu0 0.0
        %4330 = vmatprep.subr.mxu0 0.0
        %4331 = vmatpush1.msra.mxu0 0.0
        %4332 = vmatprep.subr.mxu0 0.0
        %4333 = vmatpush1.msra.mxu0 0.0
        %4334 = vmatprep.subr.mxu0 0.0
        %4335 = vmatpush1.msra.mxu0 0.0
        %4336 = vmatprep.subr.mxu0 0.0
        %4337 = vmatpush1.msra.mxu0 0.0
        %4338 = vmatprep.subr.mxu0 0.0
        %4339 = vmatpush1.msra.mxu0 0.0
        %4340 = vmatprep.subr.mxu0 0.0
        %4341 = vmatpush1.msra.mxu0 0.0
        %4342 = vmatprep.subr.mxu0 0.0
        %4343 = vmatpush1.msra.mxu0 0.0
        %4344 = vmatprep.subr.mxu0 0.0
        %4345 = vmatpush1.msra.mxu0 0.0
        %4346 = vmatprep.subr.mxu0 0.0
        %4347 = vmatpush1.msra.mxu0 0.0
        %4348 = vmatprep.subr.mxu0 0.0
        %4349 = vmatpush1.msra.mxu0 0.0
        %4350 = vmatprep.mubr.f32.mxu0 0.0
        %v4351 = vand.u32 %v4130, 4294901760
        %v4352 = vsub.f32 %v4130, %v4351
        %4353 = vmatmul.mubr.f32.gmra.mrb[0].mxu0 %v4352
        %v4354 = vpop.f32.mrb[0].mxu0
        %v4355 = vadd.f32 %v4281, %v4354
        %v4356 = vpop.f32.mrb[0].mxu0
        %4357 = vdwg.mxu0
        %4358 = vmatprep.subr.mxu0 0.0
        %v4359 = vand.u32 %v4128, 4294901760
        %4360 = vmatpush1.msra.mxu0 %v4359
        %4361 = vmatprep.subr.mxu0 0.0
        %4362 = vmatpush1.msra.mxu0 0.0
        %4363 = vmatprep.subr.mxu0 0.0
        %4364 = vmatpush1.msra.mxu0 0.0
        %4365 = vmatprep.subr.mxu0 0.0
        %4366 = vmatpush1.msra.mxu0 0.0
        %4367 = vmatprep.subr.mxu0 0.0
        %4368 = vmatpush1.msra.mxu0 0.0
        %4369 = vmatprep.subr.mxu0 0.0
        %4370 = vmatpush1.msra.mxu0 0.0
        %4371 = vmatprep.subr.mxu0 0.0
        %4372 = vmatpush1.msra.mxu0 0.0
        %4373 = vmatprep.subr.mxu0 0.0
        %4374 = vmatpush1.msra.mxu0 0.0
        %4375 = vmatprep.subr.mxu0 0.0
        %4376 = vmatpush1.msra.mxu0 0.0
        %4377 = vmatprep.subr.mxu0 0.0
        %4378 = vmatpush1.msra.mxu0 0.0
        %4379 = vmatprep.subr.mxu0 0.0
        %4380 = vmatpush1.msra.mxu0 0.0
        %4381 = vmatprep.subr.mxu0 0.0
        %4382 = vmatpush1.msra.mxu0 0.0
        %4383 = vmatprep.subr.mxu0 0.0
        %4384 = vmatpush1.msra.mxu0 0.0
        %4385 = vmatprep.subr.mxu0 0.0
        %4386 = vmatpush1.msra.mxu0 0.0
        %4387 = vmatprep.subr.mxu0 0.0
        %4388 = vmatpush1.msra.mxu0 0.0
        %4389 = vmatprep.subr.mxu0 0.0
        %4390 = vmatpush1.msra.mxu0 0.0
        %4391 = vmatprep.subr.mxu0 0.0
        %4392 = vmatpush1.msra.mxu0 0.0
        %4393 = vmatprep.subr.mxu0 0.0
        %4394 = vmatpush1.msra.mxu0 0.0
        %4395 = vmatprep.subr.mxu0 0.0
        %4396 = vmatpush1.msra.mxu0 0.0
        %4397 = vmatprep.subr.mxu0 0.0
        %4398 = vmatpush1.msra.mxu0 0.0
        %4399 = vmatprep.subr.mxu0 0.0
        %4400 = vmatpush1.msra.mxu0 0.0
        %4401 = vmatprep.subr.mxu0 0.0
        %4402 = vmatpush1.msra.mxu0 0.0
        %4403 = vmatprep.subr.mxu0 0.0
        %4404 = vmatpush1.msra.mxu0 0.0
        %4405 = vmatprep.subr.mxu0 0.0
        %4406 = vmatpush1.msra.mxu0 0.0
        %4407 = vmatprep.subr.mxu0 0.0
        %4408 = vmatpush1.msra.mxu0 0.0
        %4409 = vmatprep.subr.mxu0 0.0
        %4410 = vmatpush1.msra.mxu0 0.0
        %4411 = vmatprep.subr.mxu0 0.0
        %4412 = vmatpush1.msra.mxu0 0.0
        %4413 = vmatprep.subr.mxu0 0.0
        %4414 = vmatpush1.msra.mxu0 0.0
        %4415 = vmatprep.subr.mxu0 0.0
        %4416 = vmatpush1.msra.mxu0 0.0
        %4417 = vmatprep.subr.mxu0 0.0
        %4418 = vmatpush1.msra.mxu0 0.0
        %4419 = vmatprep.subr.mxu0 0.0
        %4420 = vmatpush1.msra.mxu0 0.0
        %4421 = vmatprep.subr.mxu0 0.0
        %4422 = vmatpush1.msra.mxu0 0.0
        %4423 = vmatprep.mubr.f32.mxu0 0.0
        %v4424 = vand.u32 %v4130, 4294901760
        %v4425 = vsub.f32 %v4130, %v4424
        %v4426 = vand.u32 %v4425, 4294901760
        %4427 = vmatmul.mubr.f32.gmra.mrb[0].mxu0 %v4426
        %v4428 = vpop.f32.mrb[0].mxu0
        %v4429 = vadd.f32 %v4355, %v4428
        %v4430 = vpop.f32.mrb[0].mxu0
        %4431 = vdwg.mxu0
        %4432 = vmatprep.subr.mxu0 0.0
        %v4433 = vand.u32 %v4128, 4294901760
        %v4434 = vsub.f32 %v4128, %v4433
        %v4435 = vand.u32 %v4434, 4294901760
        %4436 = vmatpush1.msra.mxu0 %v4435
        %4437 = vmatprep.subr.mxu0 0.0
        %4438 = vmatpush1.msra.mxu0 0.0
        %4439 = vmatprep.subr.mxu0 0.0
        %4440 = vmatpush1.msra.mxu0 0.0
        %4441 = vmatprep.subr.mxu0 0.0
        %4442 = vmatpush1.msra.mxu0 0.0
        %4443 = vmatprep.subr.mxu0 0.0
        %4444 = vmatpush1.msra.mxu0 0.0
        %4445 = vmatprep.subr.mxu0 0.0
        %4446 = vmatpush1.msra.mxu0 0.0
        %4447 = vmatprep.subr.mxu0 0.0
        %4448 = vmatpush1.msra.mxu0 0.0
        %4449 = vmatprep.subr.mxu0 0.0
        %4450 = vmatpush1.msra.mxu0 0.0
        %4451 = vmatprep.subr.mxu0 0.0
        %4452 = vmatpush1.msra.mxu0 0.0
        %4453 = vmatprep.subr.mxu0 0.0
        %4454 = vmatpush1.msra.mxu0 0.0
        %4455 = vmatprep.subr.mxu0 0.0
        %4456 = vmatpush1.msra.mxu0 0.0
        %4457 = vmatprep.subr.mxu0 0.0
        %4458 = vmatpush1.msra.mxu0 0.0
        %4459 = vmatprep.subr.mxu0 0.0
        %4460 = vmatpush1.msra.mxu0 0.0
        %4461 = vmatprep.subr.mxu0 0.0
        %4462 = vmatpush1.msra.mxu0 0.0
        %4463 = vmatprep.subr.mxu0 0.0
        %4464 = vmatpush1.msra.mxu0 0.0
        %4465 = vmatprep.subr.mxu0 0.0
        %4466 = vmatpush1.msra.mxu0 0.0
        %4467 = vmatprep.subr.mxu0 0.0
        %4468 = vmatpush1.msra.mxu0 0.0
        %4469 = vmatprep.subr.mxu0 0.0
        %4470 = vmatpush1.msra.mxu0 0.0
        %4471 = vmatprep.subr.mxu0 0.0
        %4472 = vmatpush1.msra.mxu0 0.0
        %4473 = vmatprep.subr.mxu0 0.0
        %4474 = vmatpush1.msra.mxu0 0.0
        %4475 = vmatprep.subr.mxu0 0.0
        %4476 = vmatpush1.msra.mxu0 0.0
        %4477 = vmatprep.subr.mxu0 0.0
        %4478 = vmatpush1.msra.mxu0 0.0
        %4479 = vmatprep.subr.mxu0 0.0
        %4480 = vmatpush1.msra.mxu0 0.0
        %4481 = vmatprep.subr.mxu0 0.0
        %4482 = vmatpush1.msra.mxu0 0.0
        %4483 = vmatprep.subr.mxu0 0.0
        %4484 = vmatpush1.msra.mxu0 0.0
        %4485 = vmatprep.subr.mxu0 0.0
        %4486 = vmatpush1.msra.mxu0 0.0
        %4487 = vmatprep.subr.mxu0 0.0
        %4488 = vmatpush1.msra.mxu0 0.0
        %4489 = vmatprep.subr.mxu0 0.0
        %4490 = vmatpush1.msra.mxu0 0.0
        %4491 = vmatprep.subr.mxu0 0.0
        %4492 = vmatpush1.msra.mxu0 0.0
        %4493 = vmatprep.subr.mxu0 0.0
        %4494 = vmatpush1.msra.mxu0 0.0
        %4495 = vmatprep.subr.mxu0 0.0
        %4496 = vmatpush1.msra.mxu0 0.0
        %4497 = vmatprep.subr.mxu0 0.0
        %4498 = vmatpush1.msra.mxu0 0.0
        %4499 = vmatprep.mubr.f32.mxu0 0.0
        %v4500 = vand.u32 %v4130, 4294901760
        %4501 = vmatmul.mubr.f32.gmra.mrb[0].mxu0 %v4500
        %v4502 = vpop.f32.mrb[0].mxu0
        %v4503 = vadd.f32 %v4429, %v4502
        %v4504 = vpop.f32.mrb[0].mxu0
        %4505 = vdwg.mxu0
        %4506 = vmatprep.subr.mxu0 0.0
        %v4507 = vand.u32 %v4128, 4294901760
        %4508 = vmatpush1.msra.mxu0 %v4507
        %4509 = vmatprep.subr.mxu0 0.0
        %4510 = vmatpush1.msra.mxu0 0.0
        %4511 = vmatprep.subr.mxu0 0.0
        %4512 = vmatpush1.msra.mxu0 0.0
        %4513 = vmatprep.subr.mxu0 0.0
        %4514 = vmatpush1.msra.mxu0 0.0
        %4515 = vmatprep.subr.mxu0 0.0
        %4516 = vmatpush1.msra.mxu0 0.0
        %4517 = vmatprep.subr.mxu0 0.0
        %4518 = vmatpush1.msra.mxu0 0.0
        %4519 = vmatprep.subr.mxu0 0.0
        %4520 = vmatpush1.msra.mxu0 0.0
        %4521 = vmatprep.subr.mxu0 0.0
        %4522 = vmatpush1.msra.mxu0 0.0
        %4523 = vmatprep.subr.mxu0 0.0
        %4524 = vmatpush1.msra.mxu0 0.0
        %4525 = vmatprep.subr.mxu0 0.0
        %4526 = vmatpush1.msra.mxu0 0.0
        %4527 = vmatprep.subr.mxu0 0.0
        %4528 = vmatpush1.msra.mxu0 0.0
        %4529 = vmatprep.subr.mxu0 0.0
        %4530 = vmatpush1.msra.mxu0 0.0
        %4531 = vmatprep.subr.mxu0 0.0
        %4532 = vmatpush1.msra.mxu0 0.0
        %4533 = vmatprep.subr.mxu0 0.0
        %4534 = vmatpush1.msra.mxu0 0.0
        %4535 = vmatprep.subr.mxu0 0.0
        %4536 = vmatpush1.msra.mxu0 0.0
        %4537 = vmatprep.subr.mxu0 0.0
        %4538 = vmatpush1.msra.mxu0 0.0
        %4539 = vmatprep.subr.mxu0 0.0
        %4540 = vmatpush1.msra.mxu0 0.0
        %4541 = vmatprep.subr.mxu0 0.0
        %4542 = vmatpush1.msra.mxu0 0.0
        %4543 = vmatprep.subr.mxu0 0.0
        %4544 = vmatpush1.msra.mxu0 0.0
        %4545 = vmatprep.subr.mxu0 0.0
        %4546 = vmatpush1.msra.mxu0 0.0
        %4547 = vmatprep.subr.mxu0 0.0
        %4548 = vmatpush1.msra.mxu0 0.0
        %4549 = vmatprep.subr.mxu0 0.0
        %4550 = vmatpush1.msra.mxu0 0.0
        %4551 = vmatprep.subr.mxu0 0.0
        %4552 = vmatpush1.msra.mxu0 0.0
        %4553 = vmatprep.subr.mxu0 0.0
        %4554 = vmatpush1.msra.mxu0 0.0
        %4555 = vmatprep.subr.mxu0 0.0
        %4556 = vmatpush1.msra.mxu0 0.0
        %4557 = vmatprep.subr.mxu0 0.0
        %4558 = vmatpush1.msra.mxu0 0.0
        %4559 = vmatprep.subr.mxu0 0.0
        %4560 = vmatpush1.msra.mxu0 0.0
        %4561 = vmatprep.subr.mxu0 0.0
        %4562 = vmatpush1.msra.mxu0 0.0
        %4563 = vmatprep.subr.mxu0 0.0
        %4564 = vmatpush1.msra.mxu0 0.0
        %4565 = vmatprep.subr.mxu0 0.0
        %4566 = vmatpush1.msra.mxu0 0.0
        %4567 = vmatprep.subr.mxu0 0.0
        %4568 = vmatpush1.msra.mxu0 0.0
        %4569 = vmatprep.subr.mxu0 0.0
        %4570 = vmatpush1.msra.mxu0 0.0
        %4571 = vmatprep.mubr.f32.mxu0 0.0
        %v4572 = vand.u32 %v4130, 4294901760
        %4573 = vmatmul.mubr.f32.gmra.mrb[0].mxu0 %v4572
        %v4574 = vpop.f32.mrb[0].mxu0
        %v4575 = vadd.f32 %v4503, %v4574
        %v4576 = vpop.f32.mrb[0].mxu0
        %4577 = vdwg.mxu0
        %v4579 = vsel %vm1497, %v4127, 0
        %4581 = vmatprep.subr.mxu0 0.0
        %v4582 = vand.u32 %v4128, 4294901760
        %4583 = vmatpush1.msra.mxu0 %v4582
        %4584 = vmatprep.subr.mxu0 0.0
        %4585 = vmatpush1.msra.mxu0 0.0
        %4586 = vmatprep.subr.mxu0 0.0
        %4587 = vmatpush1.msra.mxu0 0.0
        %4588 = vmatprep.subr.mxu0 0.0
        %4589 = vmatpush1.msra.mxu0 0.0
        %4590 = vmatprep.subr.mxu0 0.0
        %4591 = vmatpush1.msra.mxu0 0.0
        %4592 = vmatprep.subr.mxu0 0.0
        %4593 = vmatpush1.msra.mxu0 0.0
        %4594 = vmatprep.subr.mxu0 0.0
        %4595 = vmatpush1.msra.mxu0 0.0
        %4596 = vmatprep.subr.mxu0 0.0
        %4597 = vmatpush1.msra.mxu0 0.0
        %4598 = vmatprep.subr.mxu0 0.0
        %4599 = vmatpush1.msra.mxu0 0.0
        %4600 = vmatprep.subr.mxu0 0.0
        %4601 = vmatpush1.msra.mxu0 0.0
        %4602 = vmatprep.subr.mxu0 0.0
        %4603 = vmatpush1.msra.mxu0 0.0
        %4604 = vmatprep.subr.mxu0 0.0
        %4605 = vmatpush1.msra.mxu0 0.0
        %4606 = vmatprep.subr.mxu0 0.0
        %4607 = vmatpush1.msra.mxu0 0.0
        %4608 = vmatprep.subr.mxu0 0.0
        %4609 = vmatpush1.msra.mxu0 0.0
        %4610 = vmatprep.subr.mxu0 0.0
        %4611 = vmatpush1.msra.mxu0 0.0
        %4612 = vmatprep.subr.mxu0 0.0
        %4613 = vmatpush1.msra.mxu0 0.0
        %4614 = vmatprep.subr.mxu0 0.0
        %4615 = vmatpush1.msra.mxu0 0.0
        %4616 = vmatprep.subr.mxu0 0.0
        %4617 = vmatpush1.msra.mxu0 0.0
        %4618 = vmatprep.subr.mxu0 0.0
        %4619 = vmatpush1.msra.mxu0 0.0
        %4620 = vmatprep.subr.mxu0 0.0
        %4621 = vmatpush1.msra.mxu0 0.0
        %4622 = vmatprep.subr.mxu0 0.0
        %4623 = vmatpush1.msra.mxu0 0.0
        %4624 = vmatprep.subr.mxu0 0.0
        %4625 = vmatpush1.msra.mxu0 0.0
        %4626 = vmatprep.subr.mxu0 0.0
        %4627 = vmatpush1.msra.mxu0 0.0
        %4628 = vmatprep.subr.mxu0 0.0
        %4629 = vmatpush1.msra.mxu0 0.0
        %4630 = vmatprep.subr.mxu0 0.0
        %4631 = vmatpush1.msra.mxu0 0.0
        %4632 = vmatprep.subr.mxu0 0.0
        %4633 = vmatpush1.msra.mxu0 0.0
        %4634 = vmatprep.subr.mxu0 0.0
        %4635 = vmatpush1.msra.mxu0 0.0
        %4636 = vmatprep.subr.mxu0 0.0
        %4637 = vmatpush1.msra.mxu0 0.0
        %4638 = vmatprep.subr.mxu0 0.0
        %4639 = vmatpush1.msra.mxu0 0.0
        %4640 = vmatprep.subr.mxu0 0.0
        %4641 = vmatpush1.msra.mxu0 0.0
        %4642 = vmatprep.subr.mxu0 0.0
        %4643 = vmatpush1.msra.mxu0 0.0
        %4644 = vmatprep.subr.mxu0 0.0
        %4645 = vmatpush1.msra.mxu0 0.0
        %4646 = vmatprep.mubr.f32.mxu0 0.0
        %v4647 = vand.u32 %v4579, 4294901760
        %v4648 = vsub.f32 %v4579, %v4647
        %v4649 = vand.u32 %v4648, 4294901760
        %v4650 = vsub.f32 %v4648, %v4649
        %v4651 = vand.u32 %v4650, 4294901760
        %4652 = vmatmul.mubr.f32.gmra.mrb[0].mxu0 %v4651
        %v4653 = vpop.f32.mrb[0].mxu0
        %v4654 = vadd.f32 0.0, %v4653
        %v4655 = vpop.f32.mrb[0].mxu0
        %4656 = vdwg.mxu0
        %4657 = vmatprep.subr.mxu0 0.0
        %v4658 = vand.u32 %v4128, 4294901760
        %v4659 = vsub.f32 %v4128, %v4658
        %v4660 = vand.u32 %v4659, 4294901760
        %v4661 = vsub.f32 %v4659, %v4660
        %v4662 = vand.u32 %v4661, 4294901760
        %4663 = vmatpush1.msra.mxu0 %v4662
        %4664 = vmatprep.subr.mxu0 0.0
        %4665 = vmatpush1.msra.mxu0 0.0
        %4666 = vmatprep.subr.mxu0 0.0
        %4667 = vmatpush1.msra.mxu0 0.0
        %4668 = vmatprep.subr.mxu0 0.0
        %4669 = vmatpush1.msra.mxu0 0.0
        %4670 = vmatprep.subr.mxu0 0.0
        %4671 = vmatpush1.msra.mxu0 0.0
        %4672 = vmatprep.subr.mxu0 0.0
        %4673 = vmatpush1.msra.mxu0 0.0
        %4674 = vmatprep.subr.mxu0 0.0
        %4675 = vmatpush1.msra.mxu0 0.0
        %4676 = vmatprep.subr.mxu0 0.0
        %4677 = vmatpush1.msra.mxu0 0.0
        %4678 = vmatprep.subr.mxu0 0.0
        %4679 = vmatpush1.msra.mxu0 0.0
        %4680 = vmatprep.subr.mxu0 0.0
        %4681 = vmatpush1.msra.mxu0 0.0
        %4682 = vmatprep.subr.mxu0 0.0
        %4683 = vmatpush1.msra.mxu0 0.0
        %4684 = vmatprep.subr.mxu0 0.0
        %4685 = vmatpush1.msra.mxu0 0.0
        %4686 = vmatprep.subr.mxu0 0.0
        %4687 = vmatpush1.msra.mxu0 0.0
        %4688 = vmatprep.subr.mxu0 0.0
        %4689 = vmatpush1.msra.mxu0 0.0
        %4690 = vmatprep.subr.mxu0 0.0
        %4691 = vmatpush1.msra.mxu0 0.0
        %4692 = vmatprep.subr.mxu0 0.0
        %4693 = vmatpush1.msra.mxu0 0.0
        %4694 = vmatprep.subr.mxu0 0.0
        %4695 = vmatpush1.msra.mxu0 0.0
        %4696 = vmatprep.subr.mxu0 0.0
        %4697 = vmatpush1.msra.mxu0 0.0
        %4698 = vmatprep.subr.mxu0 0.0
        %4699 = vmatpush1.msra.mxu0 0.0
        %4700 = vmatprep.subr.mxu0 0.0
        %4701 = vmatpush1.msra.mxu0 0.0
        %4702 = vmatprep.subr.mxu0 0.0
        %4703 = vmatpush1.msra.mxu0 0.0
        %4704 = vmatprep.subr.mxu0 0.0
        %4705 = vmatpush1.msra.mxu0 0.0
        %4706 = vmatprep.subr.mxu0 0.0
        %4707 = vmatpush1.msra.mxu0 0.0
        %4708 = vmatprep.subr.mxu0 0.0
        %4709 = vmatpush1.msra.mxu0 0.0
        %4710 = vmatprep.subr.mxu0 0.0
        %4711 = vmatpush1.msra.mxu0 0.0
        %4712 = vmatprep.subr.mxu0 0.0
        %4713 = vmatpush1.msra.mxu0 0.0
        %4714 = vmatprep.subr.mxu0 0.0
        %4715 = vmatpush1.msra.mxu0 0.0
        %4716 = vmatprep.subr.mxu0 0.0
        %4717 = vmatpush1.msra.mxu0 0.0
        %4718 = vmatprep.subr.mxu0 0.0
        %4719 = vmatpush1.msra.mxu0 0.0
        %4720 = vmatprep.subr.mxu0 0.0
        %4721 = vmatpush1.msra.mxu0 0.0
        %4722 = vmatprep.subr.mxu0 0.0
        %4723 = vmatpush1.msra.mxu0 0.0
        %4724 = vmatprep.subr.mxu0 0.0
        %4725 = vmatpush1.msra.mxu0 0.0
        %4726 = vmatprep.mubr.f32.mxu0 0.0
        %v4727 = vand.u32 %v4579, 4294901760
        %4728 = vmatmul.mubr.f32.gmra.mrb[0].mxu0 %v4727
        %v4729 = vpop.f32.mrb[0].mxu0
        %v4730 = vadd.f32 %v4654, %v4729
        %v4731 = vpop.f32.mrb[0].mxu0
        %4732 = vdwg.mxu0
        %4733 = vmatprep.subr.mxu0 0.0
        %v4734 = vand.u32 %v4128, 4294901760
        %v4735 = vsub.f32 %v4128, %v4734
        %4736 = vmatpush1.msra.mxu0 %v4735
        %4737 = vmatprep.subr.mxu0 0.0
        %4738 = vmatpush1.msra.mxu0 0.0
        %4739 = vmatprep.subr.mxu0 0.0
        %4740 = vmatpush1.msra.mxu0 0.0
        %4741 = vmatprep.subr.mxu0 0.0
        %4742 = vmatpush1.msra.mxu0 0.0
        %4743 = vmatprep.subr.mxu0 0.0
        %4744 = vmatpush1.msra.mxu0 0.0
        %4745 = vmatprep.subr.mxu0 0.0
        %4746 = vmatpush1.msra.mxu0 0.0
        %4747 = vmatprep.subr.mxu0 0.0
        %4748 = vmatpush1.msra.mxu0 0.0
        %4749 = vmatprep.subr.mxu0 0.0
        %4750 = vmatpush1.msra.mxu0 0.0
        %4751 = vmatprep.subr.mxu0 0.0
        %4752 = vmatpush1.msra.mxu0 0.0
        %4753 = vmatprep.subr.mxu0 0.0
        %4754 = vmatpush1.msra.mxu0 0.0
        %4755 = vmatprep.subr.mxu0 0.0
        %4756 = vmatpush1.msra.mxu0 0.0
        %4757 = vmatprep.subr.mxu0 0.0
        %4758 = vmatpush1.msra.mxu0 0.0
        %4759 = vmatprep.subr.mxu0 0.0
        %4760 = vmatpush1.msra.mxu0 0.0
        %4761 = vmatprep.subr.mxu0 0.0
        %4762 = vmatpush1.msra.mxu0 0.0
        %4763 = vmatprep.subr.mxu0 0.0
        %4764 = vmatpush1.msra.mxu0 0.0
        %4765 = vmatprep.subr.mxu0 0.0
        %4766 = vmatpush1.msra.mxu0 0.0
        %4767 = vmatprep.subr.mxu0 0.0
        %4768 = vmatpush1.msra.mxu0 0.0
        %4769 = vmatprep.subr.mxu0 0.0
        %4770 = vmatpush1.msra.mxu0 0.0
        %4771 = vmatprep.subr.mxu0 0.0
        %4772 = vmatpush1.msra.mxu0 0.0
        %4773 = vmatprep.subr.mxu0 0.0
        %4774 = vmatpush1.msra.mxu0 0.0
        %4775 = vmatprep.subr.mxu0 0.0
        %4776 = vmatpush1.msra.mxu0 0.0
        %4777 = vmatprep.subr.mxu0 0.0
        %4778 = vmatpush1.msra.mxu0 0.0
        %4779 = vmatprep.subr.mxu0 0.0
        %4780 = vmatpush1.msra.mxu0 0.0
        %4781 = vmatprep.subr.mxu0 0.0
        %4782 = vmatpush1.msra.mxu0 0.0
        %4783 = vmatprep.subr.mxu0 0.0
        %4784 = vmatpush1.msra.mxu0 0.0
        %4785 = vmatprep.subr.mxu0 0.0
        %4786 = vmatpush1.msra.mxu0 0.0
        %4787 = vmatprep.subr.mxu0 0.0
        %4788 = vmatpush1.msra.mxu0 0.0
        %4789 = vmatprep.subr.mxu0 0.0
        %4790 = vmatpush1.msra.mxu0 0.0
        %4791 = vmatprep.subr.mxu0 0.0
        %4792 = vmatpush1.msra.mxu0 0.0
        %4793 = vmatprep.subr.mxu0 0.0
        %4794 = vmatpush1.msra.mxu0 0.0
        %4795 = vmatprep.subr.mxu0 0.0
        %4796 = vmatpush1.msra.mxu0 0.0
        %4797 = vmatprep.subr.mxu0 0.0
        %4798 = vmatpush1.msra.mxu0 0.0
        %4799 = vmatprep.mubr.f32.mxu0 0.0
        %v4800 = vand.u32 %v4579, 4294901760
        %v4801 = vsub.f32 %v4579, %v4800
        %4802 = vmatmul.mubr.f32.gmra.mrb[0].mxu0 %v4801
        %v4803 = vpop.f32.mrb[0].mxu0
        %v4804 = vadd.f32 %v4730, %v4803
        %v4805 = vpop.f32.mrb[0].mxu0
        %4806 = vdwg.mxu0
        %4807 = vmatprep.subr.mxu0 0.0
        %v4808 = vand.u32 %v4128, 4294901760
        %4809 = vmatpush1.msra.mxu0 %v4808
        %4810 = vmatprep.subr.mxu0 0.0
        %4811 = vmatpush1.msra.mxu0 0.0
        %4812 = vmatprep.subr.mxu0 0.0
        %4813 = vmatpush1.msra.mxu0 0.0
        %4814 = vmatprep.subr.mxu0 0.0
        %4815 = vmatpush1.msra.mxu0 0.0
        %4816 = vmatprep.subr.mxu0 0.0
        %4817 = vmatpush1.msra.mxu0 0.0
        %4818 = vmatprep.subr.mxu0 0.0
        %4819 = vmatpush1.msra.mxu0 0.0
        %4820 = vmatprep.subr.mxu0 0.0
        %4821 = vmatpush1.msra.mxu0 0.0
        %4822 = vmatprep.subr.mxu0 0.0
        %4823 = vmatpush1.msra.mxu0 0.0
        %4824 = vmatprep.subr.mxu0 0.0
        %4825 = vmatpush1.msra.mxu0 0.0
        %4826 = vmatprep.subr.mxu0 0.0
        %4827 = vmatpush1.msra.mxu0 0.0
        %4828 = vmatprep.subr.mxu0 0.0
        %4829 = vmatpush1.msra.mxu0 0.0
        %4830 = vmatprep.subr.mxu0 0.0
        %4831 = vmatpush1.msra.mxu0 0.0
        %4832 = vmatprep.subr.mxu0 0.0
        %4833 = vmatpush1.msra.mxu0 0.0
        %4834 = vmatprep.subr.mxu0 0.0
        %4835 = vmatpush1.msra.mxu0 0.0
        %4836 = vmatprep.subr.mxu0 0.0
        %4837 = vmatpush1.msra.mxu0 0.0
        %4838 = vmatprep.subr.mxu0 0.0
        %4839 = vmatpush1.msra.mxu0 0.0
        %4840 = vmatprep.subr.mxu0 0.0
        %4841 = vmatpush1.msra.mxu0 0.0
        %4842 = vmatprep.subr.mxu0 0.0
        %4843 = vmatpush1.msra.mxu0 0.0
        %4844 = vmatprep.subr.mxu0 0.0
        %4845 = vmatpush1.msra.mxu0 0.0
        %4846 = vmatprep.subr.mxu0 0.0
        %4847 = vmatpush1.msra.mxu0 0.0
        %4848 = vmatprep.subr.mxu0 0.0
        %4849 = vmatpush1.msra.mxu0 0.0
        %4850 = vmatprep.subr.mxu0 0.0
        %4851 = vmatpush1.msra.mxu0 0.0
        %4852 = vmatprep.subr.mxu0 0.0
        %4853 = vmatpush1.msra.mxu0 0.0
        %4854 = vmatprep.subr.mxu0 0.0
        %4855 = vmatpush1.msra.mxu0 0.0
        %4856 = vmatprep.subr.mxu0 0.0
        %4857 = vmatpush1.msra.mxu0 0.0
        %4858 = vmatprep.subr.mxu0 0.0
        %4859 = vmatpush1.msra.mxu0 0.0
        %4860 = vmatprep.subr.mxu0 0.0
        %4861 = vmatpush1.msra.mxu0 0.0
        %4862 = vmatprep.subr.mxu0 0.0
        %4863 = vmatpush1.msra.mxu0 0.0
        %4864 = vmatprep.subr.mxu0 0.0
        %4865 = vmatpush1.msra.mxu0 0.0
        %4866 = vmatprep.subr.mxu0 0.0
        %4867 = vmatpush1.msra.mxu0 0.0
        %4868 = vmatprep.subr.mxu0 0.0
        %4869 = vmatpush1.msra.mxu0 0.0
        %4870 = vmatprep.subr.mxu0 0.0
        %4871 = vmatpush1.msra.mxu0 0.0
        %4872 = vmatprep.mubr.f32.mxu0 0.0
        %v4873 = vand.u32 %v4579, 4294901760
        %v4874 = vsub.f32 %v4579, %v4873
        %v4875 = vand.u32 %v4874, 4294901760
        %4876 = vmatmul.mubr.f32.gmra.mrb[0].mxu0 %v4875
        %v4877 = vpop.f32.mrb[0].mxu0
        %v4878 = vadd.f32 %v4804, %v4877
        %v4879 = vpop.f32.mrb[0].mxu0
        %4880 = vdwg.mxu0
        %4881 = vmatprep.subr.mxu0 0.0
        %v4882 = vand.u32 %v4128, 4294901760
        %v4883 = vsub.f32 %v4128, %v4882
        %v4884 = vand.u32 %v4883, 4294901760
        %4885 = vmatpush1.msra.mxu0 %v4884
        %4886 = vmatprep.subr.mxu0 0.0
        %4887 = vmatpush1.msra.mxu0 0.0
        %4888 = vmatprep.subr.mxu0 0.0
        %4889 = vmatpush1.msra.mxu0 0.0
        %4890 = vmatprep.subr.mxu0 0.0
        %4891 = vmatpush1.msra.mxu0 0.0
        %4892 = vmatprep.subr.mxu0 0.0
        %4893 = vmatpush1.msra.mxu0 0.0
        %4894 = vmatprep.subr.mxu0 0.0
        %4895 = vmatpush1.msra.mxu0 0.0
        %4896 = vmatprep.subr.mxu0 0.0
        %4897 = vmatpush1.msra.mxu0 0.0
        %4898 = vmatprep.subr.mxu0 0.0
        %4899 = vmatpush1.msra.mxu0 0.0
        %4900 = vmatprep.subr.mxu0 0.0
        %4901 = vmatpush1.msra.mxu0 0.0
        %4902 = vmatprep.subr.mxu0 0.0
        %4903 = vmatpush1.msra.mxu0 0.0
        %4904 = vmatprep.subr.mxu0 0.0
        %4905 = vmatpush1.msra.mxu0 0.0
        %4906 = vmatprep.subr.mxu0 0.0
        %4907 = vmatpush1.msra.mxu0 0.0
        %4908 = vmatprep.subr.mxu0 0.0
        %4909 = vmatpush1.msra.mxu0 0.0
        %4910 = vmatprep.subr.mxu0 0.0
        %4911 = vmatpush1.msra.mxu0 0.0
        %4912 = vmatprep.subr.mxu0 0.0
        %4913 = vmatpush1.msra.mxu0 0.0
        %4914 = vmatprep.subr.mxu0 0.0
        %4915 = vmatpush1.msra.mxu0 0.0
        %4916 = vmatprep.subr.mxu0 0.0
        %4917 = vmatpush1.msra.mxu0 0.0
        %4918 = vmatprep.subr.mxu0 0.0
        %4919 = vmatpush1.msra.mxu0 0.0
        %4920 = vmatprep.subr.mxu0 0.0
        %4921 = vmatpush1.msra.mxu0 0.0
        %4922 = vmatprep.subr.mxu0 0.0
        %4923 = vmatpush1.msra.mxu0 0.0
        %4924 = vmatprep.subr.mxu0 0.0
        %4925 = vmatpush1.msra.mxu0 0.0
        %4926 = vmatprep.subr.mxu0 0.0
        %4927 = vmatpush1.msra.mxu0 0.0
        %4928 = vmatprep.subr.mxu0 0.0
        %4929 = vmatpush1.msra.mxu0 0.0
        %4930 = vmatprep.subr.mxu0 0.0
        %4931 = vmatpush1.msra.mxu0 0.0
        %4932 = vmatprep.subr.mxu0 0.0
        %4933 = vmatpush1.msra.mxu0 0.0
        %4934 = vmatprep.subr.mxu0 0.0
        %4935 = vmatpush1.msra.mxu0 0.0
        %4936 = vmatprep.subr.mxu0 0.0
        %4937 = vmatpush1.msra.mxu0 0.0
        %4938 = vmatprep.subr.mxu0 0.0
        %4939 = vmatpush1.msra.mxu0 0.0
        %4940 = vmatprep.subr.mxu0 0.0
        %4941 = vmatpush1.msra.mxu0 0.0
        %4942 = vmatprep.subr.mxu0 0.0
        %4943 = vmatpush1.msra.mxu0 0.0
        %4944 = vmatprep.subr.mxu0 0.0
        %4945 = vmatpush1.msra.mxu0 0.0
        %4946 = vmatprep.subr.mxu0 0.0
        %4947 = vmatpush1.msra.mxu0 0.0
        %4948 = vmatprep.mubr.f32.mxu0 0.0
        %v4949 = vand.u32 %v4579, 4294901760
        %4950 = vmatmul.mubr.f32.gmra.mrb[0].mxu0 %v4949
        %v4951 = vpop.f32.mrb[0].mxu0
        %v4952 = vadd.f32 %v4878, %v4951
        %v4953 = vpop.f32.mrb[0].mxu0
        %4954 = vdwg.mxu0
        %4955 = vmatprep.subr.mxu0 0.0
        %v4956 = vand.u32 %v4128, 4294901760
        %4957 = vmatpush1.msra.mxu0 %v4956
        %4958 = vmatprep.subr.mxu0 0.0
        %4959 = vmatpush1.msra.mxu0 0.0
        %4960 = vmatprep.subr.mxu0 0.0
        %4961 = vmatpush1.msra.mxu0 0.0
        %4962 = vmatprep.subr.mxu0 0.0
        %4963 = vmatpush1.msra.mxu0 0.0
        %4964 = vmatprep.subr.mxu0 0.0
        %4965 = vmatpush1.msra.mxu0 0.0
        %4966 = vmatprep.subr.mxu0 0.0
        %4967 = vmatpush1.msra.mxu0 0.0
        %4968 = vmatprep.subr.mxu0 0.0
        %4969 = vmatpush1.msra.mxu0 0.0
        %4970 = vmatprep.subr.mxu0 0.0
        %4971 = vmatpush1.msra.mxu0 0.0
        %4972 = vmatprep.subr.mxu0 0.0
        %4973 = vmatpush1.msra.mxu0 0.0
        %4974 = vmatprep.subr.mxu0 0.0
        %4975 = vmatpush1.msra.mxu0 0.0
        %4976 = vmatprep.subr.mxu0 0.0
        %4977 = vmatpush1.msra.mxu0 0.0
        %4978 = vmatprep.subr.mxu0 0.0
        %4979 = vmatpush1.msra.mxu0 0.0
        %4980 = vmatprep.subr.mxu0 0.0
        %4981 = vmatpush1.msra.mxu0 0.0
        %4982 = vmatprep.subr.mxu0 0.0
        %4983 = vmatpush1.msra.mxu0 0.0
        %4984 = vmatprep.subr.mxu0 0.0
        %4985 = vmatpush1.msra.mxu0 0.0
        %4986 = vmatprep.subr.mxu0 0.0
        %4987 = vmatpush1.msra.mxu0 0.0
        %4988 = vmatprep.subr.mxu0 0.0
        %4989 = vmatpush1.msra.mxu0 0.0
        %4990 = vmatprep.subr.mxu0 0.0
        %4991 = vmatpush1.msra.mxu0 0.0
        %4992 = vmatprep.subr.mxu0 0.0
        %4993 = vmatpush1.msra.mxu0 0.0
        %4994 = vmatprep.subr.mxu0 0.0
        %4995 = vmatpush1.msra.mxu0 0.0
        %4996 = vmatprep.subr.mxu0 0.0
        %4997 = vmatpush1.msra.mxu0 0.0
        %4998 = vmatprep.subr.mxu0 0.0
        %4999 = vmatpush1.msra.mxu0 0.0
        %5000 = vmatprep.subr.mxu0 0.0
        %5001 = vmatpush1.msra.mxu0 0.0
        %5002 = vmatprep.subr.mxu0 0.0
        %5003 = vmatpush1.msra.mxu0 0.0
        %5004 = vmatprep.subr.mxu0 0.0
        %5005 = vmatpush1.msra.mxu0 0.0
        %5006 = vmatprep.subr.mxu0 0.0
        %5007 = vmatpush1.msra.mxu0 0.0
        %5008 = vmatprep.subr.mxu0 0.0
        %5009 = vmatpush1.msra.mxu0 0.0
        %5010 = vmatprep.subr.mxu0 0.0
        %5011 = vmatpush1.msra.mxu0 0.0
        %5012 = vmatprep.subr.mxu0 0.0
        %5013 = vmatpush1.msra.mxu0 0.0
        %5014 = vmatprep.subr.mxu0 0.0
        %5015 = vmatpush1.msra.mxu0 0.0
        %5016 = vmatprep.subr.mxu0 0.0
        %5017 = vmatpush1.msra.mxu0 0.0
        %5018 = vmatprep.subr.mxu0 0.0
        %5019 = vmatpush1.msra.mxu0 0.0
        %5020 = vmatprep.mubr.f32.mxu0 0.0
        %v5021 = vand.u32 %v4579, 4294901760
        %5022 = vmatmul.mubr.f32.gmra.mrb[0].mxu0 %v5021
        %v5023 = vpop.f32.mrb[0].mxu0
        %v5024 = vadd.f32 %v4952, %v5023
        %v5025 = vpop.f32.mrb[0].mxu0
        %5026 = vdwg.mxu0
        %v5027 = vlaneseq
        %v5028 = vshrl.u32 %v5027, 7
        %v5029 = vsub.s32 0, %v5028
        %v5030 = vrot.slane %v4575, %v5029
        %v5031 = vsub.f32 %v3060, %v5030
        %v5032 = vsub.f32 %v3063, %v5030
        %v5033 = vsub.f32 %v3068, %v5030
        %v5034 = vsub.f32 %v3071, %v5030
        %v5035 = vsub.f32 %v3076, %v5030
        %v5036 = vsub.f32 %v3079, %v5030
        %v5037 = vsub.f32 %v3084, %v5030
        %v5038 = vsub.f32 %v3087, %v5030
        %v5039 = vmul.f32 %v5024, %v3090
        %v5040 = vlaneseq
        %v5041 = vshrl.u32 %v5040, 7
        %v5042 = vsub.s32 0, %v5041
        %v5043 = vrot.slane %v5039, %v5042
        %v5044 = vmul.f32 %v5031, %v5043
        %v5045 = vmul.f32 %v5032, %v5043
        %v5046 = vmul.f32 %v5033, %v5043
        %v5047 = vmul.f32 %v5034, %v5043
        %v5048 = vmul.f32 %v5035, %v5043
        %v5049 = vmul.f32 %v5036, %v5043
        %v5050 = vmul.f32 %v5037, %v5043
        %v5051 = vmul.f32 %v5038, %v5043
        %v5053 = vlaneseq
        %v5054 = vshrl.u32 %v5053, 7
        %v5055 = vsub.s32 0, %v5054
        %v5056 = vrot.slane %v3091, %v5055
        %v5058 = vadd.f32 %v5044, %v5056
        %v5059 = vadd.f32 %v5045, %v5056
        %v5060 = vadd.f32 %v5046, %v5056
        %v5061 = vadd.f32 %v5047, %v5056
        %v5062 = vadd.f32 %v5048, %v5056
        %v5063 = vadd.f32 %v5049, %v5056
        %v5064 = vadd.f32 %v5050, %v5056
        %v5065 = vadd.f32 %v5051, %v5056
        %v5066 = vmax.f32 %v5058, 0.0
        %v5067 = vmax.f32 %v5059, 0.0
        %v5068 = vmax.f32 %v5060, 0.0
        %v5069 = vmax.f32 %v5061, 0.0
        %v5070 = vmax.f32 %v5062, 0.0
        %v5071 = vmax.f32 %v5063, 0.0
        %v5072 = vmax.f32 %v5064, 0.0
        %v5073 = vmax.f32 %v5065, 0.0
        %5074 = vst.msk [vmem:[#allocation2] sm:$0xff] %vm459, 0.0
        %5075 = vst.msk [vmem:[#allocation2 + $0x8] sm:$0x3] %vm2444, 0.0
        %5076 = vst.msk [vmem:[#allocation2 + $0x10] sm:$0xff] %vm459, 0.0
        %5077 = vst.msk [vmem:[#allocation2 + $0x18] sm:$0x3] %vm2444, 0.0
        %5078 = vst.msk [vmem:[#allocation2 + $0x20] sm:$0xff] %vm459, 0.0
        %5079 = vst.msk [vmem:[#allocation2 + $0x28] sm:$0x3] %vm2444, 0.0
        %5080 = vst.msk [vmem:[#allocation2 + $0x30] sm:$0xff] %vm459, 0.0
        %5081 = vst.msk [vmem:[#allocation2 + $0x38] sm:$0x3] %vm2444, 0.0
        %5082 = vst.msk [vmem:[#allocation2 + $0x40] sm:$0xff] %vm459, 0.0
        %5083 = vst.msk [vmem:[#allocation2 + $0x48] sm:$0x3] %vm2444, 0.0
        %5084 = vst.msk [vmem:[#allocation2 + $0x50] sm:$0xff] %vm459, 0.0
        %5085 = vst.msk [vmem:[#allocation2 + $0x58] sm:$0x3] %vm2444, 0.0
        %5086 = vst.msk [vmem:[#allocation2 + $0x60] sm:$0xff] %vm459, 0.0
        %5087 = vst.msk [vmem:[#allocation2 + $0x68] sm:$0x3] %vm2444, 0.0
        %5088 = vst.msk [vmem:[#allocation2 + $0x70] sm:$0xff] %vm459, 0.0
        %5089 = vst.msk [vmem:[#allocation2 + $0x78] sm:$0x3] %vm2444, 0.0
        %5090 = vst.msk [vmem:[#allocation2 + $0x80] sm:$0xff] %vm459, 0.0
        %5091 = vst.msk [vmem:[#allocation2 + $0x88] sm:$0x3] %vm2444, 0.0
        %5092 = vst.msk [vmem:[#allocation2 + $0x90] sm:$0xff] %vm459, 0.0
        %5093 = vst.msk [vmem:[#allocation2 + $0x98] sm:$0x3] %vm2444, 0.0
        %5094 = vst.msk [vmem:[%s2464 + $0x1] sm:$0xff] %vm459, %v5066
        %5095 = vst.msk [vmem:[%s2464 + $0x11] sm:$0xff] %vm459, %v5067
        %5096 = vst.msk [vmem:[%s2464 + $0x21] sm:$0xff] %vm459, %v5068
        %5097 = vst.msk [vmem:[%s2464 + $0x31] sm:$0xff] %vm459, %v5069
        %5098 = vst.msk [vmem:[%s2464 + $0x41] sm:$0xff] %vm459, %v5070
        %5099 = vst.msk [vmem:[%s2464 + $0x51] sm:$0xff] %vm459, %v5071
        %5100 = vst.msk [vmem:[%s2464 + $0x61] sm:$0xff] %vm459, %v5072
        %5101 = vst.msk [vmem:[%s2464 + $0x71] sm:$0xff] %vm459, %v5073
        %v5102 = vld [vmem:[#allocation2] sm:$0xff]
        %v5103 = vld [vmem:[#allocation2 + $0x8] sm:$0x3]
        %v5104 = vld [vmem:[#allocation2 + $0x10] sm:$0xff]
        %v5105 = vld [vmem:[#allocation2 + $0x18] sm:$0x3]
        %v5106 = vld [vmem:[#allocation2 + $0x20] sm:$0xff]
        %v5107 = vld [vmem:[#allocation2 + $0x28] sm:$0x3]
        %v5108 = vld [vmem:[#allocation2 + $0x30] sm:$0xff]
        %v5109 = vld [vmem:[#allocation2 + $0x38] sm:$0x3]
        %v5110 = vld [vmem:[#allocation2 + $0x40] sm:$0xff]
        %v5111 = vld [vmem:[#allocation2 + $0x48] sm:$0x3]
        %v5112 = vld [vmem:[#allocation2 + $0x50] sm:$0xff]
        %v5113 = vld [vmem:[#allocation2 + $0x58] sm:$0x3]
        %v5114 = vld [vmem:[#allocation2 + $0x60] sm:$0xff]
        %v5115 = vld [vmem:[#allocation2 + $0x68] sm:$0x3]
        %v5116 = vld [vmem:[#allocation2 + $0x70] sm:$0xff]
        %v5117 = vld [vmem:[#allocation2 + $0x78] sm:$0x3]
        %v5118 = vld [vmem:[#allocation2 + $0x80] sm:$0xff]
        %v5119 = vld [vmem:[#allocation2 + $0x88] sm:$0x3]
        %v5120 = vld [vmem:[#allocation2 + $0x90] sm:$0xff]
        %v5121 = vld [vmem:[#allocation2 + $0x98] sm:$0x3]
        %v5138 = vrot.slane %v5102, 1
        %v5139 = vrot.slane %v5103, 1
        %v5140 = vsel %vm2509, %v5138, %v5139
        %v5141 = vrot.slane %v5104, 1
        %v5142 = vrot.slane %v5105, 1
        %v5143 = vsel %vm2509, %v5141, %v5142
        %v5144 = vrot.slane %v5106, 1
        %v5145 = vrot.slane %v5107, 1
        %v5146 = vsel %vm2509, %v5144, %v5145
        %v5147 = vrot.slane %v5108, 1
        %v5148 = vrot.slane %v5109, 1
        %v5149 = vsel %vm2509, %v5147, %v5148
        %v5150 = vrot.slane %v5110, 1
        %v5151 = vrot.slane %v5111, 1
        %v5152 = vsel %vm2509, %v5150, %v5151
        %v5153 = vrot.slane %v5112, 1
        %v5154 = vrot.slane %v5113, 1
        %v5155 = vsel %vm2509, %v5153, %v5154
        %v5156 = vrot.slane %v5114, 1
        %v5157 = vrot.slane %v5115, 1
        %v5158 = vsel %vm2509, %v5156, %v5157
        %v5159 = vrot.slane %v5116, 1
        %v5160 = vrot.slane %v5117, 1
        %v5161 = vsel %vm2509, %v5159, %v5160
        %v5162 = vrot.slane %v5102, 2
        %v5163 = vrot.slane %v5103, 2
        %v5164 = vsel %vm2534, %v5162, %v5163
        %v5165 = vrot.slane %v5104, 2
        %v5166 = vrot.slane %v5105, 2
        %v5167 = vsel %vm2534, %v5165, %v5166
        %v5168 = vrot.slane %v5106, 2
        %v5169 = vrot.slane %v5107, 2
        %v5170 = vsel %vm2534, %v5168, %v5169
        %v5171 = vrot.slane %v5108, 2
        %v5172 = vrot.slane %v5109, 2
        %v5173 = vsel %vm2534, %v5171, %v5172
        %v5174 = vrot.slane %v5110, 2
        %v5175 = vrot.slane %v5111, 2
        %v5176 = vsel %vm2534, %v5174, %v5175
        %v5177 = vrot.slane %v5112, 2
        %v5178 = vrot.slane %v5113, 2
        %v5179 = vsel %vm2534, %v5177, %v5178
        %v5180 = vrot.slane %v5114, 2
        %v5181 = vrot.slane %v5115, 2
        %v5182 = vsel %vm2534, %v5180, %v5181
        %v5183 = vrot.slane %v5116, 2
        %v5184 = vrot.slane %v5117, 2
        %v5185 = vsel %vm2534, %v5183, %v5184
        %v5188 = vrot.slane %v5118, 1
        %v5189 = vrot.slane %v5119, 1
        %v5190 = vsel %vm2509, %v5188, %v5189
        %v5199 = vrot.slane %v5118, 2
        %v5200 = vrot.slane %v5119, 2
        %v5201 = vsel %vm2534, %v5199, %v5200
        %v5204 = vrot.slane %v5120, 1
        %v5205 = vrot.slane %v5121, 1
        %v5206 = vsel %vm2509, %v5204, %v5205
        %v5207 = vrot.slane %v5120, 2
        %v5208 = vrot.slane %v5121, 2
        %v5209 = vsel %vm2534, %v5207, %v5208
        %5218 = vrot.lane.b32.xlu0 %v5140, 32
        %v5219 = vpop.permute.xlu0 %5218
        %5220 = vrot.lane.b32.xlu0 %v5143, 32
        %v5221 = vpop.permute.xlu0 %5220
        %5222 = vrot.lane.b32.xlu0 %v5146, 32
        %v5223 = vpop.permute.xlu0 %5222
        %5224 = vrot.lane.b32.xlu0 %v5149, 32
        %v5225 = vpop.permute.xlu0 %5224
        %5226 = vrot.lane.b32.xlu0 %v5152, 32
        %v5227 = vpop.permute.xlu0 %5226
        %5228 = vrot.lane.b32.xlu0 %v5155, 32
        %v5229 = vpop.permute.xlu0 %5228
        %5230 = vrot.lane.b32.xlu0 %v5158, 32
        %v5231 = vpop.permute.xlu0 %5230
        %5232 = vrot.lane.b32.xlu0 %v5161, 32
        %v5233 = vpop.permute.xlu0 %5232
        %5242 = vrot.lane.b32.xlu0 %v5164, 64
        %v5243 = vpop.permute.xlu0 %5242
        %5244 = vrot.lane.b32.xlu0 %v5167, 64
        %v5245 = vpop.permute.xlu0 %5244
        %5246 = vrot.lane.b32.xlu0 %v5170, 64
        %v5247 = vpop.permute.xlu0 %5246
        %5248 = vrot.lane.b32.xlu0 %v5173, 64
        %v5249 = vpop.permute.xlu0 %5248
        %5250 = vrot.lane.b32.xlu0 %v5176, 64
        %v5251 = vpop.permute.xlu0 %5250
        %5252 = vrot.lane.b32.xlu0 %v5179, 64
        %v5253 = vpop.permute.xlu0 %5252
        %5254 = vrot.lane.b32.xlu0 %v5182, 64
        %v5255 = vpop.permute.xlu0 %5254
        %5256 = vrot.lane.b32.xlu0 %v5185, 64
        %v5257 = vpop.permute.xlu0 %5256
        %5266 = vrot.lane.b32.xlu0 %v5104, 96
        %v5267 = vpop.permute.xlu0 %5266
        %5268 = vrot.lane.b32.xlu0 %v5106, 96
        %v5269 = vpop.permute.xlu0 %5268
        %5270 = vrot.lane.b32.xlu0 %v5108, 96
        %v5271 = vpop.permute.xlu0 %5270
        %5272 = vrot.lane.b32.xlu0 %v5110, 96
        %v5273 = vpop.permute.xlu0 %5272
        %5274 = vrot.lane.b32.xlu0 %v5112, 96
        %v5275 = vpop.permute.xlu0 %5274
        %5276 = vrot.lane.b32.xlu0 %v5114, 96
        %v5277 = vpop.permute.xlu0 %5276
        %5278 = vrot.lane.b32.xlu0 %v5116, 96
        %v5279 = vpop.permute.xlu0 %5278
        %5280 = vrot.lane.b32.xlu0 %v5118, 96
        %v5281 = vpop.permute.xlu0 %5280
        %5290 = vrot.lane.b32.xlu0 %v5167, 32
        %v5291 = vpop.permute.xlu0 %5290
        %5292 = vrot.lane.b32.xlu0 %v5170, 32
        %v5293 = vpop.permute.xlu0 %5292
        %5294 = vrot.lane.b32.xlu0 %v5173, 32
        %v5295 = vpop.permute.xlu0 %5294
        %5296 = vrot.lane.b32.xlu0 %v5176, 32
        %v5297 = vpop.permute.xlu0 %5296
        %5298 = vrot.lane.b32.xlu0 %v5179, 32
        %v5299 = vpop.permute.xlu0 %5298
        %5300 = vrot.lane.b32.xlu0 %v5182, 32
        %v5301 = vpop.permute.xlu0 %5300
        %5302 = vrot.lane.b32.xlu0 %v5185, 32
        %v5303 = vpop.permute.xlu0 %5302
        %5304 = vrot.lane.b32.xlu0 %v5201, 32
        %v5305 = vpop.permute.xlu0 %5304
        %5314 = vrot.lane.b32.xlu0 %v5106, 64
        %v5315 = vpop.permute.xlu0 %5314
        %5316 = vrot.lane.b32.xlu0 %v5108, 64
        %v5317 = vpop.permute.xlu0 %5316
        %5318 = vrot.lane.b32.xlu0 %v5110, 64
        %v5319 = vpop.permute.xlu0 %5318
        %5320 = vrot.lane.b32.xlu0 %v5112, 64
        %v5321 = vpop.permute.xlu0 %5320
        %5322 = vrot.lane.b32.xlu0 %v5114, 64
        %v5323 = vpop.permute.xlu0 %5322
        %5324 = vrot.lane.b32.xlu0 %v5116, 64
        %v5325 = vpop.permute.xlu0 %5324
        %5326 = vrot.lane.b32.xlu0 %v5118, 64
        %v5327 = vpop.permute.xlu0 %5326
        %5328 = vrot.lane.b32.xlu0 %v5120, 64
        %v5329 = vpop.permute.xlu0 %5328
        %5338 = vrot.lane.b32.xlu0 %v5146, 96
        %v5339 = vpop.permute.xlu0 %5338
        %5340 = vrot.lane.b32.xlu0 %v5149, 96
        %v5341 = vpop.permute.xlu0 %5340
        %5342 = vrot.lane.b32.xlu0 %v5152, 96
        %v5343 = vpop.permute.xlu0 %5342
        %5344 = vrot.lane.b32.xlu0 %v5155, 96
        %v5345 = vpop.permute.xlu0 %5344
        %5346 = vrot.lane.b32.xlu0 %v5158, 96
        %v5347 = vpop.permute.xlu0 %5346
        %5348 = vrot.lane.b32.xlu0 %v5161, 96
        %v5349 = vpop.permute.xlu0 %5348
        %5350 = vrot.lane.b32.xlu0 %v5190, 96
        %v5351 = vpop.permute.xlu0 %5350
        %5352 = vrot.lane.b32.xlu0 %v5206, 96
        %v5353 = vpop.permute.xlu0 %5352
        %v5362 = vsel %vm459, %v5102, %v5219
        %v5363 = vsel %vm459, %v5104, %v5221
        %v5364 = vsel %vm459, %v5106, %v5223
        %v5365 = vsel %vm459, %v5108, %v5225
        %v5366 = vsel %vm459, %v5110, %v5227
        %v5367 = vsel %vm459, %v5112, %v5229
        %v5368 = vsel %vm459, %v5114, %v5231
        %v5369 = vsel %vm459, %v5116, %v5233
        %v5370 = vsel %vm2743, %v5362, %v5243
        %v5371 = vsel %vm2743, %v5363, %v5245
        %v5372 = vsel %vm2743, %v5364, %v5247
        %v5373 = vsel %vm2743, %v5365, %v5249
        %v5374 = vsel %vm2743, %v5366, %v5251
        %v5375 = vsel %vm2743, %v5367, %v5253
        %v5376 = vsel %vm2743, %v5368, %v5255
        %v5377 = vsel %vm2743, %v5369, %v5257
        %v5378 = vsel %vm2752, %v5370, %v5267
        %v5379 = vsel %vm2752, %v5371, %v5269
        %v5380 = vsel %vm2752, %v5372, %v5271
        %v5381 = vsel %vm2752, %v5373, %v5273
        %v5382 = vsel %vm2752, %v5374, %v5275
        %v5383 = vsel %vm2752, %v5375, %v5277
        %v5384 = vsel %vm2752, %v5376, %v5279
        %v5385 = vsel %vm2752, %v5377, %v5281
        %v5386 = vsel %vm459, %v5143, %v5291
        %v5387 = vsel %vm459, %v5146, %v5293
        %v5388 = vsel %vm459, %v5149, %v5295
        %v5389 = vsel %vm459, %v5152, %v5297
        %v5390 = vsel %vm459, %v5155, %v5299
        %v5391 = vsel %vm459, %v5158, %v5301
        %v5392 = vsel %vm459, %v5161, %v5303
        %v5393 = vsel %vm459, %v5190, %v5305
        %v5394 = vsel %vm2743, %v5386, %v5315
        %v5395 = vsel %vm2743, %v5387, %v5317
        %v5396 = vsel %vm2743, %v5388, %v5319
        %v5397 = vsel %vm2743, %v5389, %v5321
        %v5398 = vsel %vm2743, %v5390, %v5323
        %v5399 = vsel %vm2743, %v5391, %v5325
        %v5400 = vsel %vm2743, %v5392, %v5327
        %v5401 = vsel %vm2743, %v5393, %v5329
        %v5402 = vsel %vm2752, %v5394, %v5339
        %v5403 = vsel %vm2752, %v5395, %v5341
        %v5404 = vsel %vm2752, %v5396, %v5343
        %v5405 = vsel %vm2752, %v5397, %v5345
        %v5406 = vsel %vm2752, %v5398, %v5347
        %v5407 = vsel %vm2752, %v5399, %v5349
        %v5408 = vsel %vm2752, %v5400, %v5351
        %v5409 = vsel %vm2752, %v5401, %v5353
        %v5410 = vpack.c.bf16 %v5379, %v5378
        %v5411 = vpack.c.bf16 %v5403, %v5402
        %v5412 = vpack.c.bf16 %v5173, %v5170
        %v5413 = vpack.c.bf16 %v5381, %v5380
        %v5414 = vpack.c.bf16 %v5405, %v5404
        %v5415 = vpack.c.bf16 %v5179, %v5176
        %v5416 = vpack.c.bf16 %v5383, %v5382
        %v5417 = vpack.c.bf16 %v5407, %v5406
        %v5418 = vpack.c.bf16 %v5185, %v5182
        %v5419 = vpack.c.bf16 %v5385, %v5384
        %v5420 = vpack.c.bf16 %v5409, %v5408
        %v5421 = vpack.c.bf16 %v5209, %v5201
        %v5422 = vld [vmem:[%s10] sm:$0xf]
        %v5423 = vld [vmem:[%s10 + $0x4] sm:$0xf]
        %v5424 = vld [vmem:[%s10 + $0x8] sm:$0xf]
        %v5425 = vld [vmem:[%s10 + $0xc] sm:$0xf]
        %v5426 = vld [vmem:[%s10 + $0x10] sm:$0xf]
        %v5427 = vld [vmem:[%s10 + $0x14] sm:$0xf]
        %v5428 = vld [vmem:[%s10 + $0x18] sm:$0xf]
        %v5429 = vld [vmem:[%s10 + $0x1c] sm:$0xf]
        %v5430 = vld [vmem:[%s10 + $0x20] sm:$0xf]
        %v5431 = vld [vmem:[%s10 + $0x24] sm:$0xf]
        %v5432 = vld [vmem:[%s10 + $0x28] sm:$0xf]
        %v5433 = vld [vmem:[%s10 + $0x2c] sm:$0xf]
        %v5434 = vld [vmem:[%s10 + $0x30] sm:$0xf]
        %v5435 = vld [vmem:[%s10 + $0x34] sm:$0xf]
        %v5436 = vld [vmem:[%s10 + $0x38] sm:$0xf]
        %v5437 = vld [vmem:[%s10 + $0x3c] sm:$0xf]
        %v5438 = vld [vmem:[%s10 + $0x40] sm:$0xf]
        %v5439 = vld [vmem:[%s10 + $0x44] sm:$0xf]
        %v5440 = vld [vmem:[%s10 + $0x48] sm:$0xf]
        %v5441 = vld [vmem:[%s10 + $0x4c] sm:$0xf]
        %v5442 = vld [vmem:[%s10 + $0x50] sm:$0xf]
        %v5443 = vld [vmem:[%s10 + $0x54] sm:$0xf]
        %v5444 = vld [vmem:[%s10 + $0x58] sm:$0xf]
        %v5445 = vld [vmem:[%s10 + $0x5c] sm:$0xf]
        %v5446 = vld [vmem:[%s10 + $0x60] sm:$0xf]
        %v5447 = vld [vmem:[%s10 + $0x64] sm:$0xf]
        %v5448 = vld [vmem:[%s10 + $0x68] sm:$0xf]
        %v5449 = vld [vmem:[%s10 + $0x6c] sm:$0xf]
        %v5450 = vld [vmem:[%s10 + $0x70] sm:$0xf]
        %v5451 = vld [vmem:[%s10 + $0x74] sm:$0xf]
        %v5452 = vld [vmem:[%s10 + $0x78] sm:$0xf]
        %v5453 = vld [vmem:[%s10 + $0x7c] sm:$0xf]
        %v5454 = vld [vmem:[%s10 + $0x80] sm:$0xf]
        %v5455 = vld [vmem:[%s10 + $0x84] sm:$0xf]
        %v5456 = vld [vmem:[%s10 + $0x88] sm:$0xf]
        %v5457 = vld [vmem:[%s10 + $0x8c] sm:$0xf]
        %v5458 = vld [vmem:[%s11] sm:$0x1]
        %v5460 = vlaneseq
        %v5461 = vshrl.u32 %v5460, 7
        %v5462 = vsub.s32 0, %v5461
        %v5463 = vrot.slane %v5458, %v5462
        %v5501 = vunpack.c.l.b16 %v5422
        %v5502 = vunpack.c.l.b16 %v5423
        %v5503 = vunpack.c.l.b16 %v5424
        %v5504 = vunpack.c.l.b16 %v5425
        %v5505 = vunpack.c.l.b16 %v5426
        %v5506 = vunpack.c.l.b16 %v5427
        %v5507 = vunpack.c.l.b16 %v5428
        %v5508 = vunpack.c.l.b16 %v5429
        %v5509 = vunpack.c.l.b16 %v5430
        %v5510 = vunpack.c.l.b16 %v5431
        %v5511 = vunpack.c.l.b16 %v5432
        %v5512 = vunpack.c.l.b16 %v5433
        %v5513 = vunpack.c.l.b16 %v5434
        %v5514 = vunpack.c.l.b16 %v5435
        %v5515 = vunpack.c.l.b16 %v5436
        %v5516 = vunpack.c.l.b16 %v5437
        %v5517 = vunpack.c.l.b16 %v5438
        %v5518 = vunpack.c.l.b16 %v5439
        %v5519 = vunpack.c.l.b16 %v5440
        %v5520 = vunpack.c.l.b16 %v5441
        %v5521 = vunpack.c.l.b16 %v5442
        %v5522 = vunpack.c.l.b16 %v5443
        %v5523 = vunpack.c.l.b16 %v5444
        %v5524 = vunpack.c.l.b16 %v5445
        %v5525 = vunpack.c.l.b16 %v5446
        %v5526 = vunpack.c.l.b16 %v5447
        %v5527 = vunpack.c.l.b16 %v5448
        %v5528 = vunpack.c.l.b16 %v5449
        %v5529 = vunpack.c.l.b16 %v5450
        %v5530 = vunpack.c.l.b16 %v5451
        %v5531 = vunpack.c.l.b16 %v5452
        %v5532 = vunpack.c.l.b16 %v5453
        %v5533 = vunpack.c.l.b16 %v5454
        %v5534 = vunpack.c.l.b16 %v5455
        %v5535 = vunpack.c.l.b16 %v5456
        %v5536 = vunpack.c.l.b16 %v5457
        %v5537 = vpack.c.b16 %v5502, %v5501
        %v5538 = vpack.c.b16 %v5504, %v5503
        %v5539 = vpack.c.b16 %v5506, %v5505
        %v5540 = vpack.c.b16 %v5508, %v5507
        %v5541 = vpack.c.b16 %v5510, %v5509
        %v5542 = vpack.c.b16 %v5512, %v5511
        %v5543 = vpack.c.b16 %v5514, %v5513
        %v5544 = vpack.c.b16 %v5516, %v5515
        %v5545 = vpack.c.b16 %v5518, %v5517
        %v5546 = vpack.c.b16 %v5520, %v5519
        %v5547 = vpack.c.b16 %v5522, %v5521
        %v5548 = vpack.c.b16 %v5524, %v5523
        %v5549 = vpack.c.b16 %v5526, %v5525
        %v5550 = vpack.c.b16 %v5528, %v5527
        %v5551 = vpack.c.b16 %v5530, %v5529
        %v5552 = vpack.c.b16 %v5532, %v5531
        %v5553 = vpack.c.b16 %v5534, %v5533
        %v5554 = vpack.c.b16 %v5536, %v5535
        %v5574 = vsel %vm459, %v5412, 0
        %v5577 = vsel %vm459, %v5415, 0
        %v5580 = vsel %vm459, %v5418, 0
        %v5583 = vsel %vm459, %v5421, 0
        %5585 = vmatprep.subr.bf16.mxu0 0
        %5586 = vmatpush1.bf16.msra.mxu0 %v5537
        %5587 = vmatprep.subr.bf16.mxu0 0
        %5588 = vmatpush1.bf16.msra.mxu0 %v5538
        %5589 = vmatprep.subr.bf16.mxu0 0
        %5590 = vmatpush1.bf16.msra.mxu0 %v5539
        %5591 = vmatprep.subr.bf16.mxu0 0
        %5592 = vmatpush1.bf16.msra.mxu0 %v5540
        %5593 = vmatprep.subr.bf16.mxu0 0
        %5594 = vmatpush1.bf16.msra.mxu0 %v5541
        %5595 = vmatprep.subr.bf16.mxu0 0
        %5596 = vmatpush1.bf16.msra.mxu0 %v5542
        %5597 = vmatprep.subr.bf16.mxu0 0
        %5598 = vmatpush1.bf16.msra.mxu0 %v5543
        %5599 = vmatprep.subr.bf16.mxu0 0
        %5600 = vmatpush1.bf16.msra.mxu0 %v5544
        %5601 = vmatprep.subr.bf16.mxu0 0
        %5602 = vmatpush1.bf16.msra.mxu0 %v5545
        %5603 = vmatprep.subr.bf16.mxu0 0
        %5604 = vmatpush1.bf16.msra.mxu0 %v5546
        %5605 = vmatprep.subr.bf16.mxu0 0
        %5606 = vmatpush1.bf16.msra.mxu0 %v5547
        %5607 = vmatprep.subr.bf16.mxu0 0
        %5608 = vmatpush1.bf16.msra.mxu0 %v5548
        %5609 = vmatprep.subr.bf16.mxu0 0
        %5610 = vmatpush1.bf16.msra.mxu0 %v5549
        %5611 = vmatprep.subr.bf16.mxu0 0
        %5612 = vmatpush1.bf16.msra.mxu0 %v5550
        %5613 = vmatprep.subr.bf16.mxu0 0
        %5614 = vmatpush1.bf16.msra.mxu0 %v5551
        %5615 = vmatprep.subr.bf16.mxu0 0
        %5616 = vmatpush1.bf16.msra.mxu0 %v5552
        %5617 = vmatprep.mubr.bf16.mxu0 %v5411
        %5618 = vmatmul.mubr.bf16.gmra.mrb[0].mxu0 %v5410
        %v5619 = vpop.f32.mrb[0].mxu0
        %v5620 = vadd.f32 %v5463, %v5619
        %v5621 = vpop.f32.mrb[0].mxu0
        %v5622 = vpop.f32.mrb[0].mxu0
        %v5623 = vadd.f32 %v5463, %v5622
        %v5624 = vpop.f32.mrb[0].mxu0
        %5625 = vmatprep.mubr.bf16.mxu0 %v5414
        %5626 = vmatmul.mubr.bf16.gmra.mrb[0].mxu0 %v5413
        %v5627 = vpop.f32.mrb[0].mxu0
        %v5628 = vadd.f32 %v5463, %v5627
        %v5629 = vpop.f32.mrb[0].mxu0
        %v5630 = vpop.f32.mrb[0].mxu0
        %v5631 = vadd.f32 %v5463, %v5630
        %v5632 = vpop.f32.mrb[0].mxu0
        %5633 = vmatprep.mubr.bf16.mxu0 %v5417
        %5634 = vmatmul.mubr.bf16.gmra.mrb[0].mxu0 %v5416
        %v5635 = vpop.f32.mrb[0].mxu0
        %v5636 = vadd.f32 %v5463, %v5635
        %v5637 = vpop.f32.mrb[0].mxu0
        %v5638 = vpop.f32.mrb[0].mxu0
        %v5639 = vadd.f32 %v5463, %v5638
        %v5640 = vpop.f32.mrb[0].mxu0
        %5641 = vmatprep.mubr.bf16.mxu0 %v5420
        %5642 = vmatmul.mubr.bf16.gmra.mrb[0].mxu0 %v5419
        %v5643 = vpop.f32.mrb[0].mxu0
        %v5644 = vadd.f32 %v5463, %v5643
        %v5645 = vpop.f32.mrb[0].mxu0
        %v5646 = vpop.f32.mrb[0].mxu0
        %v5647 = vadd.f32 %v5463, %v5646
        %v5648 = vpop.f32.mrb[0].mxu0
        %5649 = vdwg.mxu0
        %5650 = vmatprep.subr.bf16.mxu0 0
        %5651 = vmatpush1.bf16.msra.mxu0 %v5553
        %5652 = vmatprep.subr.bf16.mxu0 0
        %5653 = vmatpush1.bf16.msra.mxu0 %v5554
        %5654 = vmatprep.subr.bf16.mxu0 0
        %5655 = vmatpush1.bf16.msra.mxu0 0
        %5656 = vmatprep.subr.bf16.mxu0 0
        %5657 = vmatpush1.bf16.msra.mxu0 0
        %5658 = vmatprep.subr.bf16.mxu0 0
        %5659 = vmatpush1.bf16.msra.mxu0 0
        %5660 = vmatprep.subr.bf16.mxu0 0
        %5661 = vmatpush1.bf16.msra.mxu0 0
        %5662 = vmatprep.subr.bf16.mxu0 0
        %5663 = vmatpush1.bf16.msra.mxu0 0
        %5664 = vmatprep.subr.bf16.mxu0 0
        %5665 = vmatpush1.bf16.msra.mxu0 0
        %5666 = vmatprep.subr.bf16.mxu0 0
        %5667 = vmatpush1.bf16.msra.mxu0 0
        %5668 = vmatprep.subr.bf16.mxu0 0
        %5669 = vmatpush1.bf16.msra.mxu0 0
        %5670 = vmatprep.subr.bf16.mxu0 0
        %5671 = vmatpush1.bf16.msra.mxu0 0
        %5672 = vmatprep.subr.bf16.mxu0 0
        %5673 = vmatpush1.bf16.msra.mxu0 0
        %5674 = vmatprep.subr.bf16.mxu0 0
        %5675 = vmatpush1.bf16.msra.mxu0 0
        %5676 = vmatprep.subr.bf16.mxu0 0
        %5677 = vmatpush1.bf16.msra.mxu0 0
        %5678 = vmatprep.subr.bf16.mxu0 0
        %5679 = vmatpush1.bf16.msra.mxu0 0
        %5680 = vmatprep.subr.bf16.mxu0 0
        %5681 = vmatpush1.bf16.msra.mxu0 0
        %5682 = vmatprep.mubr.bf16.mxu0 0
        %5683 = vmatmul.mubr.bf16.gmra.mrb[0].mxu0 %v5574
        %v5684 = vpop.f32.mrb[0].mxu0
        %v5685 = vadd.f32 %v5620, %v5684
        %v5686 = vpop.f32.mrb[0].mxu0
        %v5687 = vpop.f32.mrb[0].mxu0
        %v5688 = vadd.f32 %v5623, %v5687
        %v5689 = vpop.f32.mrb[0].mxu0
        %5690 = vmatprep.mubr.bf16.mxu0 0
        %5691 = vmatmul.mubr.bf16.gmra.mrb[0].mxu0 %v5577
        %v5692 = vpop.f32.mrb[0].mxu0
        %v5693 = vadd.f32 %v5628, %v5692
        %v5694 = vpop.f32.mrb[0].mxu0
        %v5695 = vpop.f32.mrb[0].mxu0
        %v5696 = vadd.f32 %v5631, %v5695
        %v5697 = vpop.f32.mrb[0].mxu0
        %5698 = vmatprep.mubr.bf16.mxu0 0
        %5699 = vmatmul.mubr.bf16.gmra.mrb[0].mxu0 %v5580
        %v5700 = vpop.f32.mrb[0].mxu0
        %v5701 = vadd.f32 %v5636, %v5700
        %v5702 = vpop.f32.mrb[0].mxu0
        %v5703 = vpop.f32.mrb[0].mxu0
        %v5704 = vadd.f32 %v5639, %v5703
        %v5705 = vpop.f32.mrb[0].mxu0
        %5706 = vmatprep.mubr.bf16.mxu0 0
        %5707 = vmatmul.mubr.bf16.gmra.mrb[0].mxu0 %v5583
        %v5708 = vpop.f32.mrb[0].mxu0
        %v5709 = vadd.f32 %v5644, %v5708
        %v5710 = vpop.f32.mrb[0].mxu0
        %v5711 = vpop.f32.mrb[0].mxu0
        %v5712 = vadd.f32 %v5647, %v5711
        %v5713 = vpop.f32.mrb[0].mxu0
        %5714 = vdwg.mxu0
        %v5715 = vadd.f32 %v5685, %v449
        %v5716 = vadd.f32 %v5688, %v450
        %v5717 = vadd.f32 %v5693, %v451
        %v5718 = vadd.f32 %v5696, %v452
        %v5719 = vadd.f32 %v5701, %v453
        %v5720 = vadd.f32 %v5704, %v454
        %v5721 = vadd.f32 %v5709, %v455
        %v5722 = vadd.f32 %v5712, %v456
        %5723 = vst.msk [vmem:[%s421] sm:$0xff] %vm459, %v5715
        %5724 = vst.msk [vmem:[%s421 + $0x8] sm:$0xff] %vm459, %v5716
        %5725 = vst.msk [vmem:[%s421 + $0x10] sm:$0xff] %vm459, %v5717
        %5726 = vst.msk [vmem:[%s421 + $0x18] sm:$0xff] %vm459, %v5718
        %5727 = vst.msk [vmem:[%s421 + $0x20] sm:$0xff] %vm459, %v5719
        %5728 = vst.msk [vmem:[%s421 + $0x28] sm:$0xff] %vm459, %v5720
        %5729 = vst.msk [vmem:[%s421 + $0x30] sm:$0xff] %vm459, %v5721
        %5730 = vst.msk [vmem:[%s421 + $0x38] sm:$0xff] %vm459, %v5722
        %s5731 = sand.u32 %s296, 1
        %s5732 = scalar_lea.sflag [#allocation4], %s5731
        %s5733 = sand.u32 %s296, 1
        %s5734 = smul.addr %s5733, 64
        %s5735 = scalar_lea.vmem [#allocation3], %s5734
        // Predicated region
        $region69: #{residual_block_pallas.1} parent=67 // pred_check
          %p5736 = pneg %p306
        $region70: #{residual_block_pallas.1} parent=67 // pred_check_branch
          %5738 = sbr.rel (%p5736) target = $region72
        $region71: #{residual_block_pallas.1} parent=67 // pred_region
          %s5740 = ssub.s32 1024, 1024
          %5741 = vsyncadd %s5732, %s5740
          %s5742 = smul.addr %s26, 8
          %s5743 = smul.addr %s5742, 128
          %s5744 = scalar_lea.hbm %s12, %s5743
          %s5745 = sshll.u32 %s5735, 4
          %s5746 = int_to_ptr.vmem [resolvable:$true] %s5745
          %5751 = dma.vmem_to_hbm [thread:$0]  %s5746, 1024, %s5744, %s5732, 128, 128, 8
        $region72: #{residual_block_pallas.1} parent=67 // pred_fallthru
          _
      $region68: #{residual_block_pallas.1} parent=5 // pred_fallthru
        _
      %p5752 = scmp.le.s32.totalorder 2, %s21
      // Predicated region
      $region73: #{residual_block_pallas.1} parent=5 // pred_check
        %p5753 = pneg %p5752
      $region74: #{residual_block_pallas.1} parent=5 // pred_check_branch
        %5755 = sbr.rel (%p5753) target = $region76
      $region75: #{residual_block_pallas.1} parent=5 // pred_region
        %s5756 = ssub.s32 %s21, 2
        // Predicated region
        $region77: #{residual_block_pallas.1} parent=75 // pred_check
          %p5757 = pneg %p312
        $region78: #{residual_block_pallas.1} parent=75 // pred_check_branch
          %5759 = sbr.rel (%p5757) target = $region80
        $region79: #{residual_block_pallas.1} parent=75 // pred_region
          %s5760 = sand.u32 %s297, 1
          %s5761 = scalar_lea.sflag [#allocation4], %s5760
          %s5762 = sand.u32 %s297, 1
          %s5763 = smul.addr %s5762, 64
          %s5764 = scalar_lea.vmem [#allocation3], %s5763
          %5765 = dma.done %s5761, 1024
        $region80: #{residual_block_pallas.1} parent=75 // pred_fallthru
          _
      $region76: #{residual_block_pallas.1} parent=5 // pred_fallthru
        _
    $region6: #{residual_block_pallas.1} parent=1 // loop_footer
      %s25 = sadd.s32 1, %s21
    $region7: #{residual_block_pallas.1} parent=1 // loop_footer_branch
      %20 = sbr.rel target = $region3
    $region8: #{residual_block_pallas.1} parent=1 // loop_exit
      _
    %5766 = vsyncpa [#allocation4], 1
    %s5767 = scalar_lea.sflag [#allocation4], 1
    %5768 = vsyncpa %s5767, 1

</llo_original>
